<compile_context>
chip_gen: v5e
topology: v5e:2x2
jax: 0.10.0
libtpu: 0.0.40
codegen_flags: <defaults>
</compile_context>

<pallas_src>
import functools

import jax
import jax.numpy as jnp
from jax import lax
from jax.experimental import pallas as pl
from jax.experimental.pallas import tpu as pltpu

BATCH = 2
CHANNELS = 4
IMAGE_H = 16
IMAGE_W = 16
NUM_META_FEATURES = 8
NUM_CLASSES = 10

C1, C2, C3 = 32, 64, 128


# ----------------------------------------------------------------------------
# Fused forward kernel: the whole batch in one grid step.
# ----------------------------------------------------------------------------
def _max_pool_2x2(acc, nb, h, w):
    """acc: (nb*h*w, c) f32 with rows in (n, y, x) row-major order.
    Returns (nb, h/2, w/2, c) f32."""
    c = acc.shape[-1]
    # H direction: split even/odd rows on MAJOR axes only, pure-VPU max.
    t = acc.reshape(nb, h // 2, 2, w, c)
    y = jnp.maximum(t[:, :, 0], t[:, :, 1])                 # (nb, h/2, w, c)
    # W direction: proven reshape+max compaction along the sublane axis.
    return y.reshape(nb, h // 2, w // 2, 2, c).max(axis=3)  # (nb, h/2, w/2, c)


def _fused_forward_kernel(H, W,
                          patch1_ref, meta_ref,
                          wc1_ref, bc1_ref, wc2_ref, bc2_ref, wc3_ref, bc3_ref,
                          w1_ref, b1_ref, wm_ref, bm_ref,
                          wo_img_ref, wo_meta_ref, bo_ref,
                          o_ref,
                          xp2_ref, xp3_ref):
    nb = meta_ref.shape[0]

    def conv3x3_relu_pool(act, xp_ref, w_ref, b_ref):
        _, h, w, cin = act.shape
        # ---- halo-only zero init (interior is fully overwritten below) -----
        xp_ref[:, 0:1, :, :] = jnp.zeros((nb, 1, w + 2, cin), xp_ref.dtype)
        xp_ref[:, h + 1:h + 2, :, :] = jnp.zeros((nb, 1, w + 2, cin), xp_ref.dtype)
        xp_ref[:, :, 0:1, :] = jnp.zeros((nb, h + 2, 1, cin), xp_ref.dtype)
        xp_ref[:, :, w + 1:w + 2, :] = jnp.zeros((nb, h + 2, 1, cin), xp_ref.dtype)
        # ---- "same" padding: single f32->bf16 cast on the pooled activation -
        xp_ref[:, 1:h + 1, 1:w + 1, :] = act.astype(xp_ref.dtype)
        # ---- im2col: one (nb*h*w, 9*cin) bf16 patch, one wide-K MXU matmul --
        taps = [xp_ref[:, dy:dy + h, dx:dx + w, :].reshape(nb * h * w, cin)
                for dy in range(3) for dx in range(3)]
        patch = jnp.concatenate(taps, axis=-1)               # (nb*h*w, 9*cin)
        acc = jnp.dot(patch, w_ref[...],
                      preferred_element_type=jnp.float32)    # f32 accumulate
        acc = jnp.maximum(acc + b_ref[...], 0.0)              # bias+ReLU (f32)
        return _max_pool_2x2(acc, nb, h, w)

    # ---- conv1: wrapper-side im2col input, single wide-K MXU matmul --------
    a1 = jnp.dot(patch1_ref[...], wc1_ref[...],
                 preferred_element_type=jnp.float32)          # (nb*H*W, 32)
    a1 = jnp.maximum(a1 + bc1_ref[...], 0.0)
    p1 = _max_pool_2x2(a1, nb, H, W)                          # (nb, H/2, W/2, 32)

    p2 = conv3x3_relu_pool(p1, xp2_ref, wc2_ref, bc2_ref)     # (nb, H/4, W/4, 64)
    p3 = conv3x3_relu_pool(p2, xp3_ref, wc3_ref, bc3_ref)     # (nb, H/8, W/8, 128)

    # ---- flatten in NHWC order (w1 rows are stored in the same order) ------
    hp, wp = p3.shape[1], p3.shape[2]
    rows = [p3[:, yo, xo, :] for yo in range(hp) for xo in range(wp)]
    flat = jnp.concatenate(rows, axis=-1)                     # (nb, hp*wp*128)

    h_img = jnp.maximum(
        jnp.dot(flat.astype(jnp.bfloat16), w1_ref[...],
                preferred_element_type=jnp.float32) + b1_ref[...], 0.0)
    # TODO(synk): nn.Dropout(0.5) is identity at inference; not applied here.
    h_meta = jnp.maximum(
        jnp.dot(meta_ref[...].astype(jnp.bfloat16), wm_ref[...],
                preferred_element_type=jnp.float32) + bm_ref[...], 0.0)
    # concat((h_img, h_meta), 1) @ Wo == h_img @ Wo[:128] + h_meta @ Wo[128:]
    out = (jnp.dot(h_img.astype(jnp.bfloat16), wo_img_ref[...],
                   preferred_element_type=jnp.float32)
           + jnp.dot(h_meta.astype(jnp.bfloat16), wo_meta_ref[...],
                     preferred_element_type=jnp.float32)
           + bo_ref[...])
    o_ref[...] = out.astype(o_ref.dtype)                      # one (N, C) store


# ----------------------------------------------------------------------------
# Wrapper: single pallas_call for the whole forward pass.
# ----------------------------------------------------------------------------
def multi_input_forward(img_nchw, meta, p):
    N, Cin, H, W = img_nchw.shape
    F = meta.shape[-1]
    num_classes = p["bo"].shape[-1]

    # Wrapper-side preprocessing for conv1: NCHW->NHWC + "same" pad + 9-tap
    # im2col, emitted as bf16.  XLA fuses this into one small op; the extra
    # DMA is ~36 KB/image, negligible, and the lane-sparse Cin=4 data never
    # enters the kernel.
    x_nhwc = jnp.transpose(img_nchw, (0, 2, 3, 1))
    xpad = jnp.pad(x_nhwc, ((0, 0), (1, 1), (1, 1), (0, 0)))
    taps = [xpad[:, dy:dy + H, dx:dx + W, :]
            for dy in range(3) for dx in range(3)]
    patch1 = jnp.concatenate(taps, axis=-1).reshape(N * H * W, 9 * Cin)
    patch1 = patch1.astype(jnp.bfloat16)

    weights = (p["wc1"], p["bc1"], p["wc2"], p["bc2"], p["wc3"], p["bc3"],
               p["w1"], p["b1"], p["wm"], p["bm"],
               p["wo_img"], p["wo_meta"], p["bo"])

    def full_block(arr):   # whole-array, VMEM-resident block
        nd = arr.ndim
        return pl.BlockSpec(arr.shape, lambda i, _nd=nd: (0,) * _nd)

    out = pl.pallas_call(
        functools.partial(_fused_forward_kernel, H, W),
        out_shape=jax.ShapeDtypeStruct((N, num_classes), jnp.float32),
        grid=(1,),                       # batch folded into matmul M dimension
        in_specs=[full_block(patch1), full_block(meta)]
                 + [full_block(w) for w in weights],
        out_specs=pl.BlockSpec((N, num_classes), lambda i: (0, 0)),
        scratch_shapes=[
            pltpu.VMEM((N, H // 2 + 2, W // 2 + 2, C1), jnp.bfloat16),  # conv2 pad
            pltpu.VMEM((N, H // 4 + 2, W // 4 + 2, C2), jnp.bfloat16),  # conv3 pad
        ],
        compiler_params=pltpu.CompilerParams(
            dimension_semantics=("arbitrary",)),
    )(patch1, meta, *weights)
    return out


# ----------------------------------------------------------------------------
# Parameters (synthetic, deterministic).  "Model" params are f32 / HWIO.
# ----------------------------------------------------------------------------
def init_params(key):
    ks = jax.random.split(key, 9)
    s = 0.05
    hp, wp = IMAGE_H // 8, IMAGE_W // 8
    fc1_in = C3 * hp * wp
    return {
        "wc1": jax.random.normal(ks[0], (3, 3, CHANNELS, C1), jnp.float32) * s,
        "bc1": jnp.zeros((1, C1), jnp.float32),
        "wc2": jax.random.normal(ks[1], (3, 3, C1, C2), jnp.float32) * s,
        "bc2": jnp.zeros((1, C2), jnp.float32),
        "wc3": jax.random.normal(ks[2], (3, 3, C2, C3), jnp.float32) * s,
        "bc3": jnp.zeros((1, C3), jnp.float32),
        # w1 rows are in NHWC-flatten order (y, x, c).  To load a PyTorch
        # checkpoint (fc1.weight over NCHW flatten (c, y, x)) permute rows:
        # w1[(y*wp + x)*C3 + c, :] = fc1.weight[:, c*hp*wp + y*wp + x]
        "w1": jax.random.normal(ks[3], (fc1_in, 128), jnp.float32) * s,
        "b1": jax.random.normal(ks[4], (1, 128), jnp.float32) * s,
        "wm": jax.random.normal(ks[5], (NUM_META_FEATURES, 64), jnp.float32) * s,
        "bm": jax.random.normal(ks[6], (1, 64), jnp.float32) * s,
        # fc_output weight (128 + 64, num_classes), stored pre-split.
        "wo_img": jax.random.normal(ks[7], (128, NUM_CLASSES), jnp.float32) * s,
        "wo_meta": jax.random.normal(ks[8], (64, NUM_CLASSES), jnp.float32) * s,
        "bo": jnp.zeros((1, NUM_CLASSES), jnp.float32),
    }


def prepare_kernel_params(p):
    """Kernel-side params: conv weights reshaped to im2col rows (9*Cin, Cout)
    and matmul weights cast to bf16 (accumulation stays f32 in the MXU)."""
    def im2col_w(w):
        kh, kw, cin, cout = w.shape
        return w.reshape(kh * kw * cin, cout).astype(jnp.bfloat16)
    kp = dict(p)
    kp["wc1"] = im2col_w(p["wc1"])
    kp["wc2"] = im2col_w(p["wc2"])
    kp["wc3"] = im2col_w(p["wc3"])
    for k in ("w1", "wm", "wo_img", "wo_meta"):
        kp[k] = p[k].astype(jnp.bfloat16)
    return kp


# ----------------------------------------------------------------------------
# Pure-JAX/XLA f32 reference for correctness checking.
# ----------------------------------------------------------------------------
def reference_forward(img_nchw, meta, p):
    x = jnp.transpose(img_nchw, (0, 2, 3, 1))

    def block(x, w, b):
        y = lax.conv_general_dilated(
            x, w, window_strides=(1, 1), padding="SAME",
            dimension_numbers=("NHWC", "HWIO", "NHWC"))
        y = jnp.maximum(y + b.reshape(1, 1, 1, -1), 0.0)
        n, h, w_, c = y.shape
        return y.reshape(n, h // 2, 2, w_ // 2, 2, c).max(axis=(2, 4))

    x = block(x, p["wc1"], p["bc1"])
    x = block(x, p["wc2"], p["bc2"])
    x = block(x, p["wc3"], p["bc3"])
    flat = x.reshape(x.shape[0], -1)          # NHWC flatten, matches w1 rows
    h_img = jnp.maximum(flat @ p["w1"] + p["b1"], 0.0)
    h_meta = jnp.maximum(meta @ p["wm"] + p["bm"], 0.0)
    return h_img @ p["wo_img"] + h_meta @ p["wo_meta"] + p["bo"]


if __name__ == "__main__":
    key = jax.random.PRNGKey(0)
    k_img, k_meta, k_par = jax.random.split(key, 3)
    img = jax.random.normal(k_img, (BATCH, CHANNELS, IMAGE_H, IMAGE_W),
                            jnp.float32)
    meta = jax.random.normal(k_meta, (BATCH, NUM_META_FEATURES), jnp.float32)
    params = init_params(k_par)
    kparams = prepare_kernel_params(params)

    out = jax.jit(multi_input_forward)(img, meta, kparams)
    out = jax.block_until_ready(out)
    assert out.shape == (BATCH, NUM_CLASSES), out.shape

    ref = reference_forward(img, meta, params)
    err = float(jnp.max(jnp.abs(out - ref)))
    assert err < 5e-2, f"max abs error vs reference: {err}"
    print("KERNEL_OK")
</pallas_src>

<mosaic_0001>
module attributes {stable_mosaic.version = 11 : i64} {
  func.func @_fused_forward_kernel(%arg0: i32, %arg1: memref<512x36xbf16, #tpu.memory_space<vmem>>, %arg2: memref<2x8xf32, #tpu.memory_space<vmem>>, %arg3: memref<36x32xbf16, #tpu.memory_space<vmem>>, %arg4: memref<1x32xf32, #tpu.memory_space<vmem>>, %arg5: memref<288x64xbf16, #tpu.memory_space<vmem>>, %arg6: memref<1x64xf32, #tpu.memory_space<vmem>>, %arg7: memref<576x128xbf16, #tpu.memory_space<vmem>>, %arg8: memref<1x128xf32, #tpu.memory_space<vmem>>, %arg9: memref<512x128xbf16, #tpu.memory_space<vmem>>, %arg10: memref<1x128xf32, #tpu.memory_space<vmem>>, %arg11: memref<8x64xbf16, #tpu.memory_space<vmem>>, %arg12: memref<1x64xf32, #tpu.memory_space<vmem>>, %arg13: memref<128x10xbf16, #tpu.memory_space<vmem>>, %arg14: memref<64x10xbf16, #tpu.memory_space<vmem>>, %arg15: memref<1x10xf32, #tpu.memory_space<vmem>>, %arg16: memref<2x10xf32, #tpu.memory_space<vmem>>, %arg17: memref<2x10x10x32xbf16, #tpu.memory_space<vmem>>, %arg18: memref<2x6x6x64xbf16, #tpu.memory_space<vmem>>) attributes {dimension_semantics = [#tpu.dimension_semantics<arbitrary>], iteration_bounds = array<i64: 1>, scalar_prefetch = 0 : i64, scratch_operands = 2 : i64, tpu.core_type = #tpu.core_type<tc>, window_params = [{pipeline_mode = #tpu.pipeline_mode<synchronous>, transform_indices = @transform_0, window_bounds = array<i64: 512, 36>}, {pipeline_mode = #tpu.pipeline_mode<synchronous>, transform_indices = @transform_1, window_bounds = array<i64: 2, 8>}, {pipeline_mode = #tpu.pipeline_mode<synchronous>, transform_indices = @transform_2, window_bounds = array<i64: 36, 32>}, {pipeline_mode = #tpu.pipeline_mode<synchronous>, transform_indices = @transform_3, window_bounds = array<i64: 1, 32>}, {pipeline_mode = #tpu.pipeline_mode<synchronous>, transform_indices = @transform_4, window_bounds = array<i64: 288, 64>}, {pipeline_mode = #tpu.pipeline_mode<synchronous>, transform_indices = @transform_5, window_bounds = array<i64: 1, 64>}, {pipeline_mode = #tpu.pipeline_mode<synchronous>, transform_indices = @transform_6, window_bounds = array<i64: 576, 128>}, {pipeline_mode = #tpu.pipeline_mode<synchronous>, transform_indices = @transform_7, window_bounds = array<i64: 1, 128>}, {pipeline_mode = #tpu.pipeline_mode<synchronous>, transform_indices = @transform_8, window_bounds = array<i64: 512, 128>}, {pipeline_mode = #tpu.pipeline_mode<synchronous>, transform_indices = @transform_9, window_bounds = array<i64: 1, 128>}, {pipeline_mode = #tpu.pipeline_mode<synchronous>, transform_indices = @transform_10, window_bounds = array<i64: 8, 64>}, {pipeline_mode = #tpu.pipeline_mode<synchronous>, transform_indices = @transform_11, window_bounds = array<i64: 1, 64>}, {pipeline_mode = #tpu.pipeline_mode<synchronous>, transform_indices = @transform_12, window_bounds = array<i64: 128, 10>}, {pipeline_mode = #tpu.pipeline_mode<synchronous>, transform_indices = @transform_13, window_bounds = array<i64: 64, 10>}, {pipeline_mode = #tpu.pipeline_mode<synchronous>, transform_indices = @transform_14, window_bounds = array<i64: 1, 10>}, {pipeline_mode = #tpu.pipeline_mode<synchronous>, transform_indices = @transform_15, window_bounds = array<i64: 2, 10>}]} {
    %c0 = arith.constant 0 : index
    %c0_0 = arith.constant 0 : index
    %0 = vector.load %arg1[%c0, %c0_0] : memref<512x36xbf16, #tpu.memory_space<vmem>>, vector<512x36xbf16>
    %c0_1 = arith.constant 0 : index
    %c0_2 = arith.constant 0 : index
    %1 = vector.load %arg3[%c0_1, %c0_2] : memref<36x32xbf16, #tpu.memory_space<vmem>>, vector<36x32xbf16>
    %cst = arith.constant dense<0.000000e+00> : vector<512x32xf32>
    %2 = tpu.matmul %0, %1, %cst {dimension_numbers = #tpu.dot_dimension_numbers<[1], [0], [0], [1], [0, 0, 1, 1], [], []>} : vector<512x36xbf16>, vector<36x32xbf16>, vector<512x32xf32> -> vector<512x32xf32>
    %c0_3 = arith.constant 0 : index
    %c0_4 = arith.constant 0 : index
    %3 = vector.load %arg4[%c0_3, %c0_4] : memref<1x32xf32, #tpu.memory_space<vmem>>, vector<1x32xf32>
    %4 = vector.broadcast %3 : vector<1x32xf32> to vector<512x32xf32>
    %5 = arith.addf %2, %4 : vector<512x32xf32>
    %cst_5 = arith.constant 0.000000e+00 : f32
    %6 = vector.broadcast %cst_5 : f32 to vector<512x32xf32>
    %7 = arith.maximumf %5, %6 : vector<512x32xf32>
    %8 = vector.shape_cast %7 : vector<512x32xf32> to vector<2x8x2x16x32xf32>
    %9 = vector.extract_strided_slice %8 {offsets = [0, 0, 0, 0, 0], sizes = [2, 8, 1, 16, 32], strides = [1, 1, 1, 1, 1]} : vector<2x8x2x16x32xf32> to vector<2x8x1x16x32xf32>
    %10 = vector.shape_cast %9 : vector<2x8x1x16x32xf32> to vector<2x8x16x32xf32>
    %11 = vector.extract_strided_slice %8 {offsets = [0, 0, 1, 0, 0], sizes = [2, 8, 1, 16, 32], strides = [1, 1, 1, 1, 1]} : vector<2x8x2x16x32xf32> to vector<2x8x1x16x32xf32>
    %12 = vector.shape_cast %11 : vector<2x8x1x16x32xf32> to vector<2x8x16x32xf32>
    %13 = arith.maximumf %10, %12 : vector<2x8x16x32xf32>
    %14 = vector.shape_cast %13 : vector<2x8x16x32xf32> to vector<2x8x8x2x32xf32>
    %cst_6 = arith.constant dense<0xFF800000> : vector<2x8x8x32xf32>
    %15 = vector.multi_reduction <maximumf>, %14, %cst_6 [3] : vector<2x8x8x2x32xf32> to vector<2x8x8x32xf32>
    %cst_7 = arith.constant 0.000000e+00 : bf16
    %16 = vector.broadcast %cst_7 : bf16 to vector<2x1x10x32xbf16>
    %c0_8 = arith.constant 0 : index
    %c0_9 = arith.constant 0 : index
    %c0_10 = arith.constant 0 : index
    %c0_11 = arith.constant 0 : index
    %17 = vector.load %arg17[%c0_8, %c0_9, %c0_10, %c0_11] : memref<2x10x10x32xbf16, #tpu.memory_space<vmem>>, vector<2x1x10x32xbf16>
    tpu.vector_store %arg17[%c0_8, %c0_9, %c0_10, %c0_11], %16 {strides = array<i32>} : memref<2x10x10x32xbf16, #tpu.memory_space<vmem>>, vector<2x1x10x32xbf16>,
    %cst_12 = arith.constant 0.000000e+00 : bf16
    %18 = vector.broadcast %cst_12 : bf16 to vector<2x1x10x32xbf16>
    %c0_13 = arith.constant 0 : index
    %c9 = arith.constant 9 : index
    %c0_14 = arith.constant 0 : index
    %c0_15 = arith.constant 0 : index
    %19 = vector.load %arg17[%c0_13, %c9, %c0_14, %c0_15] : memref<2x10x10x32xbf16, #tpu.memory_space<vmem>>, vector<2x1x10x32xbf16>
    tpu.vector_store %arg17[%c0_13, %c9, %c0_14, %c0_15], %18 {strides = array<i32>} : memref<2x10x10x32xbf16, #tpu.memory_space<vmem>>, vector<2x1x10x32xbf16>,
    %cst_16 = arith.constant 0.000000e+00 : bf16
    %20 = vector.broadcast %cst_16 : bf16 to vector<2x10x1x32xbf16>
    %c0_17 = arith.constant 0 : index
    %c0_18 = arith.constant 0 : index
    %c0_19 = arith.constant 0 : index
    %c0_20 = arith.constant 0 : index
    %21 = vector.load %arg17[%c0_17, %c0_18, %c0_19, %c0_20] : memref<2x10x10x32xbf16, #tpu.memory_space<vmem>>, vector<2x10x1x32xbf16>
    tpu.vector_store %arg17[%c0_17, %c0_18, %c0_19, %c0_20], %20 {strides = array<i32>} : memref<2x10x10x32xbf16, #tpu.memory_space<vmem>>, vector<2x10x1x32xbf16>,
    %cst_21 = arith.constant 0.000000e+00 : bf16
    %22 = vector.broadcast %cst_21 : bf16 to vector<2x10x1x32xbf16>
    %c0_22 = arith.constant 0 : index
    %c0_23 = arith.constant 0 : index
    %c9_24 = arith.constant 9 : index
    %c0_25 = arith.constant 0 : index
    %23 = vector.load %arg17[%c0_22, %c0_23, %c9_24, %c0_25] : memref<2x10x10x32xbf16, #tpu.memory_space<vmem>>, vector<2x10x1x32xbf16>
    tpu.vector_store %arg17[%c0_22, %c0_23, %c9_24, %c0_25], %22 {strides = array<i32>} : memref<2x10x10x32xbf16, #tpu.memory_space<vmem>>, vector<2x10x1x32xbf16>,
    %24 = arith.truncf %15 : vector<2x8x8x32xf32> to vector<2x8x8x32xbf16>
    %c0_26 = arith.constant 0 : index
    %c1 = arith.constant 1 : index
    %c1_27 = arith.constant 1 : index
    %c0_28 = arith.constant 0 : index
    %25 = vector.load %arg17[%c0_26, %c1, %c1_27, %c0_28] : memref<2x10x10x32xbf16, #tpu.memory_space<vmem>>, vector<2x8x8x32xbf16>
    tpu.vector_store %arg17[%c0_26, %c1, %c1_27, %c0_28], %24 {strides = array<i32>} : memref<2x10x10x32xbf16, #tpu.memory_space<vmem>>, vector<2x8x8x32xbf16>,
    %c0_29 = arith.constant 0 : index
    %c0_30 = arith.constant 0 : index
    %c0_31 = arith.constant 0 : index
    %c0_32 = arith.constant 0 : index
    %26 = vector.load %arg17[%c0_29, %c0_30, %c0_31, %c0_32] : memref<2x10x10x32xbf16, #tpu.memory_space<vmem>>, vector<2x8x8x32xbf16>
    %27 = vector.shape_cast %26 : vector<2x8x8x32xbf16> to vector<128x32xbf16>
    %c0_33 = arith.constant 0 : index
    %c0_34 = arith.constant 0 : index
    %c1_35 = arith.constant 1 : index
    %c0_36 = arith.constant 0 : index
    %28 = vector.load %arg17[%c0_33, %c0_34, %c1_35, %c0_36] : memref<2x10x10x32xbf16, #tpu.memory_space<vmem>>, vector<2x8x8x32xbf16>
    %29 = vector.shape_cast %28 : vector<2x8x8x32xbf16> to vector<128x32xbf16>
    %c0_37 = arith.constant 0 : index
    %c0_38 = arith.constant 0 : index
    %c2 = arith.constant 2 : index
    %c0_39 = arith.constant 0 : index
    %30 = vector.load %arg17[%c0_37, %c0_38, %c2, %c0_39] : memref<2x10x10x32xbf16, #tpu.memory_space<vmem>>, vector<2x8x8x32xbf16>
    %31 = vector.shape_cast %30 : vector<2x8x8x32xbf16> to vector<128x32xbf16>
    %c0_40 = arith.constant 0 : index
    %c1_41 = arith.constant 1 : index
    %c0_42 = arith.constant 0 : index
    %c0_43 = arith.constant 0 : index
    %32 = vector.load %arg17[%c0_40, %c1_41, %c0_42, %c0_43] : memref<2x10x10x32xbf16, #tpu.memory_space<vmem>>, vector<2x8x8x32xbf16>
    %33 = vector.shape_cast %32 : vector<2x8x8x32xbf16> to vector<128x32xbf16>
    %c0_44 = arith.constant 0 : index
    %c1_45 = arith.constant 1 : index
    %c1_46 = arith.constant 1 : index
    %c0_47 = arith.constant 0 : index
    %34 = vector.load %arg17[%c0_44, %c1_45, %c1_46, %c0_47] : memref<2x10x10x32xbf16, #tpu.memory_space<vmem>>, vector<2x8x8x32xbf16>
    %35 = vector.shape_cast %34 : vector<2x8x8x32xbf16> to vector<128x32xbf16>
    %c0_48 = arith.constant 0 : index
    %c1_49 = arith.constant 1 : index
    %c2_50 = arith.constant 2 : index
    %c0_51 = arith.constant 0 : index
    %36 = vector.load %arg17[%c0_48, %c1_49, %c2_50, %c0_51] : memref<2x10x10x32xbf16, #tpu.memory_space<vmem>>, vector<2x8x8x32xbf16>
    %37 = vector.shape_cast %36 : vector<2x8x8x32xbf16> to vector<128x32xbf16>
    %c0_52 = arith.constant 0 : index
    %c2_53 = arith.constant 2 : index
    %c0_54 = arith.constant 0 : index
    %c0_55 = arith.constant 0 : index
    %38 = vector.load %arg17[%c0_52, %c2_53, %c0_54, %c0_55] : memref<2x10x10x32xbf16, #tpu.memory_space<vmem>>, vector<2x8x8x32xbf16>
    %39 = vector.shape_cast %38 : vector<2x8x8x32xbf16> to vector<128x32xbf16>
    %c0_56 = arith.constant 0 : index
    %c2_57 = arith.constant 2 : index
    %c1_58 = arith.constant 1 : index
    %c0_59 = arith.constant 0 : index
    %40 = vector.load %arg17[%c0_56, %c2_57, %c1_58, %c0_59] : memref<2x10x10x32xbf16, #tpu.memory_space<vmem>>, vector<2x8x8x32xbf16>
    %41 = vector.shape_cast %40 : vector<2x8x8x32xbf16> to vector<128x32xbf16>
    %c0_60 = arith.constant 0 : index
    %c2_61 = arith.constant 2 : index
    %c2_62 = arith.constant 2 : index
    %c0_63 = arith.constant 0 : index
    %42 = vector.load %arg17[%c0_60, %c2_61, %c2_62, %c0_63] : memref<2x10x10x32xbf16, #tpu.memory_space<vmem>>, vector<2x8x8x32xbf16>
    %43 = vector.shape_cast %42 : vector<2x8x8x32xbf16> to vector<128x32xbf16>
    %44 = tpu.concatenate %27, %29, %31, %33, %35, %37, %39, %41, %43 in 1 : vector<128x32xbf16>, vector<128x32xbf16>, vector<128x32xbf16>, vector<128x32xbf16>, vector<128x32xbf16>, vector<128x32xbf16>, vector<128x32xbf16>, vector<128x32xbf16>, vector<128x32xbf16> -> vector<128x288xbf16>
    %c0_64 = arith.constant 0 : index
    %c0_65 = arith.constant 0 : index
    %45 = vector.load %arg5[%c0_64, %c0_65] : memref<288x64xbf16, #tpu.memory_space<vmem>>, vector<288x64xbf16>
    %cst_66 = arith.constant dense<0.000000e+00> : vector<128x64xf32>
    %46 = tpu.matmul %44, %45, %cst_66 {dimension_numbers = #tpu.dot_dimension_numbers<[1], [0], [0], [1], [0, 0, 1, 1], [], []>} : vector<128x288xbf16>, vector<288x64xbf16>, vector<128x64xf32> -> vector<128x64xf32>
    %c0_67 = arith.constant 0 : index
    %c0_68 = arith.constant 0 : index
    %47 = vector.load %arg6[%c0_67, %c0_68] : memref<1x64xf32, #tpu.memory_space<vmem>>, vector<1x64xf32>
    %48 = vector.broadcast %47 : vector<1x64xf32> to vector<128x64xf32>
    %49 = arith.addf %46, %48 : vector<128x64xf32>
    %cst_69 = arith.constant 0.000000e+00 : f32
    %50 = vector.broadcast %cst_69 : f32 to vector<128x64xf32>
    %51 = arith.maximumf %49, %50 : vector<128x64xf32>
    %52 = vector.shape_cast %51 : vector<128x64xf32> to vector<2x4x2x8x64xf32>
    %53 = vector.extract_strided_slice %52 {offsets = [0, 0, 0, 0, 0], sizes = [2, 4, 1, 8, 64], strides = [1, 1, 1, 1, 1]} : vector<2x4x2x8x64xf32> to vector<2x4x1x8x64xf32>
    %54 = vector.shape_cast %53 : vector<2x4x1x8x64xf32> to vector<2x4x8x64xf32>
    %55 = vector.extract_strided_slice %52 {offsets = [0, 0, 1, 0, 0], sizes = [2, 4, 1, 8, 64], strides = [1, 1, 1, 1, 1]} : vector<2x4x2x8x64xf32> to vector<2x4x1x8x64xf32>
    %56 = vector.shape_cast %55 : vector<2x4x1x8x64xf32> to vector<2x4x8x64xf32>
    %57 = arith.maximumf %54, %56 : vector<2x4x8x64xf32>
    %58 = vector.shape_cast %57 : vector<2x4x8x64xf32> to vector<2x4x4x2x64xf32>
    %cst_70 = arith.constant dense<0xFF800000> : vector<2x4x4x64xf32>
    %59 = vector.multi_reduction <maximumf>, %58, %cst_70 [3] : vector<2x4x4x2x64xf32> to vector<2x4x4x64xf32>
    %cst_71 = arith.constant 0.000000e+00 : bf16
    %60 = vector.broadcast %cst_71 : bf16 to vector<2x1x6x64xbf16>
    %c0_72 = arith.constant 0 : index
    %c0_73 = arith.constant 0 : index
    %c0_74 = arith.constant 0 : index
    %c0_75 = arith.constant 0 : index
    %61 = vector.load %arg18[%c0_72, %c0_73, %c0_74, %c0_75] : memref<2x6x6x64xbf16, #tpu.memory_space<vmem>>, vector<2x1x6x64xbf16>
    tpu.vector_store %arg18[%c0_72, %c0_73, %c0_74, %c0_75], %60 {strides = array<i32>} : memref<2x6x6x64xbf16, #tpu.memory_space<vmem>>, vector<2x1x6x64xbf16>,
    %cst_76 = arith.constant 0.000000e+00 : bf16
    %62 = vector.broadcast %cst_76 : bf16 to vector<2x1x6x64xbf16>
    %c0_77 = arith.constant 0 : index
    %c5 = arith.constant 5 : index
    %c0_78 = arith.constant 0 : index
    %c0_79 = arith.constant 0 : index
    %63 = vector.load %arg18[%c0_77, %c5, %c0_78, %c0_79] : memref<2x6x6x64xbf16, #tpu.memory_space<vmem>>, vector<2x1x6x64xbf16>
    tpu.vector_store %arg18[%c0_77, %c5, %c0_78, %c0_79], %62 {strides = array<i32>} : memref<2x6x6x64xbf16, #tpu.memory_space<vmem>>, vector<2x1x6x64xbf16>,
    %cst_80 = arith.constant 0.000000e+00 : bf16
    %64 = vector.broadcast %cst_80 : bf16 to vector<2x6x1x64xbf16>
    %c0_81 = arith.constant 0 : index
    %c0_82 = arith.constant 0 : index
    %c0_83 = arith.constant 0 : index
    %c0_84 = arith.constant 0 : index
    %65 = vector.load %arg18[%c0_81, %c0_82, %c0_83, %c0_84] : memref<2x6x6x64xbf16, #tpu.memory_space<vmem>>, vector<2x6x1x64xbf16>
    tpu.vector_store %arg18[%c0_81, %c0_82, %c0_83, %c0_84], %64 {strides = array<i32>} : memref<2x6x6x64xbf16, #tpu.memory_space<vmem>>, vector<2x6x1x64xbf16>,
    %cst_85 = arith.constant 0.000000e+00 : bf16
    %66 = vector.broadcast %cst_85 : bf16 to vector<2x6x1x64xbf16>
    %c0_86 = arith.constant 0 : index
    %c0_87 = arith.constant 0 : index
    %c5_88 = arith.constant 5 : index
    %c0_89 = arith.constant 0 : index
    %67 = vector.load %arg18[%c0_86, %c0_87, %c5_88, %c0_89] : memref<2x6x6x64xbf16, #tpu.memory_space<vmem>>, vector<2x6x1x64xbf16>
    tpu.vector_store %arg18[%c0_86, %c0_87, %c5_88, %c0_89], %66 {strides = array<i32>} : memref<2x6x6x64xbf16, #tpu.memory_space<vmem>>, vector<2x6x1x64xbf16>,
    %68 = arith.truncf %59 : vector<2x4x4x64xf32> to vector<2x4x4x64xbf16>
    %c0_90 = arith.constant 0 : index
    %c1_91 = arith.constant 1 : index
    %c1_92 = arith.constant 1 : index
    %c0_93 = arith.constant 0 : index
    %69 = vector.load %arg18[%c0_90, %c1_91, %c1_92, %c0_93] : memref<2x6x6x64xbf16, #tpu.memory_space<vmem>>, vector<2x4x4x64xbf16>
    tpu.vector_store %arg18[%c0_90, %c1_91, %c1_92, %c0_93], %68 {strides = array<i32>} : memref<2x6x6x64xbf16, #tpu.memory_space<vmem>>, vector<2x4x4x64xbf16>,
    %c0_94 = arith.constant 0 : index
    %c0_95 = arith.constant 0 : index
    %c0_96 = arith.constant 0 : index
    %c0_97 = arith.constant 0 : index
    %70 = vector.load %arg18[%c0_94, %c0_95, %c0_96, %c0_97] : memref<2x6x6x64xbf16, #tpu.memory_space<vmem>>, vector<2x4x4x64xbf16>
    %71 = vector.shape_cast %70 : vector<2x4x4x64xbf16> to vector<32x64xbf16>
    %c0_98 = arith.constant 0 : index
    %c0_99 = arith.constant 0 : index
    %c1_100 = arith.constant 1 : index
    %c0_101 = arith.constant 0 : index
    %72 = vector.load %arg18[%c0_98, %c0_99, %c1_100, %c0_101] : memref<2x6x6x64xbf16, #tpu.memory_space<vmem>>, vector<2x4x4x64xbf16>
    %73 = vector.shape_cast %72 : vector<2x4x4x64xbf16> to vector<32x64xbf16>
    %c0_102 = arith.constant 0 : index
    %c0_103 = arith.constant 0 : index
    %c2_104 = arith.constant 2 : index
    %c0_105 = arith.constant 0 : index
    %74 = vector.load %arg18[%c0_102, %c0_103, %c2_104, %c0_105] : memref<2x6x6x64xbf16, #tpu.memory_space<vmem>>, vector<2x4x4x64xbf16>
    %75 = vector.shape_cast %74 : vector<2x4x4x64xbf16> to vector<32x64xbf16>
    %c0_106 = arith.constant 0 : index
    %c1_107 = arith.constant 1 : index
    %c0_108 = arith.constant 0 : index
    %c0_109 = arith.constant 0 : index
    %76 = vector.load %arg18[%c0_106, %c1_107, %c0_108, %c0_109] : memref<2x6x6x64xbf16, #tpu.memory_space<vmem>>, vector<2x4x4x64xbf16>
    %77 = vector.shape_cast %76 : vector<2x4x4x64xbf16> to vector<32x64xbf16>
    %c0_110 = arith.constant 0 : index
    %c1_111 = arith.constant 1 : index
    %c1_112 = arith.constant 1 : index
    %c0_113 = arith.constant 0 : index
    %78 = vector.load %arg18[%c0_110, %c1_111, %c1_112, %c0_113] : memref<2x6x6x64xbf16, #tpu.memory_space<vmem>>, vector<2x4x4x64xbf16>
    %79 = vector.shape_cast %78 : vector<2x4x4x64xbf16> to vector<32x64xbf16>
    %c0_114 = arith.constant 0 : index
    %c1_115 = arith.constant 1 : index
    %c2_116 = arith.constant 2 : index
    %c0_117 = arith.constant 0 : index
    %80 = vector.load %arg18[%c0_114, %c1_115, %c2_116, %c0_117] : memref<2x6x6x64xbf16, #tpu.memory_space<vmem>>, vector<2x4x4x64xbf16>
    %81 = vector.shape_cast %80 : vector<2x4x4x64xbf16> to vector<32x64xbf16>
    %c0_118 = arith.constant 0 : index
    %c2_119 = arith.constant 2 : index
    %c0_120 = arith.constant 0 : index
    %c0_121 = arith.constant 0 : index
    %82 = vector.load %arg18[%c0_118, %c2_119, %c0_120, %c0_121] : memref<2x6x6x64xbf16, #tpu.memory_space<vmem>>, vector<2x4x4x64xbf16>
    %83 = vector.shape_cast %82 : vector<2x4x4x64xbf16> to vector<32x64xbf16>
    %c0_122 = arith.constant 0 : index
    %c2_123 = arith.constant 2 : index
    %c1_124 = arith.constant 1 : index
    %c0_125 = arith.constant 0 : index
    %84 = vector.load %arg18[%c0_122, %c2_123, %c1_124, %c0_125] : memref<2x6x6x64xbf16, #tpu.memory_space<vmem>>, vector<2x4x4x64xbf16>
    %85 = vector.shape_cast %84 : vector<2x4x4x64xbf16> to vector<32x64xbf16>
    %c0_126 = arith.constant 0 : index
    %c2_127 = arith.constant 2 : index
    %c2_128 = arith.constant 2 : index
    %c0_129 = arith.constant 0 : index
    %86 = vector.load %arg18[%c0_126, %c2_127, %c2_128, %c0_129] : memref<2x6x6x64xbf16, #tpu.memory_space<vmem>>, vector<2x4x4x64xbf16>
    %87 = vector.shape_cast %86 : vector<2x4x4x64xbf16> to vector<32x64xbf16>
    %88 = tpu.concatenate %71, %73, %75, %77, %79, %81, %83, %85, %87 in 1 : vector<32x64xbf16>, vector<32x64xbf16>, vector<32x64xbf16>, vector<32x64xbf16>, vector<32x64xbf16>, vector<32x64xbf16>, vector<32x64xbf16>, vector<32x64xbf16>, vector<32x64xbf16> -> vector<32x576xbf16>
    %c0_130 = arith.constant 0 : index
    %c0_131 = arith.constant 0 : index
    %89 = vector.load %arg7[%c0_130, %c0_131] : memref<576x128xbf16, #tpu.memory_space<vmem>>, vector<576x128xbf16>
    %cst_132 = arith.constant dense<0.000000e+00> : vector<32x128xf32>
    %90 = tpu.matmul %88, %89, %cst_132 {dimension_numbers = #tpu.dot_dimension_numbers<[1], [0], [0], [1], [0, 0, 1, 1], [], []>} : vector<32x576xbf16>, vector<576x128xbf16>, vector<32x128xf32> -> vector<32x128xf32>
    %c0_133 = arith.constant 0 : index
    %c0_134 = arith.constant 0 : index
    %91 = vector.load %arg8[%c0_133, %c0_134] : memref<1x128xf32, #tpu.memory_space<vmem>>, vector<1x128xf32>
    %92 = vector.broadcast %91 : vector<1x128xf32> to vector<32x128xf32>
    %93 = arith.addf %90, %92 : vector<32x128xf32>
    %cst_135 = arith.constant 0.000000e+00 : f32
    %94 = vector.broadcast %cst_135 : f32 to vector<32x128xf32>
    %95 = arith.maximumf %93, %94 : vector<32x128xf32>
    %96 = vector.shape_cast %95 : vector<32x128xf32> to vector<2x2x2x4x128xf32>
    %97 = vector.extract_strided_slice %96 {offsets = [0, 0, 0, 0, 0], sizes = [2, 2, 1, 4, 128], strides = [1, 1, 1, 1, 1]} : vector<2x2x2x4x128xf32> to vector<2x2x1x4x128xf32>
    %98 = vector.shape_cast %97 : vector<2x2x1x4x128xf32> to vector<2x2x4x128xf32>
    %99 = vector.extract_strided_slice %96 {offsets = [0, 0, 1, 0, 0], sizes = [2, 2, 1, 4, 128], strides = [1, 1, 1, 1, 1]} : vector<2x2x2x4x128xf32> to vector<2x2x1x4x128xf32>
    %100 = vector.shape_cast %99 : vector<2x2x1x4x128xf32> to vector<2x2x4x128xf32>
    %101 = arith.maximumf %98, %100 : vector<2x2x4x128xf32>
    %102 = vector.shape_cast %101 : vector<2x2x4x128xf32> to vector<2x2x2x2x128xf32>
    %cst_136 = arith.constant dense<0xFF800000> : vector<2x2x2x128xf32>
    %103 = vector.multi_reduction <maximumf>, %102, %cst_136 [3] : vector<2x2x2x2x128xf32> to vector<2x2x2x128xf32>
    %104 = vector.extract_strided_slice %103 {offsets = [0, 0, 0, 0], sizes = [2, 1, 1, 128], strides = [1, 1, 1, 1]} : vector<2x2x2x128xf32> to vector<2x1x1x128xf32>
    %105 = vector.shape_cast %104 : vector<2x1x1x128xf32> to vector<2x128xf32>
    %106 = vector.extract_strided_slice %103 {offsets = [0, 0, 1, 0], sizes = [2, 1, 1, 128], strides = [1, 1, 1, 1]} : vector<2x2x2x128xf32> to vector<2x1x1x128xf32>
    %107 = vector.shape_cast %106 : vector<2x1x1x128xf32> to vector<2x128xf32>
    %108 = vector.extract_strided_slice %103 {offsets = [0, 1, 0, 0], sizes = [2, 1, 1, 128], strides = [1, 1, 1, 1]} : vector<2x2x2x128xf32> to vector<2x1x1x128xf32>
    %109 = vector.shape_cast %108 : vector<2x1x1x128xf32> to vector<2x128xf32>
    %110 = vector.extract_strided_slice %103 {offsets = [0, 1, 1, 0], sizes = [2, 1, 1, 128], strides = [1, 1, 1, 1]} : vector<2x2x2x128xf32> to vector<2x1x1x128xf32>
    %111 = vector.shape_cast %110 : vector<2x1x1x128xf32> to vector<2x128xf32>
    %112 = tpu.concatenate %105, %107, %109, %111 in 1 : vector<2x128xf32>, vector<2x128xf32>, vector<2x128xf32>, vector<2x128xf32> -> vector<2x512xf32>
    %113 = arith.truncf %112 : vector<2x512xf32> to vector<2x512xbf16>
    %c0_137 = arith.constant 0 : index
    %c0_138 = arith.constant 0 : index
    %114 = vector.load %arg9[%c0_137, %c0_138] : memref<512x128xbf16, #tpu.memory_space<vmem>>, vector<512x128xbf16>
    %cst_139 = arith.constant dense<0.000000e+00> : vector<2x128xf32>
    %115 = tpu.matmul %113, %114, %cst_139 {dimension_numbers = #tpu.dot_dimension_numbers<[1], [0], [0], [1], [0, 0, 1, 1], [], []>} : vector<2x512xbf16>, vector<512x128xbf16>, vector<2x128xf32> -> vector<2x128xf32>
    %c0_140 = arith.constant 0 : index
    %c0_141 = arith.constant 0 : index
    %116 = vector.load %arg10[%c0_140, %c0_141] : memref<1x128xf32, #tpu.memory_space<vmem>>, vector<1x128xf32>
    %117 = vector.broadcast %116 : vector<1x128xf32> to vector<2x128xf32>
    %118 = arith.addf %115, %117 : vector<2x128xf32>
    %cst_142 = arith.constant 0.000000e+00 : f32
    %119 = vector.broadcast %cst_142 : f32 to vector<2x128xf32>
    %120 = arith.maximumf %118, %119 : vector<2x128xf32>
    %c0_143 = arith.constant 0 : index
    %c0_144 = arith.constant 0 : index
    %121 = vector.load %arg2[%c0_143, %c0_144] : memref<2x8xf32, #tpu.memory_space<vmem>>, vector<2x8xf32>
    %122 = arith.truncf %121 : vector<2x8xf32> to vector<2x8xbf16>
    %c0_145 = arith.constant 0 : index
    %c0_146 = arith.constant 0 : index
    %123 = vector.load %arg11[%c0_145, %c0_146] : memref<8x64xbf16, #tpu.memory_space<vmem>>, vector<8x64xbf16>
    %cst_147 = arith.constant dense<0.000000e+00> : vector<2x64xf32>
    %124 = tpu.matmul %122, %123, %cst_147 {dimension_numbers = #tpu.dot_dimension_numbers<[1], [0], [0], [1], [0, 0, 1, 1], [], []>} : vector<2x8xbf16>, vector<8x64xbf16>, vector<2x64xf32> -> vector<2x64xf32>
    %c0_148 = arith.constant 0 : index
    %c0_149 = arith.constant 0 : index
    %125 = vector.load %arg12[%c0_148, %c0_149] : memref<1x64xf32, #tpu.memory_space<vmem>>, vector<1x64xf32>
    %126 = vector.broadcast %125 : vector<1x64xf32> to vector<2x64xf32>
    %127 = arith.addf %124, %126 : vector<2x64xf32>
    %cst_150 = arith.constant 0.000000e+00 : f32
    %128 = vector.broadcast %cst_150 : f32 to vector<2x64xf32>
    %129 = arith.maximumf %127, %128 : vector<2x64xf32>
    %130 = arith.truncf %120 : vector<2x128xf32> to vector<2x128xbf16>
    %c0_151 = arith.constant 0 : index
    %c0_152 = arith.constant 0 : index
    %131 = vector.load %arg13[%c0_151, %c0_152] : memref<128x10xbf16, #tpu.memory_space<vmem>>, vector<128x10xbf16>
    %cst_153 = arith.constant dense<0.000000e+00> : vector<2x10xf32>
    %132 = tpu.matmul %130, %131, %cst_153 {dimension_numbers = #tpu.dot_dimension_numbers<[1], [0], [0], [1], [0, 0, 1, 1], [], []>} : vector<2x128xbf16>, vector<128x10xbf16>, vector<2x10xf32> -> vector<2x10xf32>
    %133 = arith.truncf %129 : vector<2x64xf32> to vector<2x64xbf16>
    %c0_154 = arith.constant 0 : index
    %c0_155 = arith.constant 0 : index
    %134 = vector.load %arg14[%c0_154, %c0_155] : memref<64x10xbf16, #tpu.memory_space<vmem>>, vector<64x10xbf16>
    %cst_156 = arith.constant dense<0.000000e+00> : vector<2x10xf32>
    %135 = tpu.matmul %133, %134, %cst_156 {dimension_numbers = #tpu.dot_dimension_numbers<[1], [0], [0], [1], [0, 0, 1, 1], [], []>} : vector<2x64xbf16>, vector<64x10xbf16>, vector<2x10xf32> -> vector<2x10xf32>
    %136 = arith.addf %132, %135 : vector<2x10xf32>
    %c0_157 = arith.constant 0 : index
    %c0_158 = arith.constant 0 : index
    %137 = vector.load %arg15[%c0_157, %c0_158] : memref<1x10xf32, #tpu.memory_space<vmem>>, vector<1x10xf32>
    %138 = vector.broadcast %137 : vector<1x10xf32> to vector<2x10xf32>
    %139 = arith.addf %136, %138 : vector<2x10xf32>
    %c0_159 = arith.constant 0 : index
    %c0_160 = arith.constant 0 : index
    %140 = vector.load %arg16[%c0_159, %c0_160] : memref<2x10xf32, #tpu.memory_space<vmem>>, vector<2x10xf32>
    tpu.vector_store %arg16[%c0_159, %c0_160], %139 {strides = array<i32>} : memref<2x10xf32, #tpu.memory_space<vmem>>, vector<2x10xf32>,
    return
  }
  func.func @transform_0(%arg0: i32) -> (i32, i32) {
    %c0_i32 = arith.constant 0 : i32
    %c0_i32_0 = arith.constant 0 : i32
    %c0_i32_1 = arith.constant 0 : i32
    return %c0_i32, %c0_i32_0 : i32, i32
  }
  func.func @transform_1(%arg0: i32) -> (i32, i32) {
    %c0_i32 = arith.constant 0 : i32
    %c0_i32_0 = arith.constant 0 : i32
    %c0_i32_1 = arith.constant 0 : i32
    return %c0_i32, %c0_i32_0 : i32, i32
  }
  func.func @transform_2(%arg0: i32) -> (i32, i32) {
    %c0_i32 = arith.constant 0 : i32
    %c0_i32_0 = arith.constant 0 : i32
    %c0_i32_1 = arith.constant 0 : i32
    return %c0_i32, %c0_i32_0 : i32, i32
  }
  func.func @transform_3(%arg0: i32) -> (i32, i32) {
    %c0_i32 = arith.constant 0 : i32
    %c0_i32_0 = arith.constant 0 : i32
    %c0_i32_1 = arith.constant 0 : i32
    return %c0_i32, %c0_i32_0 : i32, i32
  }
  func.func @transform_4(%arg0: i32) -> (i32, i32) {
    %c0_i32 = arith.constant 0 : i32
    %c0_i32_0 = arith.constant 0 : i32
    %c0_i32_1 = arith.constant 0 : i32
    return %c0_i32, %c0_i32_0 : i32, i32
  }
  func.func @transform_5(%arg0: i32) -> (i32, i32) {
    %c0_i32 = arith.constant 0 : i32
    %c0_i32_0 = arith.constant 0 : i32
    %c0_i32_1 = arith.constant 0 : i32
    return %c0_i32, %c0_i32_0 : i32, i32
  }
  func.func @transform_6(%arg0: i32) -> (i32, i32) {
    %c0_i32 = arith.constant 0 : i32
    %c0_i32_0 = arith.constant 0 : i32
    %c0_i32_1 = arith.constant 0 : i32
    return %c0_i32, %c0_i32_0 : i32, i32
  }
  func.func @transform_7(%arg0: i32) -> (i32, i32) {
    %c0_i32 = arith.constant 0 : i32
    %c0_i32_0 = arith.constant 0 : i32
    %c0_i32_1 = arith.constant 0 : i32
    return %c0_i32, %c0_i32_0 : i32, i32
  }
  func.func @transform_8(%arg0: i32) -> (i32, i32) {
    %c0_i32 = arith.constant 0 : i32
    %c0_i32_0 = arith.constant 0 : i32
    %c0_i32_1 = arith.constant 0 : i32
    return %c0_i32, %c0_i32_0 : i32, i32
  }
  func.func @transform_9(%arg0: i32) -> (i32, i32) {
    %c0_i32 = arith.constant 0 : i32
    %c0_i32_0 = arith.constant 0 : i32
    %c0_i32_1 = arith.constant 0 : i32
    return %c0_i32, %c0_i32_0 : i32, i32
  }
  func.func @transform_10(%arg0: i32) -> (i32, i32) {
    %c0_i32 = arith.constant 0 : i32
    %c0_i32_0 = arith.constant 0 : i32
    %c0_i32_1 = arith.constant 0 : i32
    return %c0_i32, %c0_i32_0 : i32, i32
  }
  func.func @transform_11(%arg0: i32) -> (i32, i32) {
    %c0_i32 = arith.constant 0 : i32
    %c0_i32_0 = arith.constant 0 : i32
    %c0_i32_1 = arith.constant 0 : i32
    return %c0_i32, %c0_i32_0 : i32, i32
  }
  func.func @transform_12(%arg0: i32) -> (i32, i32) {
    %c0_i32 = arith.constant 0 : i32
    %c0_i32_0 = arith.constant 0 : i32
    %c0_i32_1 = arith.constant 0 : i32
    return %c0_i32, %c0_i32_0 : i32, i32
  }
  func.func @transform_13(%arg0: i32) -> (i32, i32) {
    %c0_i32 = arith.constant 0 : i32
    %c0_i32_0 = arith.constant 0 : i32
    %c0_i32_1 = arith.constant 0 : i32
    return %c0_i32, %c0_i32_0 : i32, i32
  }
  func.func @transform_14(%arg0: i32) -> (i32, i32) {
    %c0_i32 = arith.constant 0 : i32
    %c0_i32_0 = arith.constant 0 : i32
    %c0_i32_1 = arith.constant 0 : i32
    return %c0_i32, %c0_i32_0 : i32, i32
  }
  func.func @transform_15(%arg0: i32) -> (i32, i32) {
    %c0_i32 = arith.constant 0 : i32
    %c0_i32_0 = arith.constant 0 : i32
    %c0_i32_1 = arith.constant 0 : i32
    return %c0_i32, %c0_i32_0 : i32, i32
  }
}

</mosaic_0001>

<llo_original>
// kernel: multi_input_forward.1
$region0: #{multi_input_forward.1}
  #allocation0 [shape = 'u32[]', space=smem, size = 0x4, offset = 0x4, fixed_abs, tag = 'smem constant byte address 0x4 - core index']
  #allocation1 [shape = 'u32[72,128]{1,0:T(1,128)}', space=vmem, size = 0x9000, scoped, tag = 'internal scratch']
  #allocation2 [shape = 'bf16[2,10,10,32]{3,2,1,0:T(8,128)(2,1)}', space=vmem, size = 0x14000, scoped, tag = 'scratch operand']
  #allocation3 [shape = 'bf16[2,6,6,64]{3,2,1,0:T(8,128)(2,1)}', space=vmem, size = 0x6000, scoped, tag = 'scratch operand']
  %s0 = inlined_call_operand.vmem [shape: bf16[512,36], index: 0, kind: input, shape index: {}]
  %s1 = inlined_call_operand.vmem [shape: f32[2,8], index: 1, kind: input, shape index: {}]
  %s2 = inlined_call_operand.vmem [shape: bf16[36,32], index: 2, kind: input, shape index: {}]
  %s3 = inlined_call_operand.vmem [shape: f32[1,32], index: 3, kind: input, shape index: {}]
  %s4 = inlined_call_operand.vmem [shape: bf16[288,64], index: 4, kind: input, shape index: {}]
  %s5 = inlined_call_operand.vmem [shape: f32[1,64], index: 5, kind: input, shape index: {}]
  %s6 = inlined_call_operand.vmem [shape: bf16[576,128], index: 6, kind: input, shape index: {}]
  %s7 = inlined_call_operand.vmem [shape: f32[1,128], index: 7, kind: input, shape index: {}]
  %s8 = inlined_call_operand.vmem [shape: bf16[512,128], index: 8, kind: input, shape index: {}]
  %s9 = inlined_call_operand.vmem [shape: f32[1,128], index: 9, kind: input, shape index: {}]
  %s10 = inlined_call_operand.vmem [shape: bf16[8,64], index: 10, kind: input, shape index: {}]
  %s11 = inlined_call_operand.vmem [shape: f32[1,64], index: 11, kind: input, shape index: {}]
  %s12 = inlined_call_operand.vmem [shape: bf16[128,10], index: 12, kind: input, shape index: {}]
  %s13 = inlined_call_operand.vmem [shape: bf16[64,10], index: 13, kind: input, shape index: {}]
  %s14 = inlined_call_operand.vmem [shape: f32[1,10], index: 14, kind: input, shape index: {}]
  %s15 = inlined_call_operand.hbm [shape: f32[2,10], index: 15, kind: output, shape index: {}]
  %s16 = sld [smem:[#allocation0]]
  $region70: #{multi_input_forward.1} parent=0
    _
  %s18 = ssub.s32 1, %s16
  %s19 = scalar_select 0, %s18, %s16
  $region1: #{multi_input_forward.1} parent=0
    #allocation4 [shape = 'u8[1024]{0}', space=vmem, size = 0x400, scoped, tag = 'output window, operand 0, single buffered']
    #allocation5 [shape = 's32[1]{0}', space=sflag, size = 0x4, scoped, tag = 'scoped memory for multi_input_forward.1']
    %20 = vsyncpa [#allocation5], 0
    // Predicated region
    $region2: #{multi_input_forward.1} parent=1 // pred_check
      _
    $region3: #{multi_input_forward.1} parent=1 // pred_check_branch
      %22 = sbr.rel (0) target = $region5
    $region4: #{multi_input_forward.1} parent=1 // pred_region
      _
    $region5: #{multi_input_forward.1} parent=1 // pred_fallthru
      _
    // Predicated region
    $region6: #{multi_input_forward.1} parent=1 // pred_check
      _
    $region7: #{multi_input_forward.1} parent=1 // pred_check_branch
      %24 = sbr.rel (0) target = $region9
    $region8: #{multi_input_forward.1} parent=1 // pred_region
      _
    $region9: #{multi_input_forward.1} parent=1 // pred_fallthru
      _
    // Predicated region
    $region10: #{multi_input_forward.1} parent=1 // pred_check
      _
    $region11: #{multi_input_forward.1} parent=1 // pred_check_branch
      %26 = sbr.rel (0) target = $region13
    $region12: #{multi_input_forward.1} parent=1 // pred_region
      _
    $region13: #{multi_input_forward.1} parent=1 // pred_fallthru
      _
    // Predicated region
    $region14: #{multi_input_forward.1} parent=1 // pred_check
      _
    $region15: #{multi_input_forward.1} parent=1 // pred_check_branch
      %28 = sbr.rel (0) target = $region17
    $region16: #{multi_input_forward.1} parent=1 // pred_region
      _
    $region17: #{multi_input_forward.1} parent=1 // pred_fallthru
      _
    // Predicated region
    $region18: #{multi_input_forward.1} parent=1 // pred_check
      _
    $region19: #{multi_input_forward.1} parent=1 // pred_check_branch
      %30 = sbr.rel (0) target = $region21
    $region20: #{multi_input_forward.1} parent=1 // pred_region
      _
    $region21: #{multi_input_forward.1} parent=1 // pred_fallthru
      _
    // Predicated region
    $region22: #{multi_input_forward.1} parent=1 // pred_check
      _
    $region23: #{multi_input_forward.1} parent=1 // pred_check_branch
      %32 = sbr.rel (0) target = $region25
    $region24: #{multi_input_forward.1} parent=1 // pred_region
      _
    $region25: #{multi_input_forward.1} parent=1 // pred_fallthru
      _
    // Predicated region
    $region26: #{multi_input_forward.1} parent=1 // pred_check
      _
    $region27: #{multi_input_forward.1} parent=1 // pred_check_branch
      %34 = sbr.rel (0) target = $region29
    $region28: #{multi_input_forward.1} parent=1 // pred_region
      _
    $region29: #{multi_input_forward.1} parent=1 // pred_fallthru
      _
    // Predicated region
    $region30: #{multi_input_forward.1} parent=1 // pred_check
      _
    $region31: #{multi_input_forward.1} parent=1 // pred_check_branch
      %36 = sbr.rel (0) target = $region33
    $region32: #{multi_input_forward.1} parent=1 // pred_region
      _
    $region33: #{multi_input_forward.1} parent=1 // pred_fallthru
      _
    // Predicated region
    $region34: #{multi_input_forward.1} parent=1 // pred_check
      _
    $region35: #{multi_input_forward.1} parent=1 // pred_check_branch
      %38 = sbr.rel (0) target = $region37
    $region36: #{multi_input_forward.1} parent=1 // pred_region
      _
    $region37: #{multi_input_forward.1} parent=1 // pred_fallthru
      _
    // Predicated region
    $region38: #{multi_input_forward.1} parent=1 // pred_check
      _
    $region39: #{multi_input_forward.1} parent=1 // pred_check_branch
      %40 = sbr.rel (0) target = $region41
    $region40: #{multi_input_forward.1} parent=1 // pred_region
      _
    $region41: #{multi_input_forward.1} parent=1 // pred_fallthru
      _
    // Predicated region
    $region42: #{multi_input_forward.1} parent=1 // pred_check
      _
    $region43: #{multi_input_forward.1} parent=1 // pred_check_branch
      %42 = sbr.rel (0) target = $region45
    $region44: #{multi_input_forward.1} parent=1 // pred_region
      _
    $region45: #{multi_input_forward.1} parent=1 // pred_fallthru
      _
    // Predicated region
    $region46: #{multi_input_forward.1} parent=1 // pred_check
      _
    $region47: #{multi_input_forward.1} parent=1 // pred_check_branch
      %44 = sbr.rel (0) target = $region49
    $region48: #{multi_input_forward.1} parent=1 // pred_region
      _
    $region49: #{multi_input_forward.1} parent=1 // pred_fallthru
      _
    // Predicated region
    $region50: #{multi_input_forward.1} parent=1 // pred_check
      _
    $region51: #{multi_input_forward.1} parent=1 // pred_check_branch
      %46 = sbr.rel (0) target = $region53
    $region52: #{multi_input_forward.1} parent=1 // pred_region
      _
    $region53: #{multi_input_forward.1} parent=1 // pred_fallthru
      _
    // Predicated region
    $region54: #{multi_input_forward.1} parent=1 // pred_check
      _
    $region55: #{multi_input_forward.1} parent=1 // pred_check_branch
      %48 = sbr.rel (0) target = $region57
    $region56: #{multi_input_forward.1} parent=1 // pred_region
      _
    $region57: #{multi_input_forward.1} parent=1 // pred_fallthru
      _
    // Predicated region
    $region58: #{multi_input_forward.1} parent=1 // pred_check
      _
    $region59: #{multi_input_forward.1} parent=1 // pred_check_branch
      %50 = sbr.rel (0) target = $region61
    $region60: #{multi_input_forward.1} parent=1 // pred_region
      _
    $region61: #{multi_input_forward.1} parent=1 // pred_fallthru
      _
    %v52 = vld [vmem:[%s0] sm:$0xf]
    %v53 = vld [vmem:[%s0 + $0x4] sm:$0xf]
    %v54 = vld [vmem:[%s0 + $0x8] sm:$0xf]
    %v55 = vld [vmem:[%s0 + $0xc] sm:$0xf]
    %v56 = vld [vmem:[%s0 + $0x10] sm:$0xf]
    %v57 = vld [vmem:[%s0 + $0x14] sm:$0xf]
    %v58 = vld [vmem:[%s0 + $0x18] sm:$0xf]
    %v59 = vld [vmem:[%s0 + $0x1c] sm:$0xf]
    %v60 = vld [vmem:[%s0 + $0x20] sm:$0xf]
    %v61 = vld [vmem:[%s0 + $0x24] sm:$0xf]
    %v62 = vld [vmem:[%s0 + $0x28] sm:$0xf]
    %v63 = vld [vmem:[%s0 + $0x2c] sm:$0xf]
    %v64 = vld [vmem:[%s0 + $0x30] sm:$0xf]
    %v65 = vld [vmem:[%s0 + $0x34] sm:$0xf]
    %v66 = vld [vmem:[%s0 + $0x38] sm:$0xf]
    %v67 = vld [vmem:[%s0 + $0x3c] sm:$0xf]
    %v68 = vld [vmem:[%s0 + $0x40] sm:$0xf]
    %v69 = vld [vmem:[%s0 + $0x44] sm:$0xf]
    %v70 = vld [vmem:[%s0 + $0x48] sm:$0xf]
    %v71 = vld [vmem:[%s0 + $0x4c] sm:$0xf]
    %v72 = vld [vmem:[%s0 + $0x50] sm:$0xf]
    %v73 = vld [vmem:[%s0 + $0x54] sm:$0xf]
    %v74 = vld [vmem:[%s0 + $0x58] sm:$0xf]
    %v75 = vld [vmem:[%s0 + $0x5c] sm:$0xf]
    %v76 = vld [vmem:[%s0 + $0x60] sm:$0xf]
    %v77 = vld [vmem:[%s0 + $0x64] sm:$0xf]
    %v78 = vld [vmem:[%s0 + $0x68] sm:$0xf]
    %v79 = vld [vmem:[%s0 + $0x6c] sm:$0xf]
    %v80 = vld [vmem:[%s0 + $0x70] sm:$0xf]
    %v81 = vld [vmem:[%s0 + $0x74] sm:$0xf]
    %v82 = vld [vmem:[%s0 + $0x78] sm:$0xf]
    %v83 = vld [vmem:[%s0 + $0x7c] sm:$0xf]
    %v84 = vld [vmem:[%s0 + $0x80] sm:$0xf]
    %v85 = vld [vmem:[%s0 + $0x84] sm:$0xf]
    %v86 = vld [vmem:[%s0 + $0x88] sm:$0xf]
    %v87 = vld [vmem:[%s0 + $0x8c] sm:$0xf]
    %v88 = vld [vmem:[%s0 + $0x90] sm:$0xf]
    %v89 = vld [vmem:[%s0 + $0x94] sm:$0xf]
    %v90 = vld [vmem:[%s0 + $0x98] sm:$0xf]
    %v91 = vld [vmem:[%s0 + $0x9c] sm:$0xf]
    %v92 = vld [vmem:[%s0 + $0xa0] sm:$0xf]
    %v93 = vld [vmem:[%s0 + $0xa4] sm:$0xf]
    %v94 = vld [vmem:[%s0 + $0xa8] sm:$0xf]
    %v95 = vld [vmem:[%s0 + $0xac] sm:$0xf]
    %v96 = vld [vmem:[%s0 + $0xb0] sm:$0xf]
    %v97 = vld [vmem:[%s0 + $0xb4] sm:$0xf]
    %v98 = vld [vmem:[%s0 + $0xb8] sm:$0xf]
    %v99 = vld [vmem:[%s0 + $0xbc] sm:$0xf]
    %v100 = vld [vmem:[%s0 + $0xc0] sm:$0xf]
    %v101 = vld [vmem:[%s0 + $0xc4] sm:$0xf]
    %v102 = vld [vmem:[%s0 + $0xc8] sm:$0xf]
    %v103 = vld [vmem:[%s0 + $0xcc] sm:$0xf]
    %v104 = vld [vmem:[%s0 + $0xd0] sm:$0xf]
    %v105 = vld [vmem:[%s0 + $0xd4] sm:$0xf]
    %v106 = vld [vmem:[%s0 + $0xd8] sm:$0xf]
    %v107 = vld [vmem:[%s0 + $0xdc] sm:$0xf]
    %v108 = vld [vmem:[%s0 + $0xe0] sm:$0xf]
    %v109 = vld [vmem:[%s0 + $0xe4] sm:$0xf]
    %v110 = vld [vmem:[%s0 + $0xe8] sm:$0xf]
    %v111 = vld [vmem:[%s0 + $0xec] sm:$0xf]
    %v112 = vld [vmem:[%s0 + $0xf0] sm:$0xf]
    %v113 = vld [vmem:[%s0 + $0xf4] sm:$0xf]
    %v114 = vld [vmem:[%s0 + $0xf8] sm:$0xf]
    %v115 = vld [vmem:[%s0 + $0xfc] sm:$0xf]
    %v116 = vld [vmem:[%s2] sm:$0xf]
    %v117 = vld [vmem:[%s2 + $0x4] sm:$0xf]
    %v118 = vld [vmem:[%s2 + $0x8] sm:$0xf]
    %v119 = vld [vmem:[%s2 + $0xc] sm:$0xf]
    %v120 = vld [vmem:[%s2 + $0x10] sm:$0x3]
    %v121 = vld [vmem:[%s3] sm:$0x1]
    %v123 = vperm.slane %v121, 0
    %v189 = vunpack.c.l.b16 %v52
    %v190 = vunpack.c.l.b16 %v53
    %v191 = vunpack.c.l.b16 %v54
    %v192 = vunpack.c.l.b16 %v55
    %v193 = vunpack.c.l.b16 %v56
    %v194 = vunpack.c.l.b16 %v57
    %v195 = vunpack.c.l.b16 %v58
    %v196 = vunpack.c.l.b16 %v59
    %v197 = vunpack.c.l.b16 %v60
    %v198 = vunpack.c.l.b16 %v61
    %v199 = vunpack.c.l.b16 %v62
    %v200 = vunpack.c.l.b16 %v63
    %v201 = vunpack.c.l.b16 %v64
    %v202 = vunpack.c.l.b16 %v65
    %v203 = vunpack.c.l.b16 %v66
    %v204 = vunpack.c.l.b16 %v67
    %v205 = vunpack.c.l.b16 %v68
    %v206 = vunpack.c.l.b16 %v69
    %v207 = vunpack.c.l.b16 %v70
    %v208 = vunpack.c.l.b16 %v71
    %v209 = vunpack.c.l.b16 %v72
    %v210 = vunpack.c.l.b16 %v73
    %v211 = vunpack.c.l.b16 %v74
    %v212 = vunpack.c.l.b16 %v75
    %v213 = vunpack.c.l.b16 %v76
    %v214 = vunpack.c.l.b16 %v77
    %v215 = vunpack.c.l.b16 %v78
    %v216 = vunpack.c.l.b16 %v79
    %v217 = vunpack.c.l.b16 %v80
    %v218 = vunpack.c.l.b16 %v81
    %v219 = vunpack.c.l.b16 %v82
    %v220 = vunpack.c.l.b16 %v83
    %v221 = vunpack.c.l.b16 %v84
    %v222 = vunpack.c.l.b16 %v85
    %v223 = vunpack.c.l.b16 %v86
    %v224 = vunpack.c.l.b16 %v87
    %v225 = vunpack.c.l.b16 %v88
    %v226 = vunpack.c.l.b16 %v89
    %v227 = vunpack.c.l.b16 %v90
    %v228 = vunpack.c.l.b16 %v91
    %v229 = vunpack.c.l.b16 %v92
    %v230 = vunpack.c.l.b16 %v93
    %v231 = vunpack.c.l.b16 %v94
    %v232 = vunpack.c.l.b16 %v95
    %v233 = vunpack.c.l.b16 %v96
    %v234 = vunpack.c.l.b16 %v97
    %v235 = vunpack.c.l.b16 %v98
    %v236 = vunpack.c.l.b16 %v99
    %v237 = vunpack.c.l.b16 %v100
    %v238 = vunpack.c.l.b16 %v101
    %v239 = vunpack.c.l.b16 %v102
    %v240 = vunpack.c.l.b16 %v103
    %v241 = vunpack.c.l.b16 %v104
    %v242 = vunpack.c.l.b16 %v105
    %v243 = vunpack.c.l.b16 %v106
    %v244 = vunpack.c.l.b16 %v107
    %v245 = vunpack.c.l.b16 %v108
    %v246 = vunpack.c.l.b16 %v109
    %v247 = vunpack.c.l.b16 %v110
    %v248 = vunpack.c.l.b16 %v111
    %v249 = vunpack.c.l.b16 %v112
    %v250 = vunpack.c.l.b16 %v113
    %v251 = vunpack.c.l.b16 %v114
    %v252 = vunpack.c.l.b16 %v115
    %v253 = vpack.c.b16 %v190, %v189
    %v254 = vpack.c.b16 %v192, %v191
    %v255 = vpack.c.b16 %v194, %v193
    %v256 = vpack.c.b16 %v196, %v195
    %v257 = vpack.c.b16 %v198, %v197
    %v258 = vpack.c.b16 %v200, %v199
    %v259 = vpack.c.b16 %v202, %v201
    %v260 = vpack.c.b16 %v204, %v203
    %v261 = vpack.c.b16 %v206, %v205
    %v262 = vpack.c.b16 %v208, %v207
    %v263 = vpack.c.b16 %v210, %v209
    %v264 = vpack.c.b16 %v212, %v211
    %v265 = vpack.c.b16 %v214, %v213
    %v266 = vpack.c.b16 %v216, %v215
    %v267 = vpack.c.b16 %v218, %v217
    %v268 = vpack.c.b16 %v220, %v219
    %v269 = vpack.c.b16 %v222, %v221
    %v270 = vpack.c.b16 %v224, %v223
    %v271 = vpack.c.b16 %v226, %v225
    %v272 = vpack.c.b16 %v228, %v227
    %v273 = vpack.c.b16 %v230, %v229
    %v274 = vpack.c.b16 %v232, %v231
    %v275 = vpack.c.b16 %v234, %v233
    %v276 = vpack.c.b16 %v236, %v235
    %v277 = vpack.c.b16 %v238, %v237
    %v278 = vpack.c.b16 %v240, %v239
    %v279 = vpack.c.b16 %v242, %v241
    %v280 = vpack.c.b16 %v244, %v243
    %v281 = vpack.c.b16 %v246, %v245
    %v282 = vpack.c.b16 %v248, %v247
    %v283 = vpack.c.b16 %v250, %v249
    %v284 = vpack.c.b16 %v252, %v251
    %v290 = vunpack.c.l.b16 %v116
    %v291 = vunpack.c.l.b16 %v117
    %v292 = vunpack.c.l.b16 %v118
    %v293 = vunpack.c.l.b16 %v119
    %v294 = vunpack.c.l.b16 %v120
    %v295 = vpack.c.b16 %v291, %v290
    %v296 = vpack.c.b16 %v293, %v292
    %v297 = vpack.c.b16 %v294, %v294
    %vm300 = vcmask 293888
    %v302 = vsel %vm300, %v253, 0
    %v305 = vsel %vm300, %v254, 0
    %v308 = vsel %vm300, %v255, 0
    %v311 = vsel %vm300, %v256, 0
    %v314 = vsel %vm300, %v257, 0
    %v317 = vsel %vm300, %v258, 0
    %v320 = vsel %vm300, %v259, 0
    %v323 = vsel %vm300, %v260, 0
    %v326 = vsel %vm300, %v261, 0
    %v329 = vsel %vm300, %v262, 0
    %v332 = vsel %vm300, %v263, 0
    %v335 = vsel %vm300, %v264, 0
    %v338 = vsel %vm300, %v265, 0
    %v341 = vsel %vm300, %v266, 0
    %v344 = vsel %vm300, %v267, 0
    %v347 = vsel %vm300, %v268, 0
    %v350 = vsel %vm300, %v269, 0
    %v353 = vsel %vm300, %v270, 0
    %v356 = vsel %vm300, %v271, 0
    %v359 = vsel %vm300, %v272, 0
    %v362 = vsel %vm300, %v273, 0
    %v365 = vsel %vm300, %v274, 0
    %v368 = vsel %vm300, %v275, 0
    %v371 = vsel %vm300, %v276, 0
    %v374 = vsel %vm300, %v277, 0
    %v377 = vsel %vm300, %v278, 0
    %v380 = vsel %vm300, %v279, 0
    %v383 = vsel %vm300, %v280, 0
    %v386 = vsel %vm300, %v281, 0
    %v389 = vsel %vm300, %v282, 0
    %v392 = vsel %vm300, %v283, 0
    %v395 = vsel %vm300, %v284, 0
    %vm397 = vcmask 1041408
    %v399 = vsel %vm397, %v297, 0
    %401 = vmatpush.bf16.msra.mxu0 0
    %402 = vmatpush.bf16.msra.mxu0 0
    %403 = vmatpush.bf16.msra.mxu0 0
    %404 = vmatpush.bf16.msra.mxu0 0
    %405 = vmatpush.bf16.msra.mxu0 0
    %406 = vmatpush.bf16.msra.mxu0 %v399
    %407 = vmatpush.bf16.msra.mxu0 %v296
    %408 = vmatpush.bf16.msra.mxu0 %v295
    %409 = vmatmul.bf16.gmra.mxu0 %v302
    %v410 = vpop.f32.mrf.mxu0
    %v411 = vadd.f32 %v123, %v410
    %v412 = vpop.f32.mrf.mxu0
    %v413 = vadd.f32 %v123, %v412
    %414 = vmatmul.bf16.gmra.mxu0 %v305
    %v415 = vpop.f32.mrf.mxu0
    %v416 = vadd.f32 %v123, %v415
    %v417 = vpop.f32.mrf.mxu0
    %v418 = vadd.f32 %v123, %v417
    %419 = vmatmul.bf16.gmra.mxu0 %v308
    %v420 = vpop.f32.mrf.mxu0
    %v421 = vadd.f32 %v123, %v420
    %v422 = vpop.f32.mrf.mxu0
    %v423 = vadd.f32 %v123, %v422
    %424 = vmatmul.bf16.gmra.mxu0 %v311
    %v425 = vpop.f32.mrf.mxu0
    %v426 = vadd.f32 %v123, %v425
    %v427 = vpop.f32.mrf.mxu0
    %v428 = vadd.f32 %v123, %v427
    %429 = vmatmul.bf16.gmra.mxu0 %v314
    %v430 = vpop.f32.mrf.mxu0
    %v431 = vadd.f32 %v123, %v430
    %v432 = vpop.f32.mrf.mxu0
    %v433 = vadd.f32 %v123, %v432
    %434 = vmatmul.bf16.gmra.mxu0 %v317
    %v435 = vpop.f32.mrf.mxu0
    %v436 = vadd.f32 %v123, %v435
    %v437 = vpop.f32.mrf.mxu0
    %v438 = vadd.f32 %v123, %v437
    %439 = vmatmul.bf16.gmra.mxu0 %v320
    %v440 = vpop.f32.mrf.mxu0
    %v441 = vadd.f32 %v123, %v440
    %v442 = vpop.f32.mrf.mxu0
    %v443 = vadd.f32 %v123, %v442
    %444 = vmatmul.bf16.gmra.mxu0 %v323
    %v445 = vpop.f32.mrf.mxu0
    %v446 = vadd.f32 %v123, %v445
    %v447 = vpop.f32.mrf.mxu0
    %v448 = vadd.f32 %v123, %v447
    %449 = vmatmul.bf16.gmra.mxu0 %v326
    %v450 = vpop.f32.mrf.mxu0
    %v451 = vadd.f32 %v123, %v450
    %v452 = vpop.f32.mrf.mxu0
    %v453 = vadd.f32 %v123, %v452
    %454 = vmatmul.bf16.gmra.mxu0 %v329
    %v455 = vpop.f32.mrf.mxu0
    %v456 = vadd.f32 %v123, %v455
    %v457 = vpop.f32.mrf.mxu0
    %v458 = vadd.f32 %v123, %v457
    %459 = vmatmul.bf16.gmra.mxu0 %v332
    %v460 = vpop.f32.mrf.mxu0
    %v461 = vadd.f32 %v123, %v460
    %v462 = vpop.f32.mrf.mxu0
    %v463 = vadd.f32 %v123, %v462
    %464 = vmatmul.bf16.gmra.mxu0 %v335
    %v465 = vpop.f32.mrf.mxu0
    %v466 = vadd.f32 %v123, %v465
    %v467 = vpop.f32.mrf.mxu0
    %v468 = vadd.f32 %v123, %v467
    %469 = vmatmul.bf16.gmra.mxu0 %v338
    %v470 = vpop.f32.mrf.mxu0
    %v471 = vadd.f32 %v123, %v470
    %v472 = vpop.f32.mrf.mxu0
    %v473 = vadd.f32 %v123, %v472
    %474 = vmatmul.bf16.gmra.mxu0 %v341
    %v475 = vpop.f32.mrf.mxu0
    %v476 = vadd.f32 %v123, %v475
    %v477 = vpop.f32.mrf.mxu0
    %v478 = vadd.f32 %v123, %v477
    %479 = vmatmul.bf16.gmra.mxu0 %v344
    %v480 = vpop.f32.mrf.mxu0
    %v481 = vadd.f32 %v123, %v480
    %v482 = vpop.f32.mrf.mxu0
    %v483 = vadd.f32 %v123, %v482
    %484 = vmatmul.bf16.gmra.mxu0 %v347
    %v485 = vpop.f32.mrf.mxu0
    %v486 = vadd.f32 %v123, %v485
    %v487 = vpop.f32.mrf.mxu0
    %v488 = vadd.f32 %v123, %v487
    %489 = vmatmul.bf16.gmra.mxu0 %v350
    %v490 = vpop.f32.mrf.mxu0
    %v491 = vadd.f32 %v123, %v490
    %v492 = vpop.f32.mrf.mxu0
    %v493 = vadd.f32 %v123, %v492
    %494 = vmatmul.bf16.gmra.mxu0 %v353
    %v495 = vpop.f32.mrf.mxu0
    %v496 = vadd.f32 %v123, %v495
    %v497 = vpop.f32.mrf.mxu0
    %v498 = vadd.f32 %v123, %v497
    %499 = vmatmul.bf16.gmra.mxu0 %v356
    %v500 = vpop.f32.mrf.mxu0
    %v501 = vadd.f32 %v123, %v500
    %v502 = vpop.f32.mrf.mxu0
    %v503 = vadd.f32 %v123, %v502
    %504 = vmatmul.bf16.gmra.mxu0 %v359
    %v505 = vpop.f32.mrf.mxu0
    %v506 = vadd.f32 %v123, %v505
    %v507 = vpop.f32.mrf.mxu0
    %v508 = vadd.f32 %v123, %v507
    %509 = vmatmul.bf16.gmra.mxu0 %v362
    %v510 = vpop.f32.mrf.mxu0
    %v511 = vadd.f32 %v123, %v510
    %v512 = vpop.f32.mrf.mxu0
    %v513 = vadd.f32 %v123, %v512
    %514 = vmatmul.bf16.gmra.mxu0 %v365
    %v515 = vpop.f32.mrf.mxu0
    %v516 = vadd.f32 %v123, %v515
    %v517 = vpop.f32.mrf.mxu0
    %v518 = vadd.f32 %v123, %v517
    %519 = vmatmul.bf16.gmra.mxu0 %v368
    %v520 = vpop.f32.mrf.mxu0
    %v521 = vadd.f32 %v123, %v520
    %v522 = vpop.f32.mrf.mxu0
    %v523 = vadd.f32 %v123, %v522
    %524 = vmatmul.bf16.gmra.mxu0 %v371
    %v525 = vpop.f32.mrf.mxu0
    %v526 = vadd.f32 %v123, %v525
    %v527 = vpop.f32.mrf.mxu0
    %v528 = vadd.f32 %v123, %v527
    %529 = vmatmul.bf16.gmra.mxu0 %v374
    %v530 = vpop.f32.mrf.mxu0
    %v531 = vadd.f32 %v123, %v530
    %v532 = vpop.f32.mrf.mxu0
    %v533 = vadd.f32 %v123, %v532
    %534 = vmatmul.bf16.gmra.mxu0 %v377
    %v535 = vpop.f32.mrf.mxu0
    %v536 = vadd.f32 %v123, %v535
    %v537 = vpop.f32.mrf.mxu0
    %v538 = vadd.f32 %v123, %v537
    %539 = vmatmul.bf16.gmra.mxu0 %v380
    %v540 = vpop.f32.mrf.mxu0
    %v541 = vadd.f32 %v123, %v540
    %v542 = vpop.f32.mrf.mxu0
    %v543 = vadd.f32 %v123, %v542
    %544 = vmatmul.bf16.gmra.mxu0 %v383
    %v545 = vpop.f32.mrf.mxu0
    %v546 = vadd.f32 %v123, %v545
    %v547 = vpop.f32.mrf.mxu0
    %v548 = vadd.f32 %v123, %v547
    %549 = vmatmul.bf16.gmra.mxu0 %v386
    %v550 = vpop.f32.mrf.mxu0
    %v551 = vadd.f32 %v123, %v550
    %v552 = vpop.f32.mrf.mxu0
    %v553 = vadd.f32 %v123, %v552
    %554 = vmatmul.bf16.gmra.mxu0 %v389
    %v555 = vpop.f32.mrf.mxu0
    %v556 = vadd.f32 %v123, %v555
    %v557 = vpop.f32.mrf.mxu0
    %v558 = vadd.f32 %v123, %v557
    %559 = vmatmul.bf16.gmra.mxu0 %v392
    %v560 = vpop.f32.mrf.mxu0
    %v561 = vadd.f32 %v123, %v560
    %v562 = vpop.f32.mrf.mxu0
    %v563 = vadd.f32 %v123, %v562
    %564 = vmatmul.bf16.gmra.mxu0 %v395
    %v565 = vpop.f32.mrf.mxu0
    %v566 = vadd.f32 %v123, %v565
    %v567 = vpop.f32.mrf.mxu0
    %v568 = vadd.f32 %v123, %v567
    %569 = vdwg.mxu0
    %v570 = vmax.f32 %v411, 0.0
    %v571 = vmax.f32 %v413, 0.0
    %v572 = vmax.f32 %v416, 0.0
    %v573 = vmax.f32 %v418, 0.0
    %v574 = vmax.f32 %v421, 0.0
    %v575 = vmax.f32 %v423, 0.0
    %v576 = vmax.f32 %v426, 0.0
    %v577 = vmax.f32 %v428, 0.0
    %v578 = vmax.f32 %v431, 0.0
    %v579 = vmax.f32 %v433, 0.0
    %v580 = vmax.f32 %v436, 0.0
    %v581 = vmax.f32 %v438, 0.0
    %v582 = vmax.f32 %v441, 0.0
    %v583 = vmax.f32 %v443, 0.0
    %v584 = vmax.f32 %v446, 0.0
    %v585 = vmax.f32 %v448, 0.0
    %v586 = vmax.f32 %v451, 0.0
    %v587 = vmax.f32 %v453, 0.0
    %v588 = vmax.f32 %v456, 0.0
    %v589 = vmax.f32 %v458, 0.0
    %v590 = vmax.f32 %v461, 0.0
    %v591 = vmax.f32 %v463, 0.0
    %v592 = vmax.f32 %v466, 0.0
    %v593 = vmax.f32 %v468, 0.0
    %v594 = vmax.f32 %v471, 0.0
    %v595 = vmax.f32 %v473, 0.0
    %v596 = vmax.f32 %v476, 0.0
    %v597 = vmax.f32 %v478, 0.0
    %v598 = vmax.f32 %v481, 0.0
    %v599 = vmax.f32 %v483, 0.0
    %v600 = vmax.f32 %v486, 0.0
    %v601 = vmax.f32 %v488, 0.0
    %v602 = vmax.f32 %v491, 0.0
    %v603 = vmax.f32 %v493, 0.0
    %v604 = vmax.f32 %v496, 0.0
    %v605 = vmax.f32 %v498, 0.0
    %v606 = vmax.f32 %v501, 0.0
    %v607 = vmax.f32 %v503, 0.0
    %v608 = vmax.f32 %v506, 0.0
    %v609 = vmax.f32 %v508, 0.0
    %v610 = vmax.f32 %v511, 0.0
    %v611 = vmax.f32 %v513, 0.0
    %v612 = vmax.f32 %v516, 0.0
    %v613 = vmax.f32 %v518, 0.0
    %v614 = vmax.f32 %v521, 0.0
    %v615 = vmax.f32 %v523, 0.0
    %v616 = vmax.f32 %v526, 0.0
    %v617 = vmax.f32 %v528, 0.0
    %v618 = vmax.f32 %v531, 0.0
    %v619 = vmax.f32 %v533, 0.0
    %v620 = vmax.f32 %v536, 0.0
    %v621 = vmax.f32 %v538, 0.0
    %v622 = vmax.f32 %v541, 0.0
    %v623 = vmax.f32 %v543, 0.0
    %v624 = vmax.f32 %v546, 0.0
    %v625 = vmax.f32 %v548, 0.0
    %v626 = vmax.f32 %v551, 0.0
    %v627 = vmax.f32 %v553, 0.0
    %v628 = vmax.f32 %v556, 0.0
    %v629 = vmax.f32 %v558, 0.0
    %v630 = vmax.f32 %v561, 0.0
    %v631 = vmax.f32 %v563, 0.0
    %v632 = vmax.f32 %v566, 0.0
    %v633 = vmax.f32 %v568, 0.0
    %v634 = vmax.f32 %v570, %v572
    %v635 = vmax.f32 %v571, %v573
    %v636 = vmax.f32 %v574, %v576
    %v637 = vmax.f32 %v575, %v577
    %v638 = vmax.f32 %v578, %v580
    %v639 = vmax.f32 %v579, %v581
    %v640 = vmax.f32 %v582, %v584
    %v641 = vmax.f32 %v583, %v585
    %v642 = vmax.f32 %v586, %v588
    %v643 = vmax.f32 %v587, %v589
    %v644 = vmax.f32 %v590, %v592
    %v645 = vmax.f32 %v591, %v593
    %v646 = vmax.f32 %v594, %v596
    %v647 = vmax.f32 %v595, %v597
    %v648 = vmax.f32 %v598, %v600
    %v649 = vmax.f32 %v599, %v601
    %v650 = vmax.f32 %v602, %v604
    %v651 = vmax.f32 %v603, %v605
    %v652 = vmax.f32 %v606, %v608
    %v653 = vmax.f32 %v607, %v609
    %v654 = vmax.f32 %v610, %v612
    %v655 = vmax.f32 %v611, %v613
    %v656 = vmax.f32 %v614, %v616
    %v657 = vmax.f32 %v615, %v617
    %v658 = vmax.f32 %v618, %v620
    %v659 = vmax.f32 %v619, %v621
    %v660 = vmax.f32 %v622, %v624
    %v661 = vmax.f32 %v623, %v625
    %v662 = vmax.f32 %v626, %v628
    %v663 = vmax.f32 %v627, %v629
    %v664 = vmax.f32 %v630, %v632
    %v665 = vmax.f32 %v631, %v633
    %v698 = vrot.slane %v634, 2
    %v699 = vrot.slane %v634, 4
    %v700 = vrot.slane %v634, 6
    %v701 = vrot.slane %v635, 2
    %v702 = vrot.slane %v635, 4
    %v703 = vrot.slane %v635, 6
    %v704 = vrot.slane %v636, 2
    %v705 = vrot.slane %v636, 4
    %v706 = vrot.slane %v636, 6
    %v707 = vrot.slane %v637, 2
    %v708 = vrot.slane %v637, 4
    %v709 = vrot.slane %v637, 6
    %v710 = vrot.slane %v638, 2
    %v711 = vrot.slane %v638, 4
    %v712 = vrot.slane %v638, 6
    %v713 = vrot.slane %v639, 2
    %v714 = vrot.slane %v639, 4
    %v715 = vrot.slane %v639, 6
    %v716 = vrot.slane %v640, 2
    %v717 = vrot.slane %v640, 4
    %v718 = vrot.slane %v640, 6
    %v719 = vrot.slane %v641, 2
    %v720 = vrot.slane %v641, 4
    %v721 = vrot.slane %v641, 6
    %v722 = vrot.slane %v642, 2
    %v723 = vrot.slane %v642, 4
    %v724 = vrot.slane %v642, 6
    %v725 = vrot.slane %v643, 2
    %v726 = vrot.slane %v643, 4
    %v727 = vrot.slane %v643, 6
    %v728 = vrot.slane %v644, 2
    %v729 = vrot.slane %v644, 4
    %v730 = vrot.slane %v644, 6
    %v731 = vrot.slane %v645, 2
    %v732 = vrot.slane %v645, 4
    %v733 = vrot.slane %v645, 6
    %v734 = vrot.slane %v646, 2
    %v735 = vrot.slane %v646, 4
    %v736 = vrot.slane %v646, 6
    %v737 = vrot.slane %v647, 2
    %v738 = vrot.slane %v647, 4
    %v739 = vrot.slane %v647, 6
    %v740 = vrot.slane %v648, 2
    %v741 = vrot.slane %v648, 4
    %v742 = vrot.slane %v648, 6
    %v743 = vrot.slane %v649, 2
    %v744 = vrot.slane %v649, 4
    %v745 = vrot.slane %v649, 6
    %v746 = vrot.slane %v650, 2
    %v747 = vrot.slane %v650, 4
    %v748 = vrot.slane %v650, 6
    %v749 = vrot.slane %v651, 2
    %v750 = vrot.slane %v651, 4
    %v751 = vrot.slane %v651, 6
    %v752 = vrot.slane %v652, 2
    %v753 = vrot.slane %v652, 4
    %v754 = vrot.slane %v652, 6
    %v755 = vrot.slane %v653, 2
    %v756 = vrot.slane %v653, 4
    %v757 = vrot.slane %v653, 6
    %v758 = vrot.slane %v654, 2
    %v759 = vrot.slane %v654, 4
    %v760 = vrot.slane %v654, 6
    %v761 = vrot.slane %v655, 2
    %v762 = vrot.slane %v655, 4
    %v763 = vrot.slane %v655, 6
    %v764 = vrot.slane %v656, 2
    %v765 = vrot.slane %v656, 4
    %v766 = vrot.slane %v656, 6
    %v767 = vrot.slane %v657, 2
    %v768 = vrot.slane %v657, 4
    %v769 = vrot.slane %v657, 6
    %v770 = vrot.slane %v658, 2
    %v771 = vrot.slane %v658, 4
    %v772 = vrot.slane %v658, 6
    %v773 = vrot.slane %v659, 2
    %v774 = vrot.slane %v659, 4
    %v775 = vrot.slane %v659, 6
    %v776 = vrot.slane %v660, 2
    %v777 = vrot.slane %v660, 4
    %v778 = vrot.slane %v660, 6
    %v779 = vrot.slane %v661, 2
    %v780 = vrot.slane %v661, 4
    %v781 = vrot.slane %v661, 6
    %v782 = vrot.slane %v662, 2
    %v783 = vrot.slane %v662, 4
    %v784 = vrot.slane %v662, 6
    %v785 = vrot.slane %v663, 2
    %v786 = vrot.slane %v663, 4
    %v787 = vrot.slane %v663, 6
    %v788 = vrot.slane %v664, 2
    %v789 = vrot.slane %v664, 4
    %v790 = vrot.slane %v664, 6
    %v791 = vrot.slane %v665, 2
    %v792 = vrot.slane %v665, 4
    %v793 = vrot.slane %v665, 6
    %vm890 = vcmask 254976
    %v891 = vsel %vm890, %v634, -inf
    %v892 = vrot.slane %v891, 4
    %v893 = vmax.f32 %v891, %v892
    %v894 = vrot.slane %v893, 2
    %v895 = vmax.f32 %v893, %v894
    %v896 = vrot.slane %v895, 1
    %v897 = vmax.f32 %v895, %v896
    %v898 = vsel %vm890, %v698, -inf
    %v899 = vrot.slane %v898, 4
    %v900 = vmax.f32 %v898, %v899
    %v901 = vrot.slane %v900, 2
    %v902 = vmax.f32 %v900, %v901
    %v903 = vrot.slane %v902, 1
    %v904 = vmax.f32 %v902, %v903
    %v905 = vsel %vm890, %v699, -inf
    %v906 = vrot.slane %v905, 4
    %v907 = vmax.f32 %v905, %v906
    %v908 = vrot.slane %v907, 2
    %v909 = vmax.f32 %v907, %v908
    %v910 = vrot.slane %v909, 1
    %v911 = vmax.f32 %v909, %v910
    %v912 = vsel %vm890, %v700, -inf
    %v913 = vrot.slane %v912, 4
    %v914 = vmax.f32 %v912, %v913
    %v915 = vrot.slane %v914, 2
    %v916 = vmax.f32 %v914, %v915
    %v917 = vrot.slane %v916, 1
    %v918 = vmax.f32 %v916, %v917
    %v919 = vsel %vm890, %v635, -inf
    %v920 = vrot.slane %v919, 4
    %v921 = vmax.f32 %v919, %v920
    %v922 = vrot.slane %v921, 2
    %v923 = vmax.f32 %v921, %v922
    %v924 = vrot.slane %v923, 1
    %v925 = vmax.f32 %v923, %v924
    %v926 = vsel %vm890, %v701, -inf
    %v927 = vrot.slane %v926, 4
    %v928 = vmax.f32 %v926, %v927
    %v929 = vrot.slane %v928, 2
    %v930 = vmax.f32 %v928, %v929
    %v931 = vrot.slane %v930, 1
    %v932 = vmax.f32 %v930, %v931
    %v933 = vsel %vm890, %v702, -inf
    %v934 = vrot.slane %v933, 4
    %v935 = vmax.f32 %v933, %v934
    %v936 = vrot.slane %v935, 2
    %v937 = vmax.f32 %v935, %v936
    %v938 = vrot.slane %v937, 1
    %v939 = vmax.f32 %v937, %v938
    %v940 = vsel %vm890, %v703, -inf
    %v941 = vrot.slane %v940, 4
    %v942 = vmax.f32 %v940, %v941
    %v943 = vrot.slane %v942, 2
    %v944 = vmax.f32 %v942, %v943
    %v945 = vrot.slane %v944, 1
    %v946 = vmax.f32 %v944, %v945
    %v947 = vsel %vm890, %v636, -inf
    %v948 = vrot.slane %v947, 4
    %v949 = vmax.f32 %v947, %v948
    %v950 = vrot.slane %v949, 2
    %v951 = vmax.f32 %v949, %v950
    %v952 = vrot.slane %v951, 1
    %v953 = vmax.f32 %v951, %v952
    %v954 = vsel %vm890, %v704, -inf
    %v955 = vrot.slane %v954, 4
    %v956 = vmax.f32 %v954, %v955
    %v957 = vrot.slane %v956, 2
    %v958 = vmax.f32 %v956, %v957
    %v959 = vrot.slane %v958, 1
    %v960 = vmax.f32 %v958, %v959
    %v961 = vsel %vm890, %v705, -inf
    %v962 = vrot.slane %v961, 4
    %v963 = vmax.f32 %v961, %v962
    %v964 = vrot.slane %v963, 2
    %v965 = vmax.f32 %v963, %v964
    %v966 = vrot.slane %v965, 1
    %v967 = vmax.f32 %v965, %v966
    %v968 = vsel %vm890, %v706, -inf
    %v969 = vrot.slane %v968, 4
    %v970 = vmax.f32 %v968, %v969
    %v971 = vrot.slane %v970, 2
    %v972 = vmax.f32 %v970, %v971
    %v973 = vrot.slane %v972, 1
    %v974 = vmax.f32 %v972, %v973
    %v975 = vsel %vm890, %v637, -inf
    %v976 = vrot.slane %v975, 4
    %v977 = vmax.f32 %v975, %v976
    %v978 = vrot.slane %v977, 2
    %v979 = vmax.f32 %v977, %v978
    %v980 = vrot.slane %v979, 1
    %v981 = vmax.f32 %v979, %v980
    %v982 = vsel %vm890, %v707, -inf
    %v983 = vrot.slane %v982, 4
    %v984 = vmax.f32 %v982, %v983
    %v985 = vrot.slane %v984, 2
    %v986 = vmax.f32 %v984, %v985
    %v987 = vrot.slane %v986, 1
    %v988 = vmax.f32 %v986, %v987
    %v989 = vsel %vm890, %v708, -inf
    %v990 = vrot.slane %v989, 4
    %v991 = vmax.f32 %v989, %v990
    %v992 = vrot.slane %v991, 2
    %v993 = vmax.f32 %v991, %v992
    %v994 = vrot.slane %v993, 1
    %v995 = vmax.f32 %v993, %v994
    %v996 = vsel %vm890, %v709, -inf
    %v997 = vrot.slane %v996, 4
    %v998 = vmax.f32 %v996, %v997
    %v999 = vrot.slane %v998, 2
    %v1000 = vmax.f32 %v998, %v999
    %v1001 = vrot.slane %v1000, 1
    %v1002 = vmax.f32 %v1000, %v1001
    %v1003 = vsel %vm890, %v638, -inf
    %v1004 = vrot.slane %v1003, 4
    %v1005 = vmax.f32 %v1003, %v1004
    %v1006 = vrot.slane %v1005, 2
    %v1007 = vmax.f32 %v1005, %v1006
    %v1008 = vrot.slane %v1007, 1
    %v1009 = vmax.f32 %v1007, %v1008
    %v1010 = vsel %vm890, %v710, -inf
    %v1011 = vrot.slane %v1010, 4
    %v1012 = vmax.f32 %v1010, %v1011
    %v1013 = vrot.slane %v1012, 2
    %v1014 = vmax.f32 %v1012, %v1013
    %v1015 = vrot.slane %v1014, 1
    %v1016 = vmax.f32 %v1014, %v1015
    %v1017 = vsel %vm890, %v711, -inf
    %v1018 = vrot.slane %v1017, 4
    %v1019 = vmax.f32 %v1017, %v1018
    %v1020 = vrot.slane %v1019, 2
    %v1021 = vmax.f32 %v1019, %v1020
    %v1022 = vrot.slane %v1021, 1
    %v1023 = vmax.f32 %v1021, %v1022
    %v1024 = vsel %vm890, %v712, -inf
    %v1025 = vrot.slane %v1024, 4
    %v1026 = vmax.f32 %v1024, %v1025
    %v1027 = vrot.slane %v1026, 2
    %v1028 = vmax.f32 %v1026, %v1027
    %v1029 = vrot.slane %v1028, 1
    %v1030 = vmax.f32 %v1028, %v1029
    %v1031 = vsel %vm890, %v639, -inf
    %v1032 = vrot.slane %v1031, 4
    %v1033 = vmax.f32 %v1031, %v1032
    %v1034 = vrot.slane %v1033, 2
    %v1035 = vmax.f32 %v1033, %v1034
    %v1036 = vrot.slane %v1035, 1
    %v1037 = vmax.f32 %v1035, %v1036
    %v1038 = vsel %vm890, %v713, -inf
    %v1039 = vrot.slane %v1038, 4
    %v1040 = vmax.f32 %v1038, %v1039
    %v1041 = vrot.slane %v1040, 2
    %v1042 = vmax.f32 %v1040, %v1041
    %v1043 = vrot.slane %v1042, 1
    %v1044 = vmax.f32 %v1042, %v1043
    %v1045 = vsel %vm890, %v714, -inf
    %v1046 = vrot.slane %v1045, 4
    %v1047 = vmax.f32 %v1045, %v1046
    %v1048 = vrot.slane %v1047, 2
    %v1049 = vmax.f32 %v1047, %v1048
    %v1050 = vrot.slane %v1049, 1
    %v1051 = vmax.f32 %v1049, %v1050
    %v1052 = vsel %vm890, %v715, -inf
    %v1053 = vrot.slane %v1052, 4
    %v1054 = vmax.f32 %v1052, %v1053
    %v1055 = vrot.slane %v1054, 2
    %v1056 = vmax.f32 %v1054, %v1055
    %v1057 = vrot.slane %v1056, 1
    %v1058 = vmax.f32 %v1056, %v1057
    %v1059 = vsel %vm890, %v640, -inf
    %v1060 = vrot.slane %v1059, 4
    %v1061 = vmax.f32 %v1059, %v1060
    %v1062 = vrot.slane %v1061, 2
    %v1063 = vmax.f32 %v1061, %v1062
    %v1064 = vrot.slane %v1063, 1
    %v1065 = vmax.f32 %v1063, %v1064
    %v1066 = vsel %vm890, %v716, -inf
    %v1067 = vrot.slane %v1066, 4
    %v1068 = vmax.f32 %v1066, %v1067
    %v1069 = vrot.slane %v1068, 2
    %v1070 = vmax.f32 %v1068, %v1069
    %v1071 = vrot.slane %v1070, 1
    %v1072 = vmax.f32 %v1070, %v1071
    %v1073 = vsel %vm890, %v717, -inf
    %v1074 = vrot.slane %v1073, 4
    %v1075 = vmax.f32 %v1073, %v1074
    %v1076 = vrot.slane %v1075, 2
    %v1077 = vmax.f32 %v1075, %v1076
    %v1078 = vrot.slane %v1077, 1
    %v1079 = vmax.f32 %v1077, %v1078
    %v1080 = vsel %vm890, %v718, -inf
    %v1081 = vrot.slane %v1080, 4
    %v1082 = vmax.f32 %v1080, %v1081
    %v1083 = vrot.slane %v1082, 2
    %v1084 = vmax.f32 %v1082, %v1083
    %v1085 = vrot.slane %v1084, 1
    %v1086 = vmax.f32 %v1084, %v1085
    %v1087 = vsel %vm890, %v641, -inf
    %v1088 = vrot.slane %v1087, 4
    %v1089 = vmax.f32 %v1087, %v1088
    %v1090 = vrot.slane %v1089, 2
    %v1091 = vmax.f32 %v1089, %v1090
    %v1092 = vrot.slane %v1091, 1
    %v1093 = vmax.f32 %v1091, %v1092
    %v1094 = vsel %vm890, %v719, -inf
    %v1095 = vrot.slane %v1094, 4
    %v1096 = vmax.f32 %v1094, %v1095
    %v1097 = vrot.slane %v1096, 2
    %v1098 = vmax.f32 %v1096, %v1097
    %v1099 = vrot.slane %v1098, 1
    %v1100 = vmax.f32 %v1098, %v1099
    %v1101 = vsel %vm890, %v720, -inf
    %v1102 = vrot.slane %v1101, 4
    %v1103 = vmax.f32 %v1101, %v1102
    %v1104 = vrot.slane %v1103, 2
    %v1105 = vmax.f32 %v1103, %v1104
    %v1106 = vrot.slane %v1105, 1
    %v1107 = vmax.f32 %v1105, %v1106
    %v1108 = vsel %vm890, %v721, -inf
    %v1109 = vrot.slane %v1108, 4
    %v1110 = vmax.f32 %v1108, %v1109
    %v1111 = vrot.slane %v1110, 2
    %v1112 = vmax.f32 %v1110, %v1111
    %v1113 = vrot.slane %v1112, 1
    %v1114 = vmax.f32 %v1112, %v1113
    %v1115 = vsel %vm890, %v642, -inf
    %v1116 = vrot.slane %v1115, 4
    %v1117 = vmax.f32 %v1115, %v1116
    %v1118 = vrot.slane %v1117, 2
    %v1119 = vmax.f32 %v1117, %v1118
    %v1120 = vrot.slane %v1119, 1
    %v1121 = vmax.f32 %v1119, %v1120
    %v1122 = vsel %vm890, %v722, -inf
    %v1123 = vrot.slane %v1122, 4
    %v1124 = vmax.f32 %v1122, %v1123
    %v1125 = vrot.slane %v1124, 2
    %v1126 = vmax.f32 %v1124, %v1125
    %v1127 = vrot.slane %v1126, 1
    %v1128 = vmax.f32 %v1126, %v1127
    %v1129 = vsel %vm890, %v723, -inf
    %v1130 = vrot.slane %v1129, 4
    %v1131 = vmax.f32 %v1129, %v1130
    %v1132 = vrot.slane %v1131, 2
    %v1133 = vmax.f32 %v1131, %v1132
    %v1134 = vrot.slane %v1133, 1
    %v1135 = vmax.f32 %v1133, %v1134
    %v1136 = vsel %vm890, %v724, -inf
    %v1137 = vrot.slane %v1136, 4
    %v1138 = vmax.f32 %v1136, %v1137
    %v1139 = vrot.slane %v1138, 2
    %v1140 = vmax.f32 %v1138, %v1139
    %v1141 = vrot.slane %v1140, 1
    %v1142 = vmax.f32 %v1140, %v1141
    %v1143 = vsel %vm890, %v643, -inf
    %v1144 = vrot.slane %v1143, 4
    %v1145 = vmax.f32 %v1143, %v1144
    %v1146 = vrot.slane %v1145, 2
    %v1147 = vmax.f32 %v1145, %v1146
    %v1148 = vrot.slane %v1147, 1
    %v1149 = vmax.f32 %v1147, %v1148
    %v1150 = vsel %vm890, %v725, -inf
    %v1151 = vrot.slane %v1150, 4
    %v1152 = vmax.f32 %v1150, %v1151
    %v1153 = vrot.slane %v1152, 2
    %v1154 = vmax.f32 %v1152, %v1153
    %v1155 = vrot.slane %v1154, 1
    %v1156 = vmax.f32 %v1154, %v1155
    %v1157 = vsel %vm890, %v726, -inf
    %v1158 = vrot.slane %v1157, 4
    %v1159 = vmax.f32 %v1157, %v1158
    %v1160 = vrot.slane %v1159, 2
    %v1161 = vmax.f32 %v1159, %v1160
    %v1162 = vrot.slane %v1161, 1
    %v1163 = vmax.f32 %v1161, %v1162
    %v1164 = vsel %vm890, %v727, -inf
    %v1165 = vrot.slane %v1164, 4
    %v1166 = vmax.f32 %v1164, %v1165
    %v1167 = vrot.slane %v1166, 2
    %v1168 = vmax.f32 %v1166, %v1167
    %v1169 = vrot.slane %v1168, 1
    %v1170 = vmax.f32 %v1168, %v1169
    %v1171 = vsel %vm890, %v644, -inf
    %v1172 = vrot.slane %v1171, 4
    %v1173 = vmax.f32 %v1171, %v1172
    %v1174 = vrot.slane %v1173, 2
    %v1175 = vmax.f32 %v1173, %v1174
    %v1176 = vrot.slane %v1175, 1
    %v1177 = vmax.f32 %v1175, %v1176
    %v1178 = vsel %vm890, %v728, -inf
    %v1179 = vrot.slane %v1178, 4
    %v1180 = vmax.f32 %v1178, %v1179
    %v1181 = vrot.slane %v1180, 2
    %v1182 = vmax.f32 %v1180, %v1181
    %v1183 = vrot.slane %v1182, 1
    %v1184 = vmax.f32 %v1182, %v1183
    %v1185 = vsel %vm890, %v729, -inf
    %v1186 = vrot.slane %v1185, 4
    %v1187 = vmax.f32 %v1185, %v1186
    %v1188 = vrot.slane %v1187, 2
    %v1189 = vmax.f32 %v1187, %v1188
    %v1190 = vrot.slane %v1189, 1
    %v1191 = vmax.f32 %v1189, %v1190
    %v1192 = vsel %vm890, %v730, -inf
    %v1193 = vrot.slane %v1192, 4
    %v1194 = vmax.f32 %v1192, %v1193
    %v1195 = vrot.slane %v1194, 2
    %v1196 = vmax.f32 %v1194, %v1195
    %v1197 = vrot.slane %v1196, 1
    %v1198 = vmax.f32 %v1196, %v1197
    %v1199 = vsel %vm890, %v645, -inf
    %v1200 = vrot.slane %v1199, 4
    %v1201 = vmax.f32 %v1199, %v1200
    %v1202 = vrot.slane %v1201, 2
    %v1203 = vmax.f32 %v1201, %v1202
    %v1204 = vrot.slane %v1203, 1
    %v1205 = vmax.f32 %v1203, %v1204
    %v1206 = vsel %vm890, %v731, -inf
    %v1207 = vrot.slane %v1206, 4
    %v1208 = vmax.f32 %v1206, %v1207
    %v1209 = vrot.slane %v1208, 2
    %v1210 = vmax.f32 %v1208, %v1209
    %v1211 = vrot.slane %v1210, 1
    %v1212 = vmax.f32 %v1210, %v1211
    %v1213 = vsel %vm890, %v732, -inf
    %v1214 = vrot.slane %v1213, 4
    %v1215 = vmax.f32 %v1213, %v1214
    %v1216 = vrot.slane %v1215, 2
    %v1217 = vmax.f32 %v1215, %v1216
    %v1218 = vrot.slane %v1217, 1
    %v1219 = vmax.f32 %v1217, %v1218
    %v1220 = vsel %vm890, %v733, -inf
    %v1221 = vrot.slane %v1220, 4
    %v1222 = vmax.f32 %v1220, %v1221
    %v1223 = vrot.slane %v1222, 2
    %v1224 = vmax.f32 %v1222, %v1223
    %v1225 = vrot.slane %v1224, 1
    %v1226 = vmax.f32 %v1224, %v1225
    %v1227 = vsel %vm890, %v646, -inf
    %v1228 = vrot.slane %v1227, 4
    %v1229 = vmax.f32 %v1227, %v1228
    %v1230 = vrot.slane %v1229, 2
    %v1231 = vmax.f32 %v1229, %v1230
    %v1232 = vrot.slane %v1231, 1
    %v1233 = vmax.f32 %v1231, %v1232
    %v1234 = vsel %vm890, %v734, -inf
    %v1235 = vrot.slane %v1234, 4
    %v1236 = vmax.f32 %v1234, %v1235
    %v1237 = vrot.slane %v1236, 2
    %v1238 = vmax.f32 %v1236, %v1237
    %v1239 = vrot.slane %v1238, 1
    %v1240 = vmax.f32 %v1238, %v1239
    %v1241 = vsel %vm890, %v735, -inf
    %v1242 = vrot.slane %v1241, 4
    %v1243 = vmax.f32 %v1241, %v1242
    %v1244 = vrot.slane %v1243, 2
    %v1245 = vmax.f32 %v1243, %v1244
    %v1246 = vrot.slane %v1245, 1
    %v1247 = vmax.f32 %v1245, %v1246
    %v1248 = vsel %vm890, %v736, -inf
    %v1249 = vrot.slane %v1248, 4
    %v1250 = vmax.f32 %v1248, %v1249
    %v1251 = vrot.slane %v1250, 2
    %v1252 = vmax.f32 %v1250, %v1251
    %v1253 = vrot.slane %v1252, 1
    %v1254 = vmax.f32 %v1252, %v1253
    %v1255 = vsel %vm890, %v647, -inf
    %v1256 = vrot.slane %v1255, 4
    %v1257 = vmax.f32 %v1255, %v1256
    %v1258 = vrot.slane %v1257, 2
    %v1259 = vmax.f32 %v1257, %v1258
    %v1260 = vrot.slane %v1259, 1
    %v1261 = vmax.f32 %v1259, %v1260
    %v1262 = vsel %vm890, %v737, -inf
    %v1263 = vrot.slane %v1262, 4
    %v1264 = vmax.f32 %v1262, %v1263
    %v1265 = vrot.slane %v1264, 2
    %v1266 = vmax.f32 %v1264, %v1265
    %v1267 = vrot.slane %v1266, 1
    %v1268 = vmax.f32 %v1266, %v1267
    %v1269 = vsel %vm890, %v738, -inf
    %v1270 = vrot.slane %v1269, 4
    %v1271 = vmax.f32 %v1269, %v1270
    %v1272 = vrot.slane %v1271, 2
    %v1273 = vmax.f32 %v1271, %v1272
    %v1274 = vrot.slane %v1273, 1
    %v1275 = vmax.f32 %v1273, %v1274
    %v1276 = vsel %vm890, %v739, -inf
    %v1277 = vrot.slane %v1276, 4
    %v1278 = vmax.f32 %v1276, %v1277
    %v1279 = vrot.slane %v1278, 2
    %v1280 = vmax.f32 %v1278, %v1279
    %v1281 = vrot.slane %v1280, 1
    %v1282 = vmax.f32 %v1280, %v1281
    %v1283 = vsel %vm890, %v648, -inf
    %v1284 = vrot.slane %v1283, 4
    %v1285 = vmax.f32 %v1283, %v1284
    %v1286 = vrot.slane %v1285, 2
    %v1287 = vmax.f32 %v1285, %v1286
    %v1288 = vrot.slane %v1287, 1
    %v1289 = vmax.f32 %v1287, %v1288
    %v1290 = vsel %vm890, %v740, -inf
    %v1291 = vrot.slane %v1290, 4
    %v1292 = vmax.f32 %v1290, %v1291
    %v1293 = vrot.slane %v1292, 2
    %v1294 = vmax.f32 %v1292, %v1293
    %v1295 = vrot.slane %v1294, 1
    %v1296 = vmax.f32 %v1294, %v1295
    %v1297 = vsel %vm890, %v741, -inf
    %v1298 = vrot.slane %v1297, 4
    %v1299 = vmax.f32 %v1297, %v1298
    %v1300 = vrot.slane %v1299, 2
    %v1301 = vmax.f32 %v1299, %v1300
    %v1302 = vrot.slane %v1301, 1
    %v1303 = vmax.f32 %v1301, %v1302
    %v1304 = vsel %vm890, %v742, -inf
    %v1305 = vrot.slane %v1304, 4
    %v1306 = vmax.f32 %v1304, %v1305
    %v1307 = vrot.slane %v1306, 2
    %v1308 = vmax.f32 %v1306, %v1307
    %v1309 = vrot.slane %v1308, 1
    %v1310 = vmax.f32 %v1308, %v1309
    %v1311 = vsel %vm890, %v649, -inf
    %v1312 = vrot.slane %v1311, 4
    %v1313 = vmax.f32 %v1311, %v1312
    %v1314 = vrot.slane %v1313, 2
    %v1315 = vmax.f32 %v1313, %v1314
    %v1316 = vrot.slane %v1315, 1
    %v1317 = vmax.f32 %v1315, %v1316
    %v1318 = vsel %vm890, %v743, -inf
    %v1319 = vrot.slane %v1318, 4
    %v1320 = vmax.f32 %v1318, %v1319
    %v1321 = vrot.slane %v1320, 2
    %v1322 = vmax.f32 %v1320, %v1321
    %v1323 = vrot.slane %v1322, 1
    %v1324 = vmax.f32 %v1322, %v1323
    %v1325 = vsel %vm890, %v744, -inf
    %v1326 = vrot.slane %v1325, 4
    %v1327 = vmax.f32 %v1325, %v1326
    %v1328 = vrot.slane %v1327, 2
    %v1329 = vmax.f32 %v1327, %v1328
    %v1330 = vrot.slane %v1329, 1
    %v1331 = vmax.f32 %v1329, %v1330
    %v1332 = vsel %vm890, %v745, -inf
    %v1333 = vrot.slane %v1332, 4
    %v1334 = vmax.f32 %v1332, %v1333
    %v1335 = vrot.slane %v1334, 2
    %v1336 = vmax.f32 %v1334, %v1335
    %v1337 = vrot.slane %v1336, 1
    %v1338 = vmax.f32 %v1336, %v1337
    %v1339 = vsel %vm890, %v650, -inf
    %v1340 = vrot.slane %v1339, 4
    %v1341 = vmax.f32 %v1339, %v1340
    %v1342 = vrot.slane %v1341, 2
    %v1343 = vmax.f32 %v1341, %v1342
    %v1344 = vrot.slane %v1343, 1
    %v1345 = vmax.f32 %v1343, %v1344
    %v1346 = vsel %vm890, %v746, -inf
    %v1347 = vrot.slane %v1346, 4
    %v1348 = vmax.f32 %v1346, %v1347
    %v1349 = vrot.slane %v1348, 2
    %v1350 = vmax.f32 %v1348, %v1349
    %v1351 = vrot.slane %v1350, 1
    %v1352 = vmax.f32 %v1350, %v1351
    %v1353 = vsel %vm890, %v747, -inf
    %v1354 = vrot.slane %v1353, 4
    %v1355 = vmax.f32 %v1353, %v1354
    %v1356 = vrot.slane %v1355, 2
    %v1357 = vmax.f32 %v1355, %v1356
    %v1358 = vrot.slane %v1357, 1
    %v1359 = vmax.f32 %v1357, %v1358
    %v1360 = vsel %vm890, %v748, -inf
    %v1361 = vrot.slane %v1360, 4
    %v1362 = vmax.f32 %v1360, %v1361
    %v1363 = vrot.slane %v1362, 2
    %v1364 = vmax.f32 %v1362, %v1363
    %v1365 = vrot.slane %v1364, 1
    %v1366 = vmax.f32 %v1364, %v1365
    %v1367 = vsel %vm890, %v651, -inf
    %v1368 = vrot.slane %v1367, 4
    %v1369 = vmax.f32 %v1367, %v1368
    %v1370 = vrot.slane %v1369, 2
    %v1371 = vmax.f32 %v1369, %v1370
    %v1372 = vrot.slane %v1371, 1
    %v1373 = vmax.f32 %v1371, %v1372
    %v1374 = vsel %vm890, %v749, -inf
    %v1375 = vrot.slane %v1374, 4
    %v1376 = vmax.f32 %v1374, %v1375
    %v1377 = vrot.slane %v1376, 2
    %v1378 = vmax.f32 %v1376, %v1377
    %v1379 = vrot.slane %v1378, 1
    %v1380 = vmax.f32 %v1378, %v1379
    %v1381 = vsel %vm890, %v750, -inf
    %v1382 = vrot.slane %v1381, 4
    %v1383 = vmax.f32 %v1381, %v1382
    %v1384 = vrot.slane %v1383, 2
    %v1385 = vmax.f32 %v1383, %v1384
    %v1386 = vrot.slane %v1385, 1
    %v1387 = vmax.f32 %v1385, %v1386
    %v1388 = vsel %vm890, %v751, -inf
    %v1389 = vrot.slane %v1388, 4
    %v1390 = vmax.f32 %v1388, %v1389
    %v1391 = vrot.slane %v1390, 2
    %v1392 = vmax.f32 %v1390, %v1391
    %v1393 = vrot.slane %v1392, 1
    %v1394 = vmax.f32 %v1392, %v1393
    %v1395 = vsel %vm890, %v652, -inf
    %v1396 = vrot.slane %v1395, 4
    %v1397 = vmax.f32 %v1395, %v1396
    %v1398 = vrot.slane %v1397, 2
    %v1399 = vmax.f32 %v1397, %v1398
    %v1400 = vrot.slane %v1399, 1
    %v1401 = vmax.f32 %v1399, %v1400
    %v1402 = vsel %vm890, %v752, -inf
    %v1403 = vrot.slane %v1402, 4
    %v1404 = vmax.f32 %v1402, %v1403
    %v1405 = vrot.slane %v1404, 2
    %v1406 = vmax.f32 %v1404, %v1405
    %v1407 = vrot.slane %v1406, 1
    %v1408 = vmax.f32 %v1406, %v1407
    %v1409 = vsel %vm890, %v753, -inf
    %v1410 = vrot.slane %v1409, 4
    %v1411 = vmax.f32 %v1409, %v1410
    %v1412 = vrot.slane %v1411, 2
    %v1413 = vmax.f32 %v1411, %v1412
    %v1414 = vrot.slane %v1413, 1
    %v1415 = vmax.f32 %v1413, %v1414
    %v1416 = vsel %vm890, %v754, -inf
    %v1417 = vrot.slane %v1416, 4
    %v1418 = vmax.f32 %v1416, %v1417
    %v1419 = vrot.slane %v1418, 2
    %v1420 = vmax.f32 %v1418, %v1419
    %v1421 = vrot.slane %v1420, 1
    %v1422 = vmax.f32 %v1420, %v1421
    %v1423 = vsel %vm890, %v653, -inf
    %v1424 = vrot.slane %v1423, 4
    %v1425 = vmax.f32 %v1423, %v1424
    %v1426 = vrot.slane %v1425, 2
    %v1427 = vmax.f32 %v1425, %v1426
    %v1428 = vrot.slane %v1427, 1
    %v1429 = vmax.f32 %v1427, %v1428
    %v1430 = vsel %vm890, %v755, -inf
    %v1431 = vrot.slane %v1430, 4
    %v1432 = vmax.f32 %v1430, %v1431
    %v1433 = vrot.slane %v1432, 2
    %v1434 = vmax.f32 %v1432, %v1433
    %v1435 = vrot.slane %v1434, 1
    %v1436 = vmax.f32 %v1434, %v1435
    %v1437 = vsel %vm890, %v756, -inf
    %v1438 = vrot.slane %v1437, 4
    %v1439 = vmax.f32 %v1437, %v1438
    %v1440 = vrot.slane %v1439, 2
    %v1441 = vmax.f32 %v1439, %v1440
    %v1442 = vrot.slane %v1441, 1
    %v1443 = vmax.f32 %v1441, %v1442
    %v1444 = vsel %vm890, %v757, -inf
    %v1445 = vrot.slane %v1444, 4
    %v1446 = vmax.f32 %v1444, %v1445
    %v1447 = vrot.slane %v1446, 2
    %v1448 = vmax.f32 %v1446, %v1447
    %v1449 = vrot.slane %v1448, 1
    %v1450 = vmax.f32 %v1448, %v1449
    %v1451 = vsel %vm890, %v654, -inf
    %v1452 = vrot.slane %v1451, 4
    %v1453 = vmax.f32 %v1451, %v1452
    %v1454 = vrot.slane %v1453, 2
    %v1455 = vmax.f32 %v1453, %v1454
    %v1456 = vrot.slane %v1455, 1
    %v1457 = vmax.f32 %v1455, %v1456
    %v1458 = vsel %vm890, %v758, -inf
    %v1459 = vrot.slane %v1458, 4
    %v1460 = vmax.f32 %v1458, %v1459
    %v1461 = vrot.slane %v1460, 2
    %v1462 = vmax.f32 %v1460, %v1461
    %v1463 = vrot.slane %v1462, 1
    %v1464 = vmax.f32 %v1462, %v1463
    %v1465 = vsel %vm890, %v759, -inf
    %v1466 = vrot.slane %v1465, 4
    %v1467 = vmax.f32 %v1465, %v1466
    %v1468 = vrot.slane %v1467, 2
    %v1469 = vmax.f32 %v1467, %v1468
    %v1470 = vrot.slane %v1469, 1
    %v1471 = vmax.f32 %v1469, %v1470
    %v1472 = vsel %vm890, %v760, -inf
    %v1473 = vrot.slane %v1472, 4
    %v1474 = vmax.f32 %v1472, %v1473
    %v1475 = vrot.slane %v1474, 2
    %v1476 = vmax.f32 %v1474, %v1475
    %v1477 = vrot.slane %v1476, 1
    %v1478 = vmax.f32 %v1476, %v1477
    %v1479 = vsel %vm890, %v655, -inf
    %v1480 = vrot.slane %v1479, 4
    %v1481 = vmax.f32 %v1479, %v1480
    %v1482 = vrot.slane %v1481, 2
    %v1483 = vmax.f32 %v1481, %v1482
    %v1484 = vrot.slane %v1483, 1
    %v1485 = vmax.f32 %v1483, %v1484
    %v1486 = vsel %vm890, %v761, -inf
    %v1487 = vrot.slane %v1486, 4
    %v1488 = vmax.f32 %v1486, %v1487
    %v1489 = vrot.slane %v1488, 2
    %v1490 = vmax.f32 %v1488, %v1489
    %v1491 = vrot.slane %v1490, 1
    %v1492 = vmax.f32 %v1490, %v1491
    %v1493 = vsel %vm890, %v762, -inf
    %v1494 = vrot.slane %v1493, 4
    %v1495 = vmax.f32 %v1493, %v1494
    %v1496 = vrot.slane %v1495, 2
    %v1497 = vmax.f32 %v1495, %v1496
    %v1498 = vrot.slane %v1497, 1
    %v1499 = vmax.f32 %v1497, %v1498
    %v1500 = vsel %vm890, %v763, -inf
    %v1501 = vrot.slane %v1500, 4
    %v1502 = vmax.f32 %v1500, %v1501
    %v1503 = vrot.slane %v1502, 2
    %v1504 = vmax.f32 %v1502, %v1503
    %v1505 = vrot.slane %v1504, 1
    %v1506 = vmax.f32 %v1504, %v1505
    %v1507 = vsel %vm890, %v656, -inf
    %v1508 = vrot.slane %v1507, 4
    %v1509 = vmax.f32 %v1507, %v1508
    %v1510 = vrot.slane %v1509, 2
    %v1511 = vmax.f32 %v1509, %v1510
    %v1512 = vrot.slane %v1511, 1
    %v1513 = vmax.f32 %v1511, %v1512
    %v1514 = vsel %vm890, %v764, -inf
    %v1515 = vrot.slane %v1514, 4
    %v1516 = vmax.f32 %v1514, %v1515
    %v1517 = vrot.slane %v1516, 2
    %v1518 = vmax.f32 %v1516, %v1517
    %v1519 = vrot.slane %v1518, 1
    %v1520 = vmax.f32 %v1518, %v1519
    %v1521 = vsel %vm890, %v765, -inf
    %v1522 = vrot.slane %v1521, 4
    %v1523 = vmax.f32 %v1521, %v1522
    %v1524 = vrot.slane %v1523, 2
    %v1525 = vmax.f32 %v1523, %v1524
    %v1526 = vrot.slane %v1525, 1
    %v1527 = vmax.f32 %v1525, %v1526
    %v1528 = vsel %vm890, %v766, -inf
    %v1529 = vrot.slane %v1528, 4
    %v1530 = vmax.f32 %v1528, %v1529
    %v1531 = vrot.slane %v1530, 2
    %v1532 = vmax.f32 %v1530, %v1531
    %v1533 = vrot.slane %v1532, 1
    %v1534 = vmax.f32 %v1532, %v1533
    %v1535 = vsel %vm890, %v657, -inf
    %v1536 = vrot.slane %v1535, 4
    %v1537 = vmax.f32 %v1535, %v1536
    %v1538 = vrot.slane %v1537, 2
    %v1539 = vmax.f32 %v1537, %v1538
    %v1540 = vrot.slane %v1539, 1
    %v1541 = vmax.f32 %v1539, %v1540
    %v1542 = vsel %vm890, %v767, -inf
    %v1543 = vrot.slane %v1542, 4
    %v1544 = vmax.f32 %v1542, %v1543
    %v1545 = vrot.slane %v1544, 2
    %v1546 = vmax.f32 %v1544, %v1545
    %v1547 = vrot.slane %v1546, 1
    %v1548 = vmax.f32 %v1546, %v1547
    %v1549 = vsel %vm890, %v768, -inf
    %v1550 = vrot.slane %v1549, 4
    %v1551 = vmax.f32 %v1549, %v1550
    %v1552 = vrot.slane %v1551, 2
    %v1553 = vmax.f32 %v1551, %v1552
    %v1554 = vrot.slane %v1553, 1
    %v1555 = vmax.f32 %v1553, %v1554
    %v1556 = vsel %vm890, %v769, -inf
    %v1557 = vrot.slane %v1556, 4
    %v1558 = vmax.f32 %v1556, %v1557
    %v1559 = vrot.slane %v1558, 2
    %v1560 = vmax.f32 %v1558, %v1559
    %v1561 = vrot.slane %v1560, 1
    %v1562 = vmax.f32 %v1560, %v1561
    %v1563 = vsel %vm890, %v658, -inf
    %v1564 = vrot.slane %v1563, 4
    %v1565 = vmax.f32 %v1563, %v1564
    %v1566 = vrot.slane %v1565, 2
    %v1567 = vmax.f32 %v1565, %v1566
    %v1568 = vrot.slane %v1567, 1
    %v1569 = vmax.f32 %v1567, %v1568
    %v1570 = vsel %vm890, %v770, -inf
    %v1571 = vrot.slane %v1570, 4
    %v1572 = vmax.f32 %v1570, %v1571
    %v1573 = vrot.slane %v1572, 2
    %v1574 = vmax.f32 %v1572, %v1573
    %v1575 = vrot.slane %v1574, 1
    %v1576 = vmax.f32 %v1574, %v1575
    %v1577 = vsel %vm890, %v771, -inf
    %v1578 = vrot.slane %v1577, 4
    %v1579 = vmax.f32 %v1577, %v1578
    %v1580 = vrot.slane %v1579, 2
    %v1581 = vmax.f32 %v1579, %v1580
    %v1582 = vrot.slane %v1581, 1
    %v1583 = vmax.f32 %v1581, %v1582
    %v1584 = vsel %vm890, %v772, -inf
    %v1585 = vrot.slane %v1584, 4
    %v1586 = vmax.f32 %v1584, %v1585
    %v1587 = vrot.slane %v1586, 2
    %v1588 = vmax.f32 %v1586, %v1587
    %v1589 = vrot.slane %v1588, 1
    %v1590 = vmax.f32 %v1588, %v1589
    %v1591 = vsel %vm890, %v659, -inf
    %v1592 = vrot.slane %v1591, 4
    %v1593 = vmax.f32 %v1591, %v1592
    %v1594 = vrot.slane %v1593, 2
    %v1595 = vmax.f32 %v1593, %v1594
    %v1596 = vrot.slane %v1595, 1
    %v1597 = vmax.f32 %v1595, %v1596
    %v1598 = vsel %vm890, %v773, -inf
    %v1599 = vrot.slane %v1598, 4
    %v1600 = vmax.f32 %v1598, %v1599
    %v1601 = vrot.slane %v1600, 2
    %v1602 = vmax.f32 %v1600, %v1601
    %v1603 = vrot.slane %v1602, 1
    %v1604 = vmax.f32 %v1602, %v1603
    %v1605 = vsel %vm890, %v774, -inf
    %v1606 = vrot.slane %v1605, 4
    %v1607 = vmax.f32 %v1605, %v1606
    %v1608 = vrot.slane %v1607, 2
    %v1609 = vmax.f32 %v1607, %v1608
    %v1610 = vrot.slane %v1609, 1
    %v1611 = vmax.f32 %v1609, %v1610
    %v1612 = vsel %vm890, %v775, -inf
    %v1613 = vrot.slane %v1612, 4
    %v1614 = vmax.f32 %v1612, %v1613
    %v1615 = vrot.slane %v1614, 2
    %v1616 = vmax.f32 %v1614, %v1615
    %v1617 = vrot.slane %v1616, 1
    %v1618 = vmax.f32 %v1616, %v1617
    %v1619 = vsel %vm890, %v660, -inf
    %v1620 = vrot.slane %v1619, 4
    %v1621 = vmax.f32 %v1619, %v1620
    %v1622 = vrot.slane %v1621, 2
    %v1623 = vmax.f32 %v1621, %v1622
    %v1624 = vrot.slane %v1623, 1
    %v1625 = vmax.f32 %v1623, %v1624
    %v1626 = vsel %vm890, %v776, -inf
    %v1627 = vrot.slane %v1626, 4
    %v1628 = vmax.f32 %v1626, %v1627
    %v1629 = vrot.slane %v1628, 2
    %v1630 = vmax.f32 %v1628, %v1629
    %v1631 = vrot.slane %v1630, 1
    %v1632 = vmax.f32 %v1630, %v1631
    %v1633 = vsel %vm890, %v777, -inf
    %v1634 = vrot.slane %v1633, 4
    %v1635 = vmax.f32 %v1633, %v1634
    %v1636 = vrot.slane %v1635, 2
    %v1637 = vmax.f32 %v1635, %v1636
    %v1638 = vrot.slane %v1637, 1
    %v1639 = vmax.f32 %v1637, %v1638
    %v1640 = vsel %vm890, %v778, -inf
    %v1641 = vrot.slane %v1640, 4
    %v1642 = vmax.f32 %v1640, %v1641
    %v1643 = vrot.slane %v1642, 2
    %v1644 = vmax.f32 %v1642, %v1643
    %v1645 = vrot.slane %v1644, 1
    %v1646 = vmax.f32 %v1644, %v1645
    %v1647 = vsel %vm890, %v661, -inf
    %v1648 = vrot.slane %v1647, 4
    %v1649 = vmax.f32 %v1647, %v1648
    %v1650 = vrot.slane %v1649, 2
    %v1651 = vmax.f32 %v1649, %v1650
    %v1652 = vrot.slane %v1651, 1
    %v1653 = vmax.f32 %v1651, %v1652
    %v1654 = vsel %vm890, %v779, -inf
    %v1655 = vrot.slane %v1654, 4
    %v1656 = vmax.f32 %v1654, %v1655
    %v1657 = vrot.slane %v1656, 2
    %v1658 = vmax.f32 %v1656, %v1657
    %v1659 = vrot.slane %v1658, 1
    %v1660 = vmax.f32 %v1658, %v1659
    %v1661 = vsel %vm890, %v780, -inf
    %v1662 = vrot.slane %v1661, 4
    %v1663 = vmax.f32 %v1661, %v1662
    %v1664 = vrot.slane %v1663, 2
    %v1665 = vmax.f32 %v1663, %v1664
    %v1666 = vrot.slane %v1665, 1
    %v1667 = vmax.f32 %v1665, %v1666
    %v1668 = vsel %vm890, %v781, -inf
    %v1669 = vrot.slane %v1668, 4
    %v1670 = vmax.f32 %v1668, %v1669
    %v1671 = vrot.slane %v1670, 2
    %v1672 = vmax.f32 %v1670, %v1671
    %v1673 = vrot.slane %v1672, 1
    %v1674 = vmax.f32 %v1672, %v1673
    %v1675 = vsel %vm890, %v662, -inf
    %v1676 = vrot.slane %v1675, 4
    %v1677 = vmax.f32 %v1675, %v1676
    %v1678 = vrot.slane %v1677, 2
    %v1679 = vmax.f32 %v1677, %v1678
    %v1680 = vrot.slane %v1679, 1
    %v1681 = vmax.f32 %v1679, %v1680
    %v1682 = vsel %vm890, %v782, -inf
    %v1683 = vrot.slane %v1682, 4
    %v1684 = vmax.f32 %v1682, %v1683
    %v1685 = vrot.slane %v1684, 2
    %v1686 = vmax.f32 %v1684, %v1685
    %v1687 = vrot.slane %v1686, 1
    %v1688 = vmax.f32 %v1686, %v1687
    %v1689 = vsel %vm890, %v783, -inf
    %v1690 = vrot.slane %v1689, 4
    %v1691 = vmax.f32 %v1689, %v1690
    %v1692 = vrot.slane %v1691, 2
    %v1693 = vmax.f32 %v1691, %v1692
    %v1694 = vrot.slane %v1693, 1
    %v1695 = vmax.f32 %v1693, %v1694
    %v1696 = vsel %vm890, %v784, -inf
    %v1697 = vrot.slane %v1696, 4
    %v1698 = vmax.f32 %v1696, %v1697
    %v1699 = vrot.slane %v1698, 2
    %v1700 = vmax.f32 %v1698, %v1699
    %v1701 = vrot.slane %v1700, 1
    %v1702 = vmax.f32 %v1700, %v1701
    %v1703 = vsel %vm890, %v663, -inf
    %v1704 = vrot.slane %v1703, 4
    %v1705 = vmax.f32 %v1703, %v1704
    %v1706 = vrot.slane %v1705, 2
    %v1707 = vmax.f32 %v1705, %v1706
    %v1708 = vrot.slane %v1707, 1
    %v1709 = vmax.f32 %v1707, %v1708
    %v1710 = vsel %vm890, %v785, -inf
    %v1711 = vrot.slane %v1710, 4
    %v1712 = vmax.f32 %v1710, %v1711
    %v1713 = vrot.slane %v1712, 2
    %v1714 = vmax.f32 %v1712, %v1713
    %v1715 = vrot.slane %v1714, 1
    %v1716 = vmax.f32 %v1714, %v1715
    %v1717 = vsel %vm890, %v786, -inf
    %v1718 = vrot.slane %v1717, 4
    %v1719 = vmax.f32 %v1717, %v1718
    %v1720 = vrot.slane %v1719, 2
    %v1721 = vmax.f32 %v1719, %v1720
    %v1722 = vrot.slane %v1721, 1
    %v1723 = vmax.f32 %v1721, %v1722
    %v1724 = vsel %vm890, %v787, -inf
    %v1725 = vrot.slane %v1724, 4
    %v1726 = vmax.f32 %v1724, %v1725
    %v1727 = vrot.slane %v1726, 2
    %v1728 = vmax.f32 %v1726, %v1727
    %v1729 = vrot.slane %v1728, 1
    %v1730 = vmax.f32 %v1728, %v1729
    %v1731 = vsel %vm890, %v664, -inf
    %v1732 = vrot.slane %v1731, 4
    %v1733 = vmax.f32 %v1731, %v1732
    %v1734 = vrot.slane %v1733, 2
    %v1735 = vmax.f32 %v1733, %v1734
    %v1736 = vrot.slane %v1735, 1
    %v1737 = vmax.f32 %v1735, %v1736
    %v1738 = vsel %vm890, %v788, -inf
    %v1739 = vrot.slane %v1738, 4
    %v1740 = vmax.f32 %v1738, %v1739
    %v1741 = vrot.slane %v1740, 2
    %v1742 = vmax.f32 %v1740, %v1741
    %v1743 = vrot.slane %v1742, 1
    %v1744 = vmax.f32 %v1742, %v1743
    %v1745 = vsel %vm890, %v789, -inf
    %v1746 = vrot.slane %v1745, 4
    %v1747 = vmax.f32 %v1745, %v1746
    %v1748 = vrot.slane %v1747, 2
    %v1749 = vmax.f32 %v1747, %v1748
    %v1750 = vrot.slane %v1749, 1
    %v1751 = vmax.f32 %v1749, %v1750
    %v1752 = vsel %vm890, %v790, -inf
    %v1753 = vrot.slane %v1752, 4
    %v1754 = vmax.f32 %v1752, %v1753
    %v1755 = vrot.slane %v1754, 2
    %v1756 = vmax.f32 %v1754, %v1755
    %v1757 = vrot.slane %v1756, 1
    %v1758 = vmax.f32 %v1756, %v1757
    %v1759 = vsel %vm890, %v665, -inf
    %v1760 = vrot.slane %v1759, 4
    %v1761 = vmax.f32 %v1759, %v1760
    %v1762 = vrot.slane %v1761, 2
    %v1763 = vmax.f32 %v1761, %v1762
    %v1764 = vrot.slane %v1763, 1
    %v1765 = vmax.f32 %v1763, %v1764
    %v1766 = vsel %vm890, %v791, -inf
    %v1767 = vrot.slane %v1766, 4
    %v1768 = vmax.f32 %v1766, %v1767
    %v1769 = vrot.slane %v1768, 2
    %v1770 = vmax.f32 %v1768, %v1769
    %v1771 = vrot.slane %v1770, 1
    %v1772 = vmax.f32 %v1770, %v1771
    %v1773 = vsel %vm890, %v792, -inf
    %v1774 = vrot.slane %v1773, 4
    %v1775 = vmax.f32 %v1773, %v1774
    %v1776 = vrot.slane %v1775, 2
    %v1777 = vmax.f32 %v1775, %v1776
    %v1778 = vrot.slane %v1777, 1
    %v1779 = vmax.f32 %v1777, %v1778
    %v1780 = vsel %vm890, %v793, -inf
    %v1781 = vrot.slane %v1780, 4
    %v1782 = vmax.f32 %v1780, %v1781
    %v1783 = vrot.slane %v1782, 2
    %v1784 = vmax.f32 %v1782, %v1783
    %v1785 = vrot.slane %v1784, 1
    %v1786 = vmax.f32 %v1784, %v1785
    %vm1787 = vcmask 257024
    %1788 = vst.msk [vmem:[#allocation2] sm:$0xf] %vm1787, 0
    %vm1789 = vcmask 253952
    %1790 = vst.msk [vmem:[#allocation2 + $0x4] sm:$0x1] %vm1789, 0
    %1791 = vst.msk [vmem:[#allocation2 + $0x50] sm:$0xf] %vm1787, 0
    %1792 = vst.msk [vmem:[#allocation2 + $0x54] sm:$0x1] %vm1789, 0
    %s1793 = scalar_lea.vmem [#allocation2], 72
    %1794 = vst.msk [vmem:[%s1793] sm:$0xf] %vm1787, 0
    %1795 = vst.msk [vmem:[%s1793 + $0x4] sm:$0x1] %vm1789, 0
    %1796 = vst.msk [vmem:[%s1793 + $0x50] sm:$0xf] %vm1787, 0
    %1797 = vst.msk [vmem:[%s1793 + $0x54] sm:$0x1] %vm1789, 0
    %vm1798 = vcmask 253952
    %vm1799 = vsmask.f32 256
    %vm1800 = vmand %vm1798, %vm1799
    %v1801 = vld [vmem:[#allocation2] sm:$0x1]
    %v1802 = vsel %vm1800, 0, %v1801
    %1803 = vst [vmem:[#allocation2] sm:$0x1] %v1802
    %v1804 = vld [vmem:[#allocation2 + $0x8] sm:$0x1]
    %v1805 = vsel %vm1800, 0, %v1804
    %1806 = vst [vmem:[#allocation2 + $0x8] sm:$0x1] %v1805
    %v1807 = vld [vmem:[#allocation2 + $0x10] sm:$0x1]
    %v1808 = vsel %vm1800, 0, %v1807
    %1809 = vst [vmem:[#allocation2 + $0x10] sm:$0x1] %v1808
    %v1810 = vld [vmem:[#allocation2 + $0x18] sm:$0x1]
    %v1811 = vsel %vm1800, 0, %v1810
    %1812 = vst [vmem:[#allocation2 + $0x18] sm:$0x1] %v1811
    %v1813 = vld [vmem:[#allocation2 + $0x20] sm:$0x1]
    %v1814 = vsel %vm1800, 0, %v1813
    %1815 = vst [vmem:[#allocation2 + $0x20] sm:$0x1] %v1814
    %v1816 = vld [vmem:[#allocation2 + $0x28] sm:$0x1]
    %v1817 = vsel %vm1800, 0, %v1816
    %1818 = vst [vmem:[#allocation2 + $0x28] sm:$0x1] %v1817
    %v1819 = vld [vmem:[#allocation2 + $0x30] sm:$0x1]
    %v1820 = vsel %vm1800, 0, %v1819
    %1821 = vst [vmem:[#allocation2 + $0x30] sm:$0x1] %v1820
    %v1822 = vld [vmem:[#allocation2 + $0x38] sm:$0x1]
    %v1823 = vsel %vm1800, 0, %v1822
    %1824 = vst [vmem:[#allocation2 + $0x38] sm:$0x1] %v1823
    %v1825 = vld [vmem:[#allocation2 + $0x40] sm:$0x1]
    %v1826 = vsel %vm1800, 0, %v1825
    %1827 = vst [vmem:[#allocation2 + $0x40] sm:$0x1] %v1826
    %v1828 = vld [vmem:[#allocation2 + $0x48] sm:$0x1]
    %v1829 = vsel %vm1800, 0, %v1828
    %1830 = vst [vmem:[#allocation2 + $0x48] sm:$0x1] %v1829
    %v1831 = vld [vmem:[#allocation2 + $0x50] sm:$0x1]
    %v1832 = vsel %vm1800, 0, %v1831
    %1833 = vst [vmem:[#allocation2 + $0x50] sm:$0x1] %v1832
    %v1834 = vld [vmem:[#allocation2 + $0x58] sm:$0x1]
    %v1835 = vsel %vm1800, 0, %v1834
    %1836 = vst [vmem:[#allocation2 + $0x58] sm:$0x1] %v1835
    %v1837 = vld [vmem:[#allocation2 + $0x60] sm:$0x1]
    %v1838 = vsel %vm1800, 0, %v1837
    %1839 = vst [vmem:[#allocation2 + $0x60] sm:$0x1] %v1838
    %v1840 = vld [vmem:[#allocation2 + $0x68] sm:$0x1]
    %v1841 = vsel %vm1800, 0, %v1840
    %1842 = vst [vmem:[#allocation2 + $0x68] sm:$0x1] %v1841
    %v1843 = vld [vmem:[#allocation2 + $0x70] sm:$0x1]
    %v1844 = vsel %vm1800, 0, %v1843
    %1845 = vst [vmem:[#allocation2 + $0x70] sm:$0x1] %v1844
    %v1846 = vld [vmem:[#allocation2 + $0x78] sm:$0x1]
    %v1847 = vsel %vm1800, 0, %v1846
    %1848 = vst [vmem:[#allocation2 + $0x78] sm:$0x1] %v1847
    %v1849 = vld [vmem:[#allocation2 + $0x80] sm:$0x1]
    %v1850 = vsel %vm1800, 0, %v1849
    %1851 = vst [vmem:[#allocation2 + $0x80] sm:$0x1] %v1850
    %v1852 = vld [vmem:[#allocation2 + $0x88] sm:$0x1]
    %v1853 = vsel %vm1800, 0, %v1852
    %1854 = vst [vmem:[#allocation2 + $0x88] sm:$0x1] %v1853
    %v1855 = vld [vmem:[#allocation2 + $0x90] sm:$0x1]
    %v1856 = vsel %vm1800, 0, %v1855
    %1857 = vst [vmem:[#allocation2 + $0x90] sm:$0x1] %v1856
    %v1858 = vld [vmem:[#allocation2 + $0x98] sm:$0x1]
    %v1859 = vsel %vm1800, 0, %v1858
    %1860 = vst [vmem:[#allocation2 + $0x98] sm:$0x1] %v1859
    %vm1861 = vsmask.f32 7938
    %vm1862 = vmand %vm1798, %vm1861
    %v1863 = vld [vmem:[#allocation2 + $0x4] sm:$0x1]
    %v1864 = vsel %vm1862, 0, %v1863
    %1865 = vst [vmem:[#allocation2 + $0x4] sm:$0x1] %v1864
    %v1866 = vld [vmem:[#allocation2 + $0xc] sm:$0x1]
    %v1867 = vsel %vm1862, 0, %v1866
    %1868 = vst [vmem:[#allocation2 + $0xc] sm:$0x1] %v1867
    %v1869 = vld [vmem:[#allocation2 + $0x14] sm:$0x1]
    %v1870 = vsel %vm1862, 0, %v1869
    %1871 = vst [vmem:[#allocation2 + $0x14] sm:$0x1] %v1870
    %v1872 = vld [vmem:[#allocation2 + $0x1c] sm:$0x1]
    %v1873 = vsel %vm1862, 0, %v1872
    %1874 = vst [vmem:[#allocation2 + $0x1c] sm:$0x1] %v1873
    %v1875 = vld [vmem:[#allocation2 + $0x24] sm:$0x1]
    %v1876 = vsel %vm1862, 0, %v1875
    %1877 = vst [vmem:[#allocation2 + $0x24] sm:$0x1] %v1876
    %v1878 = vld [vmem:[#allocation2 + $0x2c] sm:$0x1]
    %v1879 = vsel %vm1862, 0, %v1878
    %1880 = vst [vmem:[#allocation2 + $0x2c] sm:$0x1] %v1879
    %v1881 = vld [vmem:[#allocation2 + $0x34] sm:$0x1]
    %v1882 = vsel %vm1862, 0, %v1881
    %1883 = vst [vmem:[#allocation2 + $0x34] sm:$0x1] %v1882
    %v1884 = vld [vmem:[#allocation2 + $0x3c] sm:$0x1]
    %v1885 = vsel %vm1862, 0, %v1884
    %1886 = vst [vmem:[#allocation2 + $0x3c] sm:$0x1] %v1885
    %v1887 = vld [vmem:[#allocation2 + $0x44] sm:$0x1]
    %v1888 = vsel %vm1862, 0, %v1887
    %1889 = vst [vmem:[#allocation2 + $0x44] sm:$0x1] %v1888
    %v1890 = vld [vmem:[#allocation2 + $0x4c] sm:$0x1]
    %v1891 = vsel %vm1862, 0, %v1890
    %1892 = vst [vmem:[#allocation2 + $0x4c] sm:$0x1] %v1891
    %v1893 = vld [vmem:[#allocation2 + $0x54] sm:$0x1]
    %v1894 = vsel %vm1862, 0, %v1893
    %1895 = vst [vmem:[#allocation2 + $0x54] sm:$0x1] %v1894
    %v1896 = vld [vmem:[#allocation2 + $0x5c] sm:$0x1]
    %v1897 = vsel %vm1862, 0, %v1896
    %1898 = vst [vmem:[#allocation2 + $0x5c] sm:$0x1] %v1897
    %v1899 = vld [vmem:[#allocation2 + $0x64] sm:$0x1]
    %v1900 = vsel %vm1862, 0, %v1899
    %1901 = vst [vmem:[#allocation2 + $0x64] sm:$0x1] %v1900
    %v1902 = vld [vmem:[#allocation2 + $0x6c] sm:$0x1]
    %v1903 = vsel %vm1862, 0, %v1902
    %1904 = vst [vmem:[#allocation2 + $0x6c] sm:$0x1] %v1903
    %v1905 = vld [vmem:[#allocation2 + $0x74] sm:$0x1]
    %v1906 = vsel %vm1862, 0, %v1905
    %1907 = vst [vmem:[#allocation2 + $0x74] sm:$0x1] %v1906
    %v1908 = vld [vmem:[#allocation2 + $0x7c] sm:$0x1]
    %v1909 = vsel %vm1862, 0, %v1908
    %1910 = vst [vmem:[#allocation2 + $0x7c] sm:$0x1] %v1909
    %v1911 = vld [vmem:[#allocation2 + $0x84] sm:$0x1]
    %v1912 = vsel %vm1862, 0, %v1911
    %1913 = vst [vmem:[#allocation2 + $0x84] sm:$0x1] %v1912
    %v1914 = vld [vmem:[#allocation2 + $0x8c] sm:$0x1]
    %v1915 = vsel %vm1862, 0, %v1914
    %1916 = vst [vmem:[#allocation2 + $0x8c] sm:$0x1] %v1915
    %v1917 = vld [vmem:[#allocation2 + $0x94] sm:$0x1]
    %v1918 = vsel %vm1862, 0, %v1917
    %1919 = vst [vmem:[#allocation2 + $0x94] sm:$0x1] %v1918
    %v1920 = vld [vmem:[#allocation2 + $0x9c] sm:$0x1]
    %v1921 = vsel %vm1862, 0, %v1920
    %1922 = vst [vmem:[#allocation2 + $0x9c] sm:$0x1] %v1921
    %v1923 = vpack.c.bf16 %v897, %v897
    %v1924 = vpack.c.bf16 %v904, %v904
    %v1925 = vpack.c.bf16 %v911, %v911
    %v1926 = vpack.c.bf16 %v918, %v918
    %v1927 = vpack.c.bf16 %v925, %v925
    %v1928 = vpack.c.bf16 %v932, %v932
    %v1929 = vpack.c.bf16 %v939, %v939
    %v1930 = vpack.c.bf16 %v946, %v946
    %v1931 = vpack.c.bf16 %v953, %v953
    %v1932 = vpack.c.bf16 %v960, %v960
    %v1933 = vpack.c.bf16 %v967, %v967
    %v1934 = vpack.c.bf16 %v974, %v974
    %v1935 = vpack.c.bf16 %v981, %v981
    %v1936 = vpack.c.bf16 %v988, %v988
    %v1937 = vpack.c.bf16 %v995, %v995
    %v1938 = vpack.c.bf16 %v1002, %v1002
    %v1939 = vpack.c.bf16 %v1009, %v1009
    %v1940 = vpack.c.bf16 %v1016, %v1016
    %v1941 = vpack.c.bf16 %v1023, %v1023
    %v1942 = vpack.c.bf16 %v1030, %v1030
    %v1943 = vpack.c.bf16 %v1037, %v1037
    %v1944 = vpack.c.bf16 %v1044, %v1044
    %v1945 = vpack.c.bf16 %v1051, %v1051
    %v1946 = vpack.c.bf16 %v1058, %v1058
    %v1947 = vpack.c.bf16 %v1065, %v1065
    %v1948 = vpack.c.bf16 %v1072, %v1072
    %v1949 = vpack.c.bf16 %v1079, %v1079
    %v1950 = vpack.c.bf16 %v1086, %v1086
    %v1951 = vpack.c.bf16 %v1093, %v1093
    %v1952 = vpack.c.bf16 %v1100, %v1100
    %v1953 = vpack.c.bf16 %v1107, %v1107
    %v1954 = vpack.c.bf16 %v1114, %v1114
    %v1955 = vpack.c.bf16 %v1121, %v1121
    %v1956 = vpack.c.bf16 %v1128, %v1128
    %v1957 = vpack.c.bf16 %v1135, %v1135
    %v1958 = vpack.c.bf16 %v1142, %v1142
    %v1959 = vpack.c.bf16 %v1149, %v1149
    %v1960 = vpack.c.bf16 %v1156, %v1156
    %v1961 = vpack.c.bf16 %v1163, %v1163
    %v1962 = vpack.c.bf16 %v1170, %v1170
    %v1963 = vpack.c.bf16 %v1177, %v1177
    %v1964 = vpack.c.bf16 %v1184, %v1184
    %v1965 = vpack.c.bf16 %v1191, %v1191
    %v1966 = vpack.c.bf16 %v1198, %v1198
    %v1967 = vpack.c.bf16 %v1205, %v1205
    %v1968 = vpack.c.bf16 %v1212, %v1212
    %v1969 = vpack.c.bf16 %v1219, %v1219
    %v1970 = vpack.c.bf16 %v1226, %v1226
    %v1971 = vpack.c.bf16 %v1233, %v1233
    %v1972 = vpack.c.bf16 %v1240, %v1240
    %v1973 = vpack.c.bf16 %v1247, %v1247
    %v1974 = vpack.c.bf16 %v1254, %v1254
    %v1975 = vpack.c.bf16 %v1261, %v1261
    %v1976 = vpack.c.bf16 %v1268, %v1268
    %v1977 = vpack.c.bf16 %v1275, %v1275
    %v1978 = vpack.c.bf16 %v1282, %v1282
    %v1979 = vpack.c.bf16 %v1289, %v1289
    %v1980 = vpack.c.bf16 %v1296, %v1296
    %v1981 = vpack.c.bf16 %v1303, %v1303
    %v1982 = vpack.c.bf16 %v1310, %v1310
    %v1983 = vpack.c.bf16 %v1317, %v1317
    %v1984 = vpack.c.bf16 %v1324, %v1324
    %v1985 = vpack.c.bf16 %v1331, %v1331
    %v1986 = vpack.c.bf16 %v1338, %v1338
    %v1987 = vpack.c.bf16 %v1345, %v1345
    %v1988 = vpack.c.bf16 %v1352, %v1352
    %v1989 = vpack.c.bf16 %v1359, %v1359
    %v1990 = vpack.c.bf16 %v1366, %v1366
    %v1991 = vpack.c.bf16 %v1373, %v1373
    %v1992 = vpack.c.bf16 %v1380, %v1380
    %v1993 = vpack.c.bf16 %v1387, %v1387
    %v1994 = vpack.c.bf16 %v1394, %v1394
    %v1995 = vpack.c.bf16 %v1401, %v1401
    %v1996 = vpack.c.bf16 %v1408, %v1408
    %v1997 = vpack.c.bf16 %v1415, %v1415
    %v1998 = vpack.c.bf16 %v1422, %v1422
    %v1999 = vpack.c.bf16 %v1429, %v1429
    %v2000 = vpack.c.bf16 %v1436, %v1436
    %v2001 = vpack.c.bf16 %v1443, %v1443
    %v2002 = vpack.c.bf16 %v1450, %v1450
    %v2003 = vpack.c.bf16 %v1457, %v1457
    %v2004 = vpack.c.bf16 %v1464, %v1464
    %v2005 = vpack.c.bf16 %v1471, %v1471
    %v2006 = vpack.c.bf16 %v1478, %v1478
    %v2007 = vpack.c.bf16 %v1485, %v1485
    %v2008 = vpack.c.bf16 %v1492, %v1492
    %v2009 = vpack.c.bf16 %v1499, %v1499
    %v2010 = vpack.c.bf16 %v1506, %v1506
    %v2011 = vpack.c.bf16 %v1513, %v1513
    %v2012 = vpack.c.bf16 %v1520, %v1520
    %v2013 = vpack.c.bf16 %v1527, %v1527
    %v2014 = vpack.c.bf16 %v1534, %v1534
    %v2015 = vpack.c.bf16 %v1541, %v1541
    %v2016 = vpack.c.bf16 %v1548, %v1548
    %v2017 = vpack.c.bf16 %v1555, %v1555
    %v2018 = vpack.c.bf16 %v1562, %v1562
    %v2019 = vpack.c.bf16 %v1569, %v1569
    %v2020 = vpack.c.bf16 %v1576, %v1576
    %v2021 = vpack.c.bf16 %v1583, %v1583
    %v2022 = vpack.c.bf16 %v1590, %v1590
    %v2023 = vpack.c.bf16 %v1597, %v1597
    %v2024 = vpack.c.bf16 %v1604, %v1604
    %v2025 = vpack.c.bf16 %v1611, %v1611
    %v2026 = vpack.c.bf16 %v1618, %v1618
    %v2027 = vpack.c.bf16 %v1625, %v1625
    %v2028 = vpack.c.bf16 %v1632, %v1632
    %v2029 = vpack.c.bf16 %v1639, %v1639
    %v2030 = vpack.c.bf16 %v1646, %v1646
    %v2031 = vpack.c.bf16 %v1653, %v1653
    %v2032 = vpack.c.bf16 %v1660, %v1660
    %v2033 = vpack.c.bf16 %v1667, %v1667
    %v2034 = vpack.c.bf16 %v1674, %v1674
    %v2035 = vpack.c.bf16 %v1681, %v1681
    %v2036 = vpack.c.bf16 %v1688, %v1688
    %v2037 = vpack.c.bf16 %v1695, %v1695
    %v2038 = vpack.c.bf16 %v1702, %v1702
    %v2039 = vpack.c.bf16 %v1709, %v1709
    %v2040 = vpack.c.bf16 %v1716, %v1716
    %v2041 = vpack.c.bf16 %v1723, %v1723
    %v2042 = vpack.c.bf16 %v1730, %v1730
    %v2043 = vpack.c.bf16 %v1737, %v1737
    %v2044 = vpack.c.bf16 %v1744, %v1744
    %v2045 = vpack.c.bf16 %v1751, %v1751
    %v2046 = vpack.c.bf16 %v1758, %v1758
    %v2047 = vpack.c.bf16 %v1765, %v1765
    %v2048 = vpack.c.bf16 %v1772, %v1772
    %v2049 = vpack.c.bf16 %v1779, %v1779
    %v2050 = vpack.c.bf16 %v1786, %v1786
    %v2179 = vunpack.c.l.b16 %v1923
    %v2180 = vunpack.c.l.b16 %v1924
    %v2181 = vunpack.c.l.b16 %v1925
    %v2182 = vunpack.c.l.b16 %v1926
    %v2183 = vunpack.c.l.b16 %v1927
    %v2184 = vunpack.c.l.b16 %v1928
    %v2185 = vunpack.c.l.b16 %v1929
    %v2186 = vunpack.c.l.b16 %v1930
    %v2187 = vunpack.c.l.b16 %v1931
    %v2188 = vunpack.c.l.b16 %v1932
    %v2189 = vunpack.c.l.b16 %v1933
    %v2190 = vunpack.c.l.b16 %v1934
    %v2191 = vunpack.c.l.b16 %v1935
    %v2192 = vunpack.c.l.b16 %v1936
    %v2193 = vunpack.c.l.b16 %v1937
    %v2194 = vunpack.c.l.b16 %v1938
    %v2195 = vunpack.c.l.b16 %v1939
    %v2196 = vunpack.c.l.b16 %v1940
    %v2197 = vunpack.c.l.b16 %v1941
    %v2198 = vunpack.c.l.b16 %v1942
    %v2199 = vunpack.c.l.b16 %v1943
    %v2200 = vunpack.c.l.b16 %v1944
    %v2201 = vunpack.c.l.b16 %v1945
    %v2202 = vunpack.c.l.b16 %v1946
    %v2203 = vunpack.c.l.b16 %v1947
    %v2204 = vunpack.c.l.b16 %v1948
    %v2205 = vunpack.c.l.b16 %v1949
    %v2206 = vunpack.c.l.b16 %v1950
    %v2207 = vunpack.c.l.b16 %v1951
    %v2208 = vunpack.c.l.b16 %v1952
    %v2209 = vunpack.c.l.b16 %v1953
    %v2210 = vunpack.c.l.b16 %v1954
    %v2211 = vunpack.c.l.b16 %v1955
    %v2212 = vunpack.c.l.b16 %v1956
    %v2213 = vunpack.c.l.b16 %v1957
    %v2214 = vunpack.c.l.b16 %v1958
    %v2215 = vunpack.c.l.b16 %v1959
    %v2216 = vunpack.c.l.b16 %v1960
    %v2217 = vunpack.c.l.b16 %v1961
    %v2218 = vunpack.c.l.b16 %v1962
    %v2219 = vunpack.c.l.b16 %v1963
    %v2220 = vunpack.c.l.b16 %v1964
    %v2221 = vunpack.c.l.b16 %v1965
    %v2222 = vunpack.c.l.b16 %v1966
    %v2223 = vunpack.c.l.b16 %v1967
    %v2224 = vunpack.c.l.b16 %v1968
    %v2225 = vunpack.c.l.b16 %v1969
    %v2226 = vunpack.c.l.b16 %v1970
    %v2227 = vunpack.c.l.b16 %v1971
    %v2228 = vunpack.c.l.b16 %v1972
    %v2229 = vunpack.c.l.b16 %v1973
    %v2230 = vunpack.c.l.b16 %v1974
    %v2231 = vunpack.c.l.b16 %v1975
    %v2232 = vunpack.c.l.b16 %v1976
    %v2233 = vunpack.c.l.b16 %v1977
    %v2234 = vunpack.c.l.b16 %v1978
    %v2235 = vunpack.c.l.b16 %v1979
    %v2236 = vunpack.c.l.b16 %v1980
    %v2237 = vunpack.c.l.b16 %v1981
    %v2238 = vunpack.c.l.b16 %v1982
    %v2239 = vunpack.c.l.b16 %v1983
    %v2240 = vunpack.c.l.b16 %v1984
    %v2241 = vunpack.c.l.b16 %v1985
    %v2242 = vunpack.c.l.b16 %v1986
    %v2243 = vunpack.c.l.b16 %v1987
    %v2244 = vunpack.c.l.b16 %v1988
    %v2245 = vunpack.c.l.b16 %v1989
    %v2246 = vunpack.c.l.b16 %v1990
    %v2247 = vunpack.c.l.b16 %v1991
    %v2248 = vunpack.c.l.b16 %v1992
    %v2249 = vunpack.c.l.b16 %v1993
    %v2250 = vunpack.c.l.b16 %v1994
    %v2251 = vunpack.c.l.b16 %v1995
    %v2252 = vunpack.c.l.b16 %v1996
    %v2253 = vunpack.c.l.b16 %v1997
    %v2254 = vunpack.c.l.b16 %v1998
    %v2255 = vunpack.c.l.b16 %v1999
    %v2256 = vunpack.c.l.b16 %v2000
    %v2257 = vunpack.c.l.b16 %v2001
    %v2258 = vunpack.c.l.b16 %v2002
    %v2259 = vunpack.c.l.b16 %v2003
    %v2260 = vunpack.c.l.b16 %v2004
    %v2261 = vunpack.c.l.b16 %v2005
    %v2262 = vunpack.c.l.b16 %v2006
    %v2263 = vunpack.c.l.b16 %v2007
    %v2264 = vunpack.c.l.b16 %v2008
    %v2265 = vunpack.c.l.b16 %v2009
    %v2266 = vunpack.c.l.b16 %v2010
    %v2267 = vunpack.c.l.b16 %v2011
    %v2268 = vunpack.c.l.b16 %v2012
    %v2269 = vunpack.c.l.b16 %v2013
    %v2270 = vunpack.c.l.b16 %v2014
    %v2271 = vunpack.c.l.b16 %v2015
    %v2272 = vunpack.c.l.b16 %v2016
    %v2273 = vunpack.c.l.b16 %v2017
    %v2274 = vunpack.c.l.b16 %v2018
    %v2275 = vunpack.c.l.b16 %v2019
    %v2276 = vunpack.c.l.b16 %v2020
    %v2277 = vunpack.c.l.b16 %v2021
    %v2278 = vunpack.c.l.b16 %v2022
    %v2279 = vunpack.c.l.b16 %v2023
    %v2280 = vunpack.c.l.b16 %v2024
    %v2281 = vunpack.c.l.b16 %v2025
    %v2282 = vunpack.c.l.b16 %v2026
    %v2283 = vunpack.c.l.b16 %v2027
    %v2284 = vunpack.c.l.b16 %v2028
    %v2285 = vunpack.c.l.b16 %v2029
    %v2286 = vunpack.c.l.b16 %v2030
    %v2287 = vunpack.c.l.b16 %v2031
    %v2288 = vunpack.c.l.b16 %v2032
    %v2289 = vunpack.c.l.b16 %v2033
    %v2290 = vunpack.c.l.b16 %v2034
    %v2291 = vunpack.c.l.b16 %v2035
    %v2292 = vunpack.c.l.b16 %v2036
    %v2293 = vunpack.c.l.b16 %v2037
    %v2294 = vunpack.c.l.b16 %v2038
    %v2295 = vunpack.c.l.b16 %v2039
    %v2296 = vunpack.c.l.b16 %v2040
    %v2297 = vunpack.c.l.b16 %v2041
    %v2298 = vunpack.c.l.b16 %v2042
    %v2299 = vunpack.c.l.b16 %v2043
    %v2300 = vunpack.c.l.b16 %v2044
    %v2301 = vunpack.c.l.b16 %v2045
    %v2302 = vunpack.c.l.b16 %v2046
    %v2303 = vunpack.c.l.b16 %v2047
    %v2304 = vunpack.c.l.b16 %v2048
    %v2305 = vunpack.c.l.b16 %v2049
    %v2306 = vunpack.c.l.b16 %v2050
    %vm2307 = vcmask 1042434
    %v2308 = vsel %vm2307, %v2180, %v2179
    %vm2309 = vcmask 1043459
    %v2310 = vsel %vm2309, %v2181, %v2308
    %vm2311 = vcmask 1044484
    %v2312 = vsel %vm2311, %v2182, %v2310
    %vm2313 = vcmask 1045509
    %v2314 = vsel %vm2313, %v2183, %v2312
    %vm2315 = vcmask 1046534
    %v2316 = vsel %vm2315, %v2184, %v2314
    %vm2317 = vcmask 1047559
    %v2318 = vsel %vm2317, %v2185, %v2316
    %v2319 = vsel %vm2307, %v2188, %v2187
    %v2320 = vsel %vm2309, %v2189, %v2319
    %v2321 = vsel %vm2311, %v2190, %v2320
    %v2322 = vsel %vm2313, %v2191, %v2321
    %v2323 = vsel %vm2315, %v2192, %v2322
    %v2324 = vsel %vm2317, %v2193, %v2323
    %v2325 = vsel %vm2307, %v2196, %v2195
    %v2326 = vsel %vm2309, %v2197, %v2325
    %v2327 = vsel %vm2311, %v2198, %v2326
    %v2328 = vsel %vm2313, %v2199, %v2327
    %v2329 = vsel %vm2315, %v2200, %v2328
    %v2330 = vsel %vm2317, %v2201, %v2329
    %v2331 = vsel %vm2307, %v2204, %v2203
    %v2332 = vsel %vm2309, %v2205, %v2331
    %v2333 = vsel %vm2311, %v2206, %v2332
    %v2334 = vsel %vm2313, %v2207, %v2333
    %v2335 = vsel %vm2315, %v2208, %v2334
    %v2336 = vsel %vm2317, %v2209, %v2335
    %v2337 = vsel %vm2307, %v2212, %v2211
    %v2338 = vsel %vm2309, %v2213, %v2337
    %v2339 = vsel %vm2311, %v2214, %v2338
    %v2340 = vsel %vm2313, %v2215, %v2339
    %v2341 = vsel %vm2315, %v2216, %v2340
    %v2342 = vsel %vm2317, %v2217, %v2341
    %v2343 = vsel %vm2307, %v2220, %v2219
    %v2344 = vsel %vm2309, %v2221, %v2343
    %v2345 = vsel %vm2311, %v2222, %v2344
    %v2346 = vsel %vm2313, %v2223, %v2345
    %v2347 = vsel %vm2315, %v2224, %v2346
    %v2348 = vsel %vm2317, %v2225, %v2347
    %v2349 = vsel %vm2307, %v2228, %v2227
    %v2350 = vsel %vm2309, %v2229, %v2349
    %v2351 = vsel %vm2311, %v2230, %v2350
    %v2352 = vsel %vm2313, %v2231, %v2351
    %v2353 = vsel %vm2315, %v2232, %v2352
    %v2354 = vsel %vm2317, %v2233, %v2353
    %v2355 = vsel %vm2307, %v2236, %v2235
    %v2356 = vsel %vm2309, %v2237, %v2355
    %v2357 = vsel %vm2311, %v2238, %v2356
    %v2358 = vsel %vm2313, %v2239, %v2357
    %v2359 = vsel %vm2315, %v2240, %v2358
    %v2360 = vsel %vm2317, %v2241, %v2359
    %v2361 = vsel %vm2307, %v2244, %v2243
    %v2362 = vsel %vm2309, %v2245, %v2361
    %v2363 = vsel %vm2311, %v2246, %v2362
    %v2364 = vsel %vm2313, %v2247, %v2363
    %v2365 = vsel %vm2315, %v2248, %v2364
    %v2366 = vsel %vm2317, %v2249, %v2365
    %v2367 = vsel %vm2307, %v2252, %v2251
    %v2368 = vsel %vm2309, %v2253, %v2367
    %v2369 = vsel %vm2311, %v2254, %v2368
    %v2370 = vsel %vm2313, %v2255, %v2369
    %v2371 = vsel %vm2315, %v2256, %v2370
    %v2372 = vsel %vm2317, %v2257, %v2371
    %v2373 = vsel %vm2307, %v2260, %v2259
    %v2374 = vsel %vm2309, %v2261, %v2373
    %v2375 = vsel %vm2311, %v2262, %v2374
    %v2376 = vsel %vm2313, %v2263, %v2375
    %v2377 = vsel %vm2315, %v2264, %v2376
    %v2378 = vsel %vm2317, %v2265, %v2377
    %v2379 = vsel %vm2307, %v2268, %v2267
    %v2380 = vsel %vm2309, %v2269, %v2379
    %v2381 = vsel %vm2311, %v2270, %v2380
    %v2382 = vsel %vm2313, %v2271, %v2381
    %v2383 = vsel %vm2315, %v2272, %v2382
    %v2384 = vsel %vm2317, %v2273, %v2383
    %v2385 = vsel %vm2307, %v2276, %v2275
    %v2386 = vsel %vm2309, %v2277, %v2385
    %v2387 = vsel %vm2311, %v2278, %v2386
    %v2388 = vsel %vm2313, %v2279, %v2387
    %v2389 = vsel %vm2315, %v2280, %v2388
    %v2390 = vsel %vm2317, %v2281, %v2389
    %v2391 = vsel %vm2307, %v2284, %v2283
    %v2392 = vsel %vm2309, %v2285, %v2391
    %v2393 = vsel %vm2311, %v2286, %v2392
    %v2394 = vsel %vm2313, %v2287, %v2393
    %v2395 = vsel %vm2315, %v2288, %v2394
    %v2396 = vsel %vm2317, %v2289, %v2395
    %v2397 = vsel %vm2307, %v2292, %v2291
    %v2398 = vsel %vm2309, %v2293, %v2397
    %v2399 = vsel %vm2311, %v2294, %v2398
    %v2400 = vsel %vm2313, %v2295, %v2399
    %v2401 = vsel %vm2315, %v2296, %v2400
    %v2402 = vsel %vm2317, %v2297, %v2401
    %v2403 = vsel %vm2307, %v2300, %v2299
    %v2404 = vsel %vm2309, %v2301, %v2403
    %v2405 = vsel %vm2311, %v2302, %v2404
    %v2406 = vsel %vm2313, %v2303, %v2405
    %v2407 = vsel %vm2315, %v2304, %v2406
    %v2408 = vsel %vm2317, %v2305, %v2407
    %v2409 = vpack.c.b16 %v2318, %v2318
    %v2410 = vpack.c.b16 %v2186, %v2186
    %v2411 = vpack.c.b16 %v2324, %v2324
    %v2412 = vpack.c.b16 %v2194, %v2194
    %v2413 = vpack.c.b16 %v2330, %v2330
    %v2414 = vpack.c.b16 %v2202, %v2202
    %v2415 = vpack.c.b16 %v2336, %v2336
    %v2416 = vpack.c.b16 %v2210, %v2210
    %v2417 = vpack.c.b16 %v2342, %v2342
    %v2418 = vpack.c.b16 %v2218, %v2218
    %v2419 = vpack.c.b16 %v2348, %v2348
    %v2420 = vpack.c.b16 %v2226, %v2226
    %v2421 = vpack.c.b16 %v2354, %v2354
    %v2422 = vpack.c.b16 %v2234, %v2234
    %v2423 = vpack.c.b16 %v2360, %v2360
    %v2424 = vpack.c.b16 %v2242, %v2242
    %v2425 = vpack.c.b16 %v2366, %v2366
    %v2426 = vpack.c.b16 %v2250, %v2250
    %v2427 = vpack.c.b16 %v2372, %v2372
    %v2428 = vpack.c.b16 %v2258, %v2258
    %v2429 = vpack.c.b16 %v2378, %v2378
    %v2430 = vpack.c.b16 %v2266, %v2266
    %v2431 = vpack.c.b16 %v2384, %v2384
    %v2432 = vpack.c.b16 %v2274, %v2274
    %v2433 = vpack.c.b16 %v2390, %v2390
    %v2434 = vpack.c.b16 %v2282, %v2282
    %v2435 = vpack.c.b16 %v2396, %v2396
    %v2436 = vpack.c.b16 %v2290, %v2290
    %v2437 = vpack.c.b16 %v2402, %v2402
    %v2438 = vpack.c.b16 %v2298, %v2298
    %v2439 = vpack.c.b16 %v2408, %v2408
    %v2440 = vpack.c.b16 %v2306, %v2306
    %s2473 = scalar_lea.vmem [#allocation2], 8
    %vm2474 = vcmask 257024
    %vm2475 = vmand %vm2474, %vm1861
    %v2476 = vld [vmem:[%s2473] sm:$0xf]
    %v2477 = vsel %vm2475, %v2409, %v2476
    %2478 = vst [vmem:[%s2473] sm:$0xf] %v2477
    %v2479 = vld [vmem:[%s2473 + $0x4] sm:$0x1]
    %v2480 = vsel %vm1800, %v2410, %v2479
    %2481 = vst [vmem:[%s2473 + $0x4] sm:$0x1] %v2480
    %v2482 = vld [vmem:[%s2473 + $0x8] sm:$0xf]
    %v2483 = vsel %vm2475, %v2411, %v2482
    %2484 = vst [vmem:[%s2473 + $0x8] sm:$0xf] %v2483
    %v2485 = vld [vmem:[%s2473 + $0xc] sm:$0x1]
    %v2486 = vsel %vm1800, %v2412, %v2485
    %2487 = vst [vmem:[%s2473 + $0xc] sm:$0x1] %v2486
    %v2488 = vld [vmem:[%s2473 + $0x10] sm:$0xf]
    %v2489 = vsel %vm2475, %v2413, %v2488
    %2490 = vst [vmem:[%s2473 + $0x10] sm:$0xf] %v2489
    %v2491 = vld [vmem:[%s2473 + $0x14] sm:$0x1]
    %v2492 = vsel %vm1800, %v2414, %v2491
    %2493 = vst [vmem:[%s2473 + $0x14] sm:$0x1] %v2492
    %v2494 = vld [vmem:[%s2473 + $0x18] sm:$0xf]
    %v2495 = vsel %vm2475, %v2415, %v2494
    %2496 = vst [vmem:[%s2473 + $0x18] sm:$0xf] %v2495
    %v2497 = vld [vmem:[%s2473 + $0x1c] sm:$0x1]
    %v2498 = vsel %vm1800, %v2416, %v2497
    %2499 = vst [vmem:[%s2473 + $0x1c] sm:$0x1] %v2498
    %v2500 = vld [vmem:[%s2473 + $0x20] sm:$0xf]
    %v2501 = vsel %vm2475, %v2417, %v2500
    %2502 = vst [vmem:[%s2473 + $0x20] sm:$0xf] %v2501
    %v2503 = vld [vmem:[%s2473 + $0x24] sm:$0x1]
    %v2504 = vsel %vm1800, %v2418, %v2503
    %2505 = vst [vmem:[%s2473 + $0x24] sm:$0x1] %v2504
    %v2506 = vld [vmem:[%s2473 + $0x28] sm:$0xf]
    %v2507 = vsel %vm2475, %v2419, %v2506
    %2508 = vst [vmem:[%s2473 + $0x28] sm:$0xf] %v2507
    %v2509 = vld [vmem:[%s2473 + $0x2c] sm:$0x1]
    %v2510 = vsel %vm1800, %v2420, %v2509
    %2511 = vst [vmem:[%s2473 + $0x2c] sm:$0x1] %v2510
    %v2512 = vld [vmem:[%s2473 + $0x30] sm:$0xf]
    %v2513 = vsel %vm2475, %v2421, %v2512
    %2514 = vst [vmem:[%s2473 + $0x30] sm:$0xf] %v2513
    %v2515 = vld [vmem:[%s2473 + $0x34] sm:$0x1]
    %v2516 = vsel %vm1800, %v2422, %v2515
    %2517 = vst [vmem:[%s2473 + $0x34] sm:$0x1] %v2516
    %v2518 = vld [vmem:[%s2473 + $0x38] sm:$0xf]
    %v2519 = vsel %vm2475, %v2423, %v2518
    %2520 = vst [vmem:[%s2473 + $0x38] sm:$0xf] %v2519
    %v2521 = vld [vmem:[%s2473 + $0x3c] sm:$0x1]
    %v2522 = vsel %vm1800, %v2424, %v2521
    %2523 = vst [vmem:[%s2473 + $0x3c] sm:$0x1] %v2522
    %v2524 = vld [vmem:[%s2473 + $0x50] sm:$0xf]
    %v2525 = vsel %vm2475, %v2425, %v2524
    %2526 = vst [vmem:[%s2473 + $0x50] sm:$0xf] %v2525
    %v2527 = vld [vmem:[%s2473 + $0x54] sm:$0x1]
    %v2528 = vsel %vm1800, %v2426, %v2527
    %2529 = vst [vmem:[%s2473 + $0x54] sm:$0x1] %v2528
    %v2530 = vld [vmem:[%s2473 + $0x58] sm:$0xf]
    %v2531 = vsel %vm2475, %v2427, %v2530
    %2532 = vst [vmem:[%s2473 + $0x58] sm:$0xf] %v2531
    %v2533 = vld [vmem:[%s2473 + $0x5c] sm:$0x1]
    %v2534 = vsel %vm1800, %v2428, %v2533
    %2535 = vst [vmem:[%s2473 + $0x5c] sm:$0x1] %v2534
    %v2536 = vld [vmem:[%s2473 + $0x60] sm:$0xf]
    %v2537 = vsel %vm2475, %v2429, %v2536
    %2538 = vst [vmem:[%s2473 + $0x60] sm:$0xf] %v2537
    %v2539 = vld [vmem:[%s2473 + $0x64] sm:$0x1]
    %v2540 = vsel %vm1800, %v2430, %v2539
    %2541 = vst [vmem:[%s2473 + $0x64] sm:$0x1] %v2540
    %v2542 = vld [vmem:[%s2473 + $0x68] sm:$0xf]
    %v2543 = vsel %vm2475, %v2431, %v2542
    %2544 = vst [vmem:[%s2473 + $0x68] sm:$0xf] %v2543
    %v2545 = vld [vmem:[%s2473 + $0x6c] sm:$0x1]
    %v2546 = vsel %vm1800, %v2432, %v2545
    %2547 = vst [vmem:[%s2473 + $0x6c] sm:$0x1] %v2546
    %v2548 = vld [vmem:[%s2473 + $0x70] sm:$0xf]
    %v2549 = vsel %vm2475, %v2433, %v2548
    %2550 = vst [vmem:[%s2473 + $0x70] sm:$0xf] %v2549
    %v2551 = vld [vmem:[%s2473 + $0x74] sm:$0x1]
    %v2552 = vsel %vm1800, %v2434, %v2551
    %2553 = vst [vmem:[%s2473 + $0x74] sm:$0x1] %v2552
    %v2554 = vld [vmem:[%s2473 + $0x78] sm:$0xf]
    %v2555 = vsel %vm2475, %v2435, %v2554
    %2556 = vst [vmem:[%s2473 + $0x78] sm:$0xf] %v2555
    %v2557 = vld [vmem:[%s2473 + $0x7c] sm:$0x1]
    %v2558 = vsel %vm1800, %v2436, %v2557
    %2559 = vst [vmem:[%s2473 + $0x7c] sm:$0x1] %v2558
    %v2560 = vld [vmem:[%s2473 + $0x80] sm:$0xf]
    %v2561 = vsel %vm2475, %v2437, %v2560
    %2562 = vst [vmem:[%s2473 + $0x80] sm:$0xf] %v2561
    %v2563 = vld [vmem:[%s2473 + $0x84] sm:$0x1]
    %v2564 = vsel %vm1800, %v2438, %v2563
    %2565 = vst [vmem:[%s2473 + $0x84] sm:$0x1] %v2564
    %v2566 = vld [vmem:[%s2473 + $0x88] sm:$0xf]
    %v2567 = vsel %vm2475, %v2439, %v2566
    %2568 = vst [vmem:[%s2473 + $0x88] sm:$0xf] %v2567
    %v2569 = vld [vmem:[%s2473 + $0x8c] sm:$0x1]
    %v2570 = vsel %vm1800, %v2440, %v2569
    %2571 = vst [vmem:[%s2473 + $0x8c] sm:$0x1] %v2570
    %v2572 = vld [vmem:[#allocation2] sm:$0xf]
    %v2573 = vld [vmem:[#allocation2 + $0x8] sm:$0xf]
    %v2574 = vld [vmem:[#allocation2 + $0x10] sm:$0xf]
    %v2575 = vld [vmem:[#allocation2 + $0x18] sm:$0xf]
    %v2576 = vld [vmem:[#allocation2 + $0x20] sm:$0xf]
    %v2577 = vld [vmem:[#allocation2 + $0x28] sm:$0xf]
    %v2578 = vld [vmem:[#allocation2 + $0x30] sm:$0xf]
    %v2579 = vld [vmem:[#allocation2 + $0x38] sm:$0xf]
    %v2580 = vld [vmem:[#allocation2 + $0x50] sm:$0xf]
    %v2581 = vld [vmem:[#allocation2 + $0x58] sm:$0xf]
    %v2582 = vld [vmem:[#allocation2 + $0x60] sm:$0xf]
    %v2583 = vld [vmem:[#allocation2 + $0x68] sm:$0xf]
    %v2584 = vld [vmem:[#allocation2 + $0x70] sm:$0xf]
    %v2585 = vld [vmem:[#allocation2 + $0x78] sm:$0xf]
    %v2586 = vld [vmem:[#allocation2 + $0x80] sm:$0xf]
    %v2587 = vld [vmem:[#allocation2 + $0x88] sm:$0xf]
    %v2588 = vld [vmem:[#allocation2 + $0x4] sm:$0x1]
    %v2589 = vld [vmem:[#allocation2 + $0xc] sm:$0x1]
    %v2590 = vld [vmem:[#allocation2 + $0x14] sm:$0x1]
    %v2591 = vld [vmem:[#allocation2 + $0x1c] sm:$0x1]
    %v2592 = vld [vmem:[#allocation2 + $0x24] sm:$0x1]
    %v2593 = vld [vmem:[#allocation2 + $0x2c] sm:$0x1]
    %v2594 = vld [vmem:[#allocation2 + $0x34] sm:$0x1]
    %v2595 = vld [vmem:[#allocation2 + $0x3c] sm:$0x1]
    %v2596 = vld [vmem:[#allocation2 + $0x54] sm:$0x1]
    %v2597 = vld [vmem:[#allocation2 + $0x5c] sm:$0x1]
    %v2598 = vld [vmem:[#allocation2 + $0x64] sm:$0x1]
    %v2599 = vld [vmem:[#allocation2 + $0x6c] sm:$0x1]
    %v2600 = vld [vmem:[#allocation2 + $0x74] sm:$0x1]
    %v2601 = vld [vmem:[#allocation2 + $0x7c] sm:$0x1]
    %v2602 = vld [vmem:[#allocation2 + $0x84] sm:$0x1]
    %v2603 = vld [vmem:[#allocation2 + $0x8c] sm:$0x1]
    %vm2604 = vsmask.f32 3328
    %vm2605 = vsmask.f32 7440
    %vm2606 = vmor %vm2604, %vm2605
    %v2608 = vshrl.u32 %v2572, 16
    %v2610 = vrot.slane %v2608, 4
    %v2611 = vshll.u32 %v2572, 16
    %v2613 = vrot.slane %v2611, 5
    %v2614 = vor.u32 %v2610, %v2613
    %v2615 = vrot.slane %v2614, 4
    %v2617 = vshll.u32 %v2588, 16
    %v2619 = vrot.slane %v2617, 5
    %v2620 = vsel %vm2606, %v2615, %v2619
    %v2622 = vshrl.u32 %v2573, 16
    %v2624 = vrot.slane %v2622, 4
    %v2625 = vshll.u32 %v2573, 16
    %v2627 = vrot.slane %v2625, 5
    %v2628 = vor.u32 %v2624, %v2627
    %v2629 = vrot.slane %v2628, 4
    %v2631 = vshll.u32 %v2589, 16
    %v2633 = vrot.slane %v2631, 5
    %v2634 = vsel %vm2606, %v2629, %v2633
    %v2636 = vshrl.u32 %v2574, 16
    %v2638 = vrot.slane %v2636, 4
    %v2639 = vshll.u32 %v2574, 16
    %v2641 = vrot.slane %v2639, 5
    %v2642 = vor.u32 %v2638, %v2641
    %v2643 = vrot.slane %v2642, 4
    %v2645 = vshll.u32 %v2590, 16
    %v2647 = vrot.slane %v2645, 5
    %v2648 = vsel %vm2606, %v2643, %v2647
    %v2650 = vshrl.u32 %v2575, 16
    %v2652 = vrot.slane %v2650, 4
    %v2653 = vshll.u32 %v2575, 16
    %v2655 = vrot.slane %v2653, 5
    %v2656 = vor.u32 %v2652, %v2655
    %v2657 = vrot.slane %v2656, 4
    %v2659 = vshll.u32 %v2591, 16
    %v2661 = vrot.slane %v2659, 5
    %v2662 = vsel %vm2606, %v2657, %v2661
    %v2664 = vshrl.u32 %v2576, 16
    %v2666 = vrot.slane %v2664, 4
    %v2667 = vshll.u32 %v2576, 16
    %v2669 = vrot.slane %v2667, 5
    %v2670 = vor.u32 %v2666, %v2669
    %v2671 = vrot.slane %v2670, 4
    %v2673 = vshll.u32 %v2592, 16
    %v2675 = vrot.slane %v2673, 5
    %v2676 = vsel %vm2606, %v2671, %v2675
    %v2678 = vshrl.u32 %v2577, 16
    %v2680 = vrot.slane %v2678, 4
    %v2681 = vshll.u32 %v2577, 16
    %v2683 = vrot.slane %v2681, 5
    %v2684 = vor.u32 %v2680, %v2683
    %v2685 = vrot.slane %v2684, 4
    %v2687 = vshll.u32 %v2593, 16
    %v2689 = vrot.slane %v2687, 5
    %v2690 = vsel %vm2606, %v2685, %v2689
    %v2692 = vshrl.u32 %v2578, 16
    %v2694 = vrot.slane %v2692, 4
    %v2695 = vshll.u32 %v2578, 16
    %v2697 = vrot.slane %v2695, 5
    %v2698 = vor.u32 %v2694, %v2697
    %v2699 = vrot.slane %v2698, 4
    %v2701 = vshll.u32 %v2594, 16
    %v2703 = vrot.slane %v2701, 5
    %v2704 = vsel %vm2606, %v2699, %v2703
    %v2706 = vshrl.u32 %v2579, 16
    %v2708 = vrot.slane %v2706, 4
    %v2709 = vshll.u32 %v2579, 16
    %v2711 = vrot.slane %v2709, 5
    %v2712 = vor.u32 %v2708, %v2711
    %v2713 = vrot.slane %v2712, 4
    %v2715 = vshll.u32 %v2595, 16
    %v2717 = vrot.slane %v2715, 5
    %v2718 = vsel %vm2606, %v2713, %v2717
    %v2720 = vshrl.u32 %v2580, 16
    %v2722 = vrot.slane %v2720, 4
    %v2723 = vshll.u32 %v2580, 16
    %v2725 = vrot.slane %v2723, 5
    %v2726 = vor.u32 %v2722, %v2725
    %v2727 = vrot.slane %v2726, 4
    %v2729 = vshll.u32 %v2596, 16
    %v2731 = vrot.slane %v2729, 5
    %v2732 = vsel %vm2606, %v2727, %v2731
    %v2734 = vshrl.u32 %v2581, 16
    %v2736 = vrot.slane %v2734, 4
    %v2737 = vshll.u32 %v2581, 16
    %v2739 = vrot.slane %v2737, 5
    %v2740 = vor.u32 %v2736, %v2739
    %v2741 = vrot.slane %v2740, 4
    %v2743 = vshll.u32 %v2597, 16
    %v2745 = vrot.slane %v2743, 5
    %v2746 = vsel %vm2606, %v2741, %v2745
    %v2748 = vshrl.u32 %v2582, 16
    %v2750 = vrot.slane %v2748, 4
    %v2751 = vshll.u32 %v2582, 16
    %v2753 = vrot.slane %v2751, 5
    %v2754 = vor.u32 %v2750, %v2753
    %v2755 = vrot.slane %v2754, 4
    %v2757 = vshll.u32 %v2598, 16
    %v2759 = vrot.slane %v2757, 5
    %v2760 = vsel %vm2606, %v2755, %v2759
    %v2762 = vshrl.u32 %v2583, 16
    %v2764 = vrot.slane %v2762, 4
    %v2765 = vshll.u32 %v2583, 16
    %v2767 = vrot.slane %v2765, 5
    %v2768 = vor.u32 %v2764, %v2767
    %v2769 = vrot.slane %v2768, 4
    %v2771 = vshll.u32 %v2599, 16
    %v2773 = vrot.slane %v2771, 5
    %v2774 = vsel %vm2606, %v2769, %v2773
    %v2776 = vshrl.u32 %v2584, 16
    %v2778 = vrot.slane %v2776, 4
    %v2779 = vshll.u32 %v2584, 16
    %v2781 = vrot.slane %v2779, 5
    %v2782 = vor.u32 %v2778, %v2781
    %v2783 = vrot.slane %v2782, 4
    %v2785 = vshll.u32 %v2600, 16
    %v2787 = vrot.slane %v2785, 5
    %v2788 = vsel %vm2606, %v2783, %v2787
    %v2790 = vshrl.u32 %v2585, 16
    %v2792 = vrot.slane %v2790, 4
    %v2793 = vshll.u32 %v2585, 16
    %v2795 = vrot.slane %v2793, 5
    %v2796 = vor.u32 %v2792, %v2795
    %v2797 = vrot.slane %v2796, 4
    %v2799 = vshll.u32 %v2601, 16
    %v2801 = vrot.slane %v2799, 5
    %v2802 = vsel %vm2606, %v2797, %v2801
    %v2804 = vshrl.u32 %v2586, 16
    %v2806 = vrot.slane %v2804, 4
    %v2807 = vshll.u32 %v2586, 16
    %v2809 = vrot.slane %v2807, 5
    %v2810 = vor.u32 %v2806, %v2809
    %v2811 = vrot.slane %v2810, 4
    %v2813 = vshll.u32 %v2602, 16
    %v2815 = vrot.slane %v2813, 5
    %v2816 = vsel %vm2606, %v2811, %v2815
    %v2818 = vshrl.u32 %v2587, 16
    %v2820 = vrot.slane %v2818, 4
    %v2821 = vshll.u32 %v2587, 16
    %v2823 = vrot.slane %v2821, 5
    %v2824 = vor.u32 %v2820, %v2823
    %v2825 = vrot.slane %v2824, 4
    %v2827 = vshll.u32 %v2603, 16
    %v2829 = vrot.slane %v2827, 5
    %v2830 = vsel %vm2606, %v2825, %v2829
    %v2831 = vld [vmem:[#allocation2] sm:$0xe]
    %v2832 = vld [vmem:[#allocation2 + $0x8] sm:$0xe]
    %v2833 = vld [vmem:[#allocation2 + $0x10] sm:$0xe]
    %v2834 = vld [vmem:[#allocation2 + $0x18] sm:$0xe]
    %v2835 = vld [vmem:[#allocation2 + $0x20] sm:$0xe]
    %v2836 = vld [vmem:[#allocation2 + $0x28] sm:$0xe]
    %v2837 = vld [vmem:[#allocation2 + $0x30] sm:$0xe]
    %v2838 = vld [vmem:[#allocation2 + $0x38] sm:$0xe]
    %v2839 = vld [vmem:[#allocation2 + $0x50] sm:$0xe]
    %v2840 = vld [vmem:[#allocation2 + $0x58] sm:$0xe]
    %v2841 = vld [vmem:[#allocation2 + $0x60] sm:$0xe]
    %v2842 = vld [vmem:[#allocation2 + $0x68] sm:$0xe]
    %v2843 = vld [vmem:[#allocation2 + $0x70] sm:$0xe]
    %v2844 = vld [vmem:[#allocation2 + $0x78] sm:$0xe]
    %v2845 = vld [vmem:[#allocation2 + $0x80] sm:$0xe]
    %v2846 = vld [vmem:[#allocation2 + $0x88] sm:$0xe]
    %vm2879 = vcmask 1042432
    %vm2880 = vcmask 1046532
    %vm2881 = vmor %vm2879, %vm2880
    %v2882 = vrot.slane %v2831, 5
    %v2883 = vrot.slane %v2882, 4
    %v2884 = vrot.slane %v2588, 5
    %v2885 = vsel %vm2881, %v2883, %v2884
    %v2886 = vrot.slane %v2832, 5
    %v2887 = vrot.slane %v2886, 4
    %v2888 = vrot.slane %v2589, 5
    %v2889 = vsel %vm2881, %v2887, %v2888
    %v2890 = vrot.slane %v2833, 5
    %v2891 = vrot.slane %v2890, 4
    %v2892 = vrot.slane %v2590, 5
    %v2893 = vsel %vm2881, %v2891, %v2892
    %v2894 = vrot.slane %v2834, 5
    %v2895 = vrot.slane %v2894, 4
    %v2896 = vrot.slane %v2591, 5
    %v2897 = vsel %vm2881, %v2895, %v2896
    %v2898 = vrot.slane %v2835, 5
    %v2899 = vrot.slane %v2898, 4
    %v2900 = vrot.slane %v2592, 5
    %v2901 = vsel %vm2881, %v2899, %v2900
    %v2902 = vrot.slane %v2836, 5
    %v2903 = vrot.slane %v2902, 4
    %v2904 = vrot.slane %v2593, 5
    %v2905 = vsel %vm2881, %v2903, %v2904
    %v2906 = vrot.slane %v2837, 5
    %v2907 = vrot.slane %v2906, 4
    %v2908 = vrot.slane %v2594, 5
    %v2909 = vsel %vm2881, %v2907, %v2908
    %v2910 = vrot.slane %v2838, 5
    %v2911 = vrot.slane %v2910, 4
    %v2912 = vrot.slane %v2595, 5
    %v2913 = vsel %vm2881, %v2911, %v2912
    %v2914 = vrot.slane %v2839, 5
    %v2915 = vrot.slane %v2914, 4
    %v2916 = vrot.slane %v2596, 5
    %v2917 = vsel %vm2881, %v2915, %v2916
    %v2918 = vrot.slane %v2840, 5
    %v2919 = vrot.slane %v2918, 4
    %v2920 = vrot.slane %v2597, 5
    %v2921 = vsel %vm2881, %v2919, %v2920
    %v2922 = vrot.slane %v2841, 5
    %v2923 = vrot.slane %v2922, 4
    %v2924 = vrot.slane %v2598, 5
    %v2925 = vsel %vm2881, %v2923, %v2924
    %v2926 = vrot.slane %v2842, 5
    %v2927 = vrot.slane %v2926, 4
    %v2928 = vrot.slane %v2599, 5
    %v2929 = vsel %vm2881, %v2927, %v2928
    %v2930 = vrot.slane %v2843, 5
    %v2931 = vrot.slane %v2930, 4
    %v2932 = vrot.slane %v2600, 5
    %v2933 = vsel %vm2881, %v2931, %v2932
    %v2934 = vrot.slane %v2844, 5
    %v2935 = vrot.slane %v2934, 4
    %v2936 = vrot.slane %v2601, 5
    %v2937 = vsel %vm2881, %v2935, %v2936
    %v2938 = vrot.slane %v2845, 5
    %v2939 = vrot.slane %v2938, 4
    %v2940 = vrot.slane %v2602, 5
    %v2941 = vsel %vm2881, %v2939, %v2940
    %v2942 = vrot.slane %v2846, 5
    %v2943 = vrot.slane %v2942, 4
    %v2944 = vrot.slane %v2603, 5
    %v2945 = vsel %vm2881, %v2943, %v2944
    %v2946 = vld [vmem:[%s2473] sm:$0xf]
    %v2947 = vld [vmem:[%s2473 + $0x8] sm:$0xf]
    %v2948 = vld [vmem:[%s2473 + $0x10] sm:$0xf]
    %v2949 = vld [vmem:[%s2473 + $0x18] sm:$0xf]
    %v2950 = vld [vmem:[%s2473 + $0x20] sm:$0xf]
    %v2951 = vld [vmem:[%s2473 + $0x28] sm:$0xf]
    %v2952 = vld [vmem:[%s2473 + $0x30] sm:$0xf]
    %v2953 = vld [vmem:[%s2473 + $0x38] sm:$0xf]
    %v2954 = vld [vmem:[%s2473 + $0x50] sm:$0xf]
    %v2955 = vld [vmem:[%s2473 + $0x58] sm:$0xf]
    %v2956 = vld [vmem:[%s2473 + $0x60] sm:$0xf]
    %v2957 = vld [vmem:[%s2473 + $0x68] sm:$0xf]
    %v2958 = vld [vmem:[%s2473 + $0x70] sm:$0xf]
    %v2959 = vld [vmem:[%s2473 + $0x78] sm:$0xf]
    %v2960 = vld [vmem:[%s2473 + $0x80] sm:$0xf]
    %v2961 = vld [vmem:[%s2473 + $0x88] sm:$0xf]
    %v2962 = vld [vmem:[%s2473 + $0x4] sm:$0x1]
    %v2963 = vld [vmem:[%s2473 + $0xc] sm:$0x1]
    %v2964 = vld [vmem:[%s2473 + $0x14] sm:$0x1]
    %v2965 = vld [vmem:[%s2473 + $0x1c] sm:$0x1]
    %v2966 = vld [vmem:[%s2473 + $0x24] sm:$0x1]
    %v2967 = vld [vmem:[%s2473 + $0x2c] sm:$0x1]
    %v2968 = vld [vmem:[%s2473 + $0x34] sm:$0x1]
    %v2969 = vld [vmem:[%s2473 + $0x3c] sm:$0x1]
    %v2970 = vld [vmem:[%s2473 + $0x54] sm:$0x1]
    %v2971 = vld [vmem:[%s2473 + $0x5c] sm:$0x1]
    %v2972 = vld [vmem:[%s2473 + $0x64] sm:$0x1]
    %v2973 = vld [vmem:[%s2473 + $0x6c] sm:$0x1]
    %v2974 = vld [vmem:[%s2473 + $0x74] sm:$0x1]
    %v2975 = vld [vmem:[%s2473 + $0x7c] sm:$0x1]
    %v2976 = vld [vmem:[%s2473 + $0x84] sm:$0x1]
    %v2977 = vld [vmem:[%s2473 + $0x8c] sm:$0x1]
    %v2979 = vshrl.u32 %v2946, 16
    %v2981 = vrot.slane %v2979, 4
    %v2982 = vshll.u32 %v2946, 16
    %v2984 = vrot.slane %v2982, 5
    %v2985 = vor.u32 %v2981, %v2984
    %v2986 = vrot.slane %v2985, 4
    %v2988 = vshll.u32 %v2962, 16
    %v2990 = vrot.slane %v2988, 5
    %v2991 = vsel %vm2606, %v2986, %v2990
    %v2993 = vshrl.u32 %v2947, 16
    %v2995 = vrot.slane %v2993, 4
    %v2996 = vshll.u32 %v2947, 16
    %v2998 = vrot.slane %v2996, 5
    %v2999 = vor.u32 %v2995, %v2998
    %v3000 = vrot.slane %v2999, 4
    %v3002 = vshll.u32 %v2963, 16
    %v3004 = vrot.slane %v3002, 5
    %v3005 = vsel %vm2606, %v3000, %v3004
    %v3007 = vshrl.u32 %v2948, 16
    %v3009 = vrot.slane %v3007, 4
    %v3010 = vshll.u32 %v2948, 16
    %v3012 = vrot.slane %v3010, 5
    %v3013 = vor.u32 %v3009, %v3012
    %v3014 = vrot.slane %v3013, 4
    %v3016 = vshll.u32 %v2964, 16
    %v3018 = vrot.slane %v3016, 5
    %v3019 = vsel %vm2606, %v3014, %v3018
    %v3021 = vshrl.u32 %v2949, 16
    %v3023 = vrot.slane %v3021, 4
    %v3024 = vshll.u32 %v2949, 16
    %v3026 = vrot.slane %v3024, 5
    %v3027 = vor.u32 %v3023, %v3026
    %v3028 = vrot.slane %v3027, 4
    %v3030 = vshll.u32 %v2965, 16
    %v3032 = vrot.slane %v3030, 5
    %v3033 = vsel %vm2606, %v3028, %v3032
    %v3035 = vshrl.u32 %v2950, 16
    %v3037 = vrot.slane %v3035, 4
    %v3038 = vshll.u32 %v2950, 16
    %v3040 = vrot.slane %v3038, 5
    %v3041 = vor.u32 %v3037, %v3040
    %v3042 = vrot.slane %v3041, 4
    %v3044 = vshll.u32 %v2966, 16
    %v3046 = vrot.slane %v3044, 5
    %v3047 = vsel %vm2606, %v3042, %v3046
    %v3049 = vshrl.u32 %v2951, 16
    %v3051 = vrot.slane %v3049, 4
    %v3052 = vshll.u32 %v2951, 16
    %v3054 = vrot.slane %v3052, 5
    %v3055 = vor.u32 %v3051, %v3054
    %v3056 = vrot.slane %v3055, 4
    %v3058 = vshll.u32 %v2967, 16
    %v3060 = vrot.slane %v3058, 5
    %v3061 = vsel %vm2606, %v3056, %v3060
    %v3063 = vshrl.u32 %v2952, 16
    %v3065 = vrot.slane %v3063, 4
    %v3066 = vshll.u32 %v2952, 16
    %v3068 = vrot.slane %v3066, 5
    %v3069 = vor.u32 %v3065, %v3068
    %v3070 = vrot.slane %v3069, 4
    %v3072 = vshll.u32 %v2968, 16
    %v3074 = vrot.slane %v3072, 5
    %v3075 = vsel %vm2606, %v3070, %v3074
    %v3077 = vshrl.u32 %v2953, 16
    %v3079 = vrot.slane %v3077, 4
    %v3080 = vshll.u32 %v2953, 16
    %v3082 = vrot.slane %v3080, 5
    %v3083 = vor.u32 %v3079, %v3082
    %v3084 = vrot.slane %v3083, 4
    %v3086 = vshll.u32 %v2969, 16
    %v3088 = vrot.slane %v3086, 5
    %v3089 = vsel %vm2606, %v3084, %v3088
    %v3091 = vshrl.u32 %v2954, 16
    %v3093 = vrot.slane %v3091, 4
    %v3094 = vshll.u32 %v2954, 16
    %v3096 = vrot.slane %v3094, 5
    %v3097 = vor.u32 %v3093, %v3096
    %v3098 = vrot.slane %v3097, 4
    %v3100 = vshll.u32 %v2970, 16
    %v3102 = vrot.slane %v3100, 5
    %v3103 = vsel %vm2606, %v3098, %v3102
    %v3105 = vshrl.u32 %v2955, 16
    %v3107 = vrot.slane %v3105, 4
    %v3108 = vshll.u32 %v2955, 16
    %v3110 = vrot.slane %v3108, 5
    %v3111 = vor.u32 %v3107, %v3110
    %v3112 = vrot.slane %v3111, 4
    %v3114 = vshll.u32 %v2971, 16
    %v3116 = vrot.slane %v3114, 5
    %v3117 = vsel %vm2606, %v3112, %v3116
    %v3119 = vshrl.u32 %v2956, 16
    %v3121 = vrot.slane %v3119, 4
    %v3122 = vshll.u32 %v2956, 16
    %v3124 = vrot.slane %v3122, 5
    %v3125 = vor.u32 %v3121, %v3124
    %v3126 = vrot.slane %v3125, 4
    %v3128 = vshll.u32 %v2972, 16
    %v3130 = vrot.slane %v3128, 5
    %v3131 = vsel %vm2606, %v3126, %v3130
    %v3133 = vshrl.u32 %v2957, 16
    %v3135 = vrot.slane %v3133, 4
    %v3136 = vshll.u32 %v2957, 16
    %v3138 = vrot.slane %v3136, 5
    %v3139 = vor.u32 %v3135, %v3138
    %v3140 = vrot.slane %v3139, 4
    %v3142 = vshll.u32 %v2973, 16
    %v3144 = vrot.slane %v3142, 5
    %v3145 = vsel %vm2606, %v3140, %v3144
    %v3147 = vshrl.u32 %v2958, 16
    %v3149 = vrot.slane %v3147, 4
    %v3150 = vshll.u32 %v2958, 16
    %v3152 = vrot.slane %v3150, 5
    %v3153 = vor.u32 %v3149, %v3152
    %v3154 = vrot.slane %v3153, 4
    %v3156 = vshll.u32 %v2974, 16
    %v3158 = vrot.slane %v3156, 5
    %v3159 = vsel %vm2606, %v3154, %v3158
    %v3161 = vshrl.u32 %v2959, 16
    %v3163 = vrot.slane %v3161, 4
    %v3164 = vshll.u32 %v2959, 16
    %v3166 = vrot.slane %v3164, 5
    %v3167 = vor.u32 %v3163, %v3166
    %v3168 = vrot.slane %v3167, 4
    %v3170 = vshll.u32 %v2975, 16
    %v3172 = vrot.slane %v3170, 5
    %v3173 = vsel %vm2606, %v3168, %v3172
    %v3175 = vshrl.u32 %v2960, 16
    %v3177 = vrot.slane %v3175, 4
    %v3178 = vshll.u32 %v2960, 16
    %v3180 = vrot.slane %v3178, 5
    %v3181 = vor.u32 %v3177, %v3180
    %v3182 = vrot.slane %v3181, 4
    %v3184 = vshll.u32 %v2976, 16
    %v3186 = vrot.slane %v3184, 5
    %v3187 = vsel %vm2606, %v3182, %v3186
    %v3189 = vshrl.u32 %v2961, 16
    %v3191 = vrot.slane %v3189, 4
    %v3192 = vshll.u32 %v2961, 16
    %v3194 = vrot.slane %v3192, 5
    %v3195 = vor.u32 %v3191, %v3194
    %v3196 = vrot.slane %v3195, 4
    %v3198 = vshll.u32 %v2977, 16
    %v3200 = vrot.slane %v3198, 5
    %v3201 = vsel %vm2606, %v3196, %v3200
    %v3202 = vld [vmem:[%s2473] sm:$0xe]
    %v3203 = vld [vmem:[%s2473 + $0x8] sm:$0xe]
    %v3204 = vld [vmem:[%s2473 + $0x10] sm:$0xe]
    %v3205 = vld [vmem:[%s2473 + $0x18] sm:$0xe]
    %v3206 = vld [vmem:[%s2473 + $0x20] sm:$0xe]
    %v3207 = vld [vmem:[%s2473 + $0x28] sm:$0xe]
    %v3208 = vld [vmem:[%s2473 + $0x30] sm:$0xe]
    %v3209 = vld [vmem:[%s2473 + $0x38] sm:$0xe]
    %v3210 = vld [vmem:[%s2473 + $0x50] sm:$0xe]
    %v3211 = vld [vmem:[%s2473 + $0x58] sm:$0xe]
    %v3212 = vld [vmem:[%s2473 + $0x60] sm:$0xe]
    %v3213 = vld [vmem:[%s2473 + $0x68] sm:$0xe]
    %v3214 = vld [vmem:[%s2473 + $0x70] sm:$0xe]
    %v3215 = vld [vmem:[%s2473 + $0x78] sm:$0xe]
    %v3216 = vld [vmem:[%s2473 + $0x80] sm:$0xe]
    %v3217 = vld [vmem:[%s2473 + $0x88] sm:$0xe]
    %v3250 = vrot.slane %v3202, 5
    %v3251 = vrot.slane %v3250, 4
    %v3252 = vrot.slane %v2962, 5
    %v3253 = vsel %vm2881, %v3251, %v3252
    %v3254 = vrot.slane %v3203, 5
    %v3255 = vrot.slane %v3254, 4
    %v3256 = vrot.slane %v2963, 5
    %v3257 = vsel %vm2881, %v3255, %v3256
    %v3258 = vrot.slane %v3204, 5
    %v3259 = vrot.slane %v3258, 4
    %v3260 = vrot.slane %v2964, 5
    %v3261 = vsel %vm2881, %v3259, %v3260
    %v3262 = vrot.slane %v3205, 5
    %v3263 = vrot.slane %v3262, 4
    %v3264 = vrot.slane %v2965, 5
    %v3265 = vsel %vm2881, %v3263, %v3264
    %v3266 = vrot.slane %v3206, 5
    %v3267 = vrot.slane %v3266, 4
    %v3268 = vrot.slane %v2966, 5
    %v3269 = vsel %vm2881, %v3267, %v3268
    %v3270 = vrot.slane %v3207, 5
    %v3271 = vrot.slane %v3270, 4
    %v3272 = vrot.slane %v2967, 5
    %v3273 = vsel %vm2881, %v3271, %v3272
    %v3274 = vrot.slane %v3208, 5
    %v3275 = vrot.slane %v3274, 4
    %v3276 = vrot.slane %v2968, 5
    %v3277 = vsel %vm2881, %v3275, %v3276
    %v3278 = vrot.slane %v3209, 5
    %v3279 = vrot.slane %v3278, 4
    %v3280 = vrot.slane %v2969, 5
    %v3281 = vsel %vm2881, %v3279, %v3280
    %v3282 = vrot.slane %v3210, 5
    %v3283 = vrot.slane %v3282, 4
    %v3284 = vrot.slane %v2970, 5
    %v3285 = vsel %vm2881, %v3283, %v3284
    %v3286 = vrot.slane %v3211, 5
    %v3287 = vrot.slane %v3286, 4
    %v3288 = vrot.slane %v2971, 5
    %v3289 = vsel %vm2881, %v3287, %v3288
    %v3290 = vrot.slane %v3212, 5
    %v3291 = vrot.slane %v3290, 4
    %v3292 = vrot.slane %v2972, 5
    %v3293 = vsel %vm2881, %v3291, %v3292
    %v3294 = vrot.slane %v3213, 5
    %v3295 = vrot.slane %v3294, 4
    %v3296 = vrot.slane %v2973, 5
    %v3297 = vsel %vm2881, %v3295, %v3296
    %v3298 = vrot.slane %v3214, 5
    %v3299 = vrot.slane %v3298, 4
    %v3300 = vrot.slane %v2974, 5
    %v3301 = vsel %vm2881, %v3299, %v3300
    %v3302 = vrot.slane %v3215, 5
    %v3303 = vrot.slane %v3302, 4
    %v3304 = vrot.slane %v2975, 5
    %v3305 = vsel %vm2881, %v3303, %v3304
    %v3306 = vrot.slane %v3216, 5
    %v3307 = vrot.slane %v3306, 4
    %v3308 = vrot.slane %v2976, 5
    %v3309 = vsel %vm2881, %v3307, %v3308
    %v3310 = vrot.slane %v3217, 5
    %v3311 = vrot.slane %v3310, 4
    %v3312 = vrot.slane %v2977, 5
    %v3313 = vsel %vm2881, %v3311, %v3312
    %s3314 = scalar_lea.vmem [#allocation2], 16
    %v3315 = vld [vmem:[%s3314] sm:$0xf]
    %v3316 = vld [vmem:[%s3314 + $0x8] sm:$0xf]
    %v3317 = vld [vmem:[%s3314 + $0x10] sm:$0xf]
    %v3318 = vld [vmem:[%s3314 + $0x18] sm:$0xf]
    %v3319 = vld [vmem:[%s3314 + $0x20] sm:$0xf]
    %v3320 = vld [vmem:[%s3314 + $0x28] sm:$0xf]
    %v3321 = vld [vmem:[%s3314 + $0x30] sm:$0xf]
    %v3322 = vld [vmem:[%s3314 + $0x38] sm:$0xf]
    %v3323 = vld [vmem:[%s3314 + $0x50] sm:$0xf]
    %v3324 = vld [vmem:[%s3314 + $0x58] sm:$0xf]
    %v3325 = vld [vmem:[%s3314 + $0x60] sm:$0xf]
    %v3326 = vld [vmem:[%s3314 + $0x68] sm:$0xf]
    %v3327 = vld [vmem:[%s3314 + $0x70] sm:$0xf]
    %v3328 = vld [vmem:[%s3314 + $0x78] sm:$0xf]
    %v3329 = vld [vmem:[%s3314 + $0x80] sm:$0xf]
    %v3330 = vld [vmem:[%s3314 + $0x88] sm:$0xf]
    %v3331 = vld [vmem:[%s3314 + $0x4] sm:$0x1]
    %v3332 = vld [vmem:[%s3314 + $0xc] sm:$0x1]
    %v3333 = vld [vmem:[%s3314 + $0x14] sm:$0x1]
    %v3334 = vld [vmem:[%s3314 + $0x1c] sm:$0x1]
    %v3335 = vld [vmem:[%s3314 + $0x24] sm:$0x1]
    %v3336 = vld [vmem:[%s3314 + $0x2c] sm:$0x1]
    %v3337 = vld [vmem:[%s3314 + $0x34] sm:$0x1]
    %v3338 = vld [vmem:[%s3314 + $0x3c] sm:$0x1]
    %v3339 = vld [vmem:[%s3314 + $0x54] sm:$0x1]
    %v3340 = vld [vmem:[%s3314 + $0x5c] sm:$0x1]
    %v3341 = vld [vmem:[%s3314 + $0x64] sm:$0x1]
    %v3342 = vld [vmem:[%s3314 + $0x6c] sm:$0x1]
    %v3343 = vld [vmem:[%s3314 + $0x74] sm:$0x1]
    %v3344 = vld [vmem:[%s3314 + $0x7c] sm:$0x1]
    %v3345 = vld [vmem:[%s3314 + $0x84] sm:$0x1]
    %v3346 = vld [vmem:[%s3314 + $0x8c] sm:$0x1]
    %v3348 = vshrl.u32 %v3315, 16
    %v3350 = vrot.slane %v3348, 4
    %v3351 = vshll.u32 %v3315, 16
    %v3353 = vrot.slane %v3351, 5
    %v3354 = vor.u32 %v3350, %v3353
    %v3355 = vrot.slane %v3354, 4
    %v3357 = vshll.u32 %v3331, 16
    %v3359 = vrot.slane %v3357, 5
    %v3360 = vsel %vm2606, %v3355, %v3359
    %v3362 = vshrl.u32 %v3316, 16
    %v3364 = vrot.slane %v3362, 4
    %v3365 = vshll.u32 %v3316, 16
    %v3367 = vrot.slane %v3365, 5
    %v3368 = vor.u32 %v3364, %v3367
    %v3369 = vrot.slane %v3368, 4
    %v3371 = vshll.u32 %v3332, 16
    %v3373 = vrot.slane %v3371, 5
    %v3374 = vsel %vm2606, %v3369, %v3373
    %v3376 = vshrl.u32 %v3317, 16
    %v3378 = vrot.slane %v3376, 4
    %v3379 = vshll.u32 %v3317, 16
    %v3381 = vrot.slane %v3379, 5
    %v3382 = vor.u32 %v3378, %v3381
    %v3383 = vrot.slane %v3382, 4
    %v3385 = vshll.u32 %v3333, 16
    %v3387 = vrot.slane %v3385, 5
    %v3388 = vsel %vm2606, %v3383, %v3387
    %v3390 = vshrl.u32 %v3318, 16
    %v3392 = vrot.slane %v3390, 4
    %v3393 = vshll.u32 %v3318, 16
    %v3395 = vrot.slane %v3393, 5
    %v3396 = vor.u32 %v3392, %v3395
    %v3397 = vrot.slane %v3396, 4
    %v3399 = vshll.u32 %v3334, 16
    %v3401 = vrot.slane %v3399, 5
    %v3402 = vsel %vm2606, %v3397, %v3401
    %v3404 = vshrl.u32 %v3319, 16
    %v3406 = vrot.slane %v3404, 4
    %v3407 = vshll.u32 %v3319, 16
    %v3409 = vrot.slane %v3407, 5
    %v3410 = vor.u32 %v3406, %v3409
    %v3411 = vrot.slane %v3410, 4
    %v3413 = vshll.u32 %v3335, 16
    %v3415 = vrot.slane %v3413, 5
    %v3416 = vsel %vm2606, %v3411, %v3415
    %v3418 = vshrl.u32 %v3320, 16
    %v3420 = vrot.slane %v3418, 4
    %v3421 = vshll.u32 %v3320, 16
    %v3423 = vrot.slane %v3421, 5
    %v3424 = vor.u32 %v3420, %v3423
    %v3425 = vrot.slane %v3424, 4
    %v3427 = vshll.u32 %v3336, 16
    %v3429 = vrot.slane %v3427, 5
    %v3430 = vsel %vm2606, %v3425, %v3429
    %v3432 = vshrl.u32 %v3321, 16
    %v3434 = vrot.slane %v3432, 4
    %v3435 = vshll.u32 %v3321, 16
    %v3437 = vrot.slane %v3435, 5
    %v3438 = vor.u32 %v3434, %v3437
    %v3439 = vrot.slane %v3438, 4
    %v3441 = vshll.u32 %v3337, 16
    %v3443 = vrot.slane %v3441, 5
    %v3444 = vsel %vm2606, %v3439, %v3443
    %v3446 = vshrl.u32 %v3322, 16
    %v3448 = vrot.slane %v3446, 4
    %v3449 = vshll.u32 %v3322, 16
    %v3451 = vrot.slane %v3449, 5
    %v3452 = vor.u32 %v3448, %v3451
    %v3453 = vrot.slane %v3452, 4
    %v3455 = vshll.u32 %v3338, 16
    %v3457 = vrot.slane %v3455, 5
    %v3458 = vsel %vm2606, %v3453, %v3457
    %v3460 = vshrl.u32 %v3323, 16
    %v3462 = vrot.slane %v3460, 4
    %v3463 = vshll.u32 %v3323, 16
    %v3465 = vrot.slane %v3463, 5
    %v3466 = vor.u32 %v3462, %v3465
    %v3467 = vrot.slane %v3466, 4
    %v3469 = vshll.u32 %v3339, 16
    %v3471 = vrot.slane %v3469, 5
    %v3472 = vsel %vm2606, %v3467, %v3471
    %v3474 = vshrl.u32 %v3324, 16
    %v3476 = vrot.slane %v3474, 4
    %v3477 = vshll.u32 %v3324, 16
    %v3479 = vrot.slane %v3477, 5
    %v3480 = vor.u32 %v3476, %v3479
    %v3481 = vrot.slane %v3480, 4
    %v3483 = vshll.u32 %v3340, 16
    %v3485 = vrot.slane %v3483, 5
    %v3486 = vsel %vm2606, %v3481, %v3485
    %v3488 = vshrl.u32 %v3325, 16
    %v3490 = vrot.slane %v3488, 4
    %v3491 = vshll.u32 %v3325, 16
    %v3493 = vrot.slane %v3491, 5
    %v3494 = vor.u32 %v3490, %v3493
    %v3495 = vrot.slane %v3494, 4
    %v3497 = vshll.u32 %v3341, 16
    %v3499 = vrot.slane %v3497, 5
    %v3500 = vsel %vm2606, %v3495, %v3499
    %v3502 = vshrl.u32 %v3326, 16
    %v3504 = vrot.slane %v3502, 4
    %v3505 = vshll.u32 %v3326, 16
    %v3507 = vrot.slane %v3505, 5
    %v3508 = vor.u32 %v3504, %v3507
    %v3509 = vrot.slane %v3508, 4
    %v3511 = vshll.u32 %v3342, 16
    %v3513 = vrot.slane %v3511, 5
    %v3514 = vsel %vm2606, %v3509, %v3513
    %v3516 = vshrl.u32 %v3327, 16
    %v3518 = vrot.slane %v3516, 4
    %v3519 = vshll.u32 %v3327, 16
    %v3521 = vrot.slane %v3519, 5
    %v3522 = vor.u32 %v3518, %v3521
    %v3523 = vrot.slane %v3522, 4
    %v3525 = vshll.u32 %v3343, 16
    %v3527 = vrot.slane %v3525, 5
    %v3528 = vsel %vm2606, %v3523, %v3527
    %v3530 = vshrl.u32 %v3328, 16
    %v3532 = vrot.slane %v3530, 4
    %v3533 = vshll.u32 %v3328, 16
    %v3535 = vrot.slane %v3533, 5
    %v3536 = vor.u32 %v3532, %v3535
    %v3537 = vrot.slane %v3536, 4
    %v3539 = vshll.u32 %v3344, 16
    %v3541 = vrot.slane %v3539, 5
    %v3542 = vsel %vm2606, %v3537, %v3541
    %v3544 = vshrl.u32 %v3329, 16
    %v3546 = vrot.slane %v3544, 4
    %v3547 = vshll.u32 %v3329, 16
    %v3549 = vrot.slane %v3547, 5
    %v3550 = vor.u32 %v3546, %v3549
    %v3551 = vrot.slane %v3550, 4
    %v3553 = vshll.u32 %v3345, 16
    %v3555 = vrot.slane %v3553, 5
    %v3556 = vsel %vm2606, %v3551, %v3555
    %v3558 = vshrl.u32 %v3330, 16
    %v3560 = vrot.slane %v3558, 4
    %v3561 = vshll.u32 %v3330, 16
    %v3563 = vrot.slane %v3561, 5
    %v3564 = vor.u32 %v3560, %v3563
    %v3565 = vrot.slane %v3564, 4
    %v3567 = vshll.u32 %v3346, 16
    %v3569 = vrot.slane %v3567, 5
    %v3570 = vsel %vm2606, %v3565, %v3569
    %v3571 = vld [vmem:[%s3314] sm:$0xe]
    %v3572 = vld [vmem:[%s3314 + $0x8] sm:$0xe]
    %v3573 = vld [vmem:[%s3314 + $0x10] sm:$0xe]
    %v3574 = vld [vmem:[%s3314 + $0x18] sm:$0xe]
    %v3575 = vld [vmem:[%s3314 + $0x20] sm:$0xe]
    %v3576 = vld [vmem:[%s3314 + $0x28] sm:$0xe]
    %v3577 = vld [vmem:[%s3314 + $0x30] sm:$0xe]
    %v3578 = vld [vmem:[%s3314 + $0x38] sm:$0xe]
    %v3579 = vld [vmem:[%s3314 + $0x50] sm:$0xe]
    %v3580 = vld [vmem:[%s3314 + $0x58] sm:$0xe]
    %v3581 = vld [vmem:[%s3314 + $0x60] sm:$0xe]
    %v3582 = vld [vmem:[%s3314 + $0x68] sm:$0xe]
    %v3583 = vld [vmem:[%s3314 + $0x70] sm:$0xe]
    %v3584 = vld [vmem:[%s3314 + $0x78] sm:$0xe]
    %v3585 = vld [vmem:[%s3314 + $0x80] sm:$0xe]
    %v3586 = vld [vmem:[%s3314 + $0x88] sm:$0xe]
    %v3619 = vrot.slane %v3571, 5
    %v3620 = vrot.slane %v3619, 4
    %v3621 = vrot.slane %v3331, 5
    %v3622 = vsel %vm2881, %v3620, %v3621
    %v3623 = vrot.slane %v3572, 5
    %v3624 = vrot.slane %v3623, 4
    %v3625 = vrot.slane %v3332, 5
    %v3626 = vsel %vm2881, %v3624, %v3625
    %v3627 = vrot.slane %v3573, 5
    %v3628 = vrot.slane %v3627, 4
    %v3629 = vrot.slane %v3333, 5
    %v3630 = vsel %vm2881, %v3628, %v3629
    %v3631 = vrot.slane %v3574, 5
    %v3632 = vrot.slane %v3631, 4
    %v3633 = vrot.slane %v3334, 5
    %v3634 = vsel %vm2881, %v3632, %v3633
    %v3635 = vrot.slane %v3575, 5
    %v3636 = vrot.slane %v3635, 4
    %v3637 = vrot.slane %v3335, 5
    %v3638 = vsel %vm2881, %v3636, %v3637
    %v3639 = vrot.slane %v3576, 5
    %v3640 = vrot.slane %v3639, 4
    %v3641 = vrot.slane %v3336, 5
    %v3642 = vsel %vm2881, %v3640, %v3641
    %v3643 = vrot.slane %v3577, 5
    %v3644 = vrot.slane %v3643, 4
    %v3645 = vrot.slane %v3337, 5
    %v3646 = vsel %vm2881, %v3644, %v3645
    %v3647 = vrot.slane %v3578, 5
    %v3648 = vrot.slane %v3647, 4
    %v3649 = vrot.slane %v3338, 5
    %v3650 = vsel %vm2881, %v3648, %v3649
    %v3651 = vrot.slane %v3579, 5
    %v3652 = vrot.slane %v3651, 4
    %v3653 = vrot.slane %v3339, 5
    %v3654 = vsel %vm2881, %v3652, %v3653
    %v3655 = vrot.slane %v3580, 5
    %v3656 = vrot.slane %v3655, 4
    %v3657 = vrot.slane %v3340, 5
    %v3658 = vsel %vm2881, %v3656, %v3657
    %v3659 = vrot.slane %v3581, 5
    %v3660 = vrot.slane %v3659, 4
    %v3661 = vrot.slane %v3341, 5
    %v3662 = vsel %vm2881, %v3660, %v3661
    %v3663 = vrot.slane %v3582, 5
    %v3664 = vrot.slane %v3663, 4
    %v3665 = vrot.slane %v3342, 5
    %v3666 = vsel %vm2881, %v3664, %v3665
    %v3667 = vrot.slane %v3583, 5
    %v3668 = vrot.slane %v3667, 4
    %v3669 = vrot.slane %v3343, 5
    %v3670 = vsel %vm2881, %v3668, %v3669
    %v3671 = vrot.slane %v3584, 5
    %v3672 = vrot.slane %v3671, 4
    %v3673 = vrot.slane %v3344, 5
    %v3674 = vsel %vm2881, %v3672, %v3673
    %v3675 = vrot.slane %v3585, 5
    %v3676 = vrot.slane %v3675, 4
    %v3677 = vrot.slane %v3345, 5
    %v3678 = vsel %vm2881, %v3676, %v3677
    %v3679 = vrot.slane %v3586, 5
    %v3680 = vrot.slane %v3679, 4
    %v3681 = vrot.slane %v3346, 5
    %v3682 = vsel %vm2881, %v3680, %v3681
    %v3699 = vunpack.c.l.b16 %v2572
    %v3700 = vunpack.c.l.b16 %v2573
    %v3701 = vunpack.c.l.b16 %v2574
    %v3702 = vunpack.c.l.b16 %v2575
    %v3703 = vunpack.c.l.b16 %v2576
    %v3704 = vunpack.c.l.b16 %v2577
    %v3705 = vunpack.c.l.b16 %v2578
    %v3706 = vunpack.c.l.b16 %v2579
    %v3707 = vunpack.c.l.b16 %v2580
    %v3708 = vunpack.c.l.b16 %v2581
    %v3709 = vunpack.c.l.b16 %v2582
    %v3710 = vunpack.c.l.b16 %v2583
    %v3711 = vunpack.c.l.b16 %v2584
    %v3712 = vunpack.c.l.b16 %v2585
    %v3713 = vunpack.c.l.b16 %v2586
    %v3714 = vunpack.c.l.b16 %v2587
    %v3715 = vpack.c.b16 %v3700, %v3699
    %v3716 = vpack.c.b16 %v3702, %v3701
    %v3717 = vpack.c.b16 %v3704, %v3703
    %v3718 = vpack.c.b16 %v3706, %v3705
    %v3719 = vpack.c.b16 %v3708, %v3707
    %v3720 = vpack.c.b16 %v3710, %v3709
    %v3721 = vpack.c.b16 %v3712, %v3711
    %v3722 = vpack.c.b16 %v3714, %v3713
    %v3723 = vunpack.c.l.b16 %v2620
    %v3724 = vunpack.c.l.b16 %v2634
    %v3725 = vunpack.c.l.b16 %v2648
    %v3726 = vunpack.c.l.b16 %v2662
    %v3727 = vunpack.c.l.b16 %v2676
    %v3728 = vunpack.c.l.b16 %v2690
    %v3729 = vunpack.c.l.b16 %v2704
    %v3730 = vunpack.c.l.b16 %v2718
    %v3731 = vunpack.c.l.b16 %v2732
    %v3732 = vunpack.c.l.b16 %v2746
    %v3733 = vunpack.c.l.b16 %v2760
    %v3734 = vunpack.c.l.b16 %v2774
    %v3735 = vunpack.c.l.b16 %v2788
    %v3736 = vunpack.c.l.b16 %v2802
    %v3737 = vunpack.c.l.b16 %v2816
    %v3738 = vunpack.c.l.b16 %v2830
    %v3739 = vpack.c.b16 %v3724, %v3723
    %v3740 = vpack.c.b16 %v3726, %v3725
    %v3741 = vpack.c.b16 %v3728, %v3727
    %v3742 = vpack.c.b16 %v3730, %v3729
    %v3743 = vpack.c.b16 %v3732, %v3731
    %v3744 = vpack.c.b16 %v3734, %v3733
    %v3745 = vpack.c.b16 %v3736, %v3735
    %v3746 = vpack.c.b16 %v3738, %v3737
    %3747 = vrot.lane.b32.xlu0 %v3739, 32
    %v3748 = vpop.permute.xlu0 %3747
    %3749 = vrot.lane.b32.xlu0 %v3740, 32
    %v3750 = vpop.permute.xlu0 %3749
    %3751 = vrot.lane.b32.xlu0 %v3741, 32
    %v3752 = vpop.permute.xlu0 %3751
    %3753 = vrot.lane.b32.xlu0 %v3742, 32
    %v3754 = vpop.permute.xlu0 %3753
    %3755 = vrot.lane.b32.xlu0 %v3743, 32
    %v3756 = vpop.permute.xlu0 %3755
    %3757 = vrot.lane.b32.xlu0 %v3744, 32
    %v3758 = vpop.permute.xlu0 %3757
    %3759 = vrot.lane.b32.xlu0 %v3745, 32
    %v3760 = vpop.permute.xlu0 %3759
    %3761 = vrot.lane.b32.xlu0 %v3746, 32
    %v3762 = vpop.permute.xlu0 %3761
    %v3763 = vunpack.c.l.b16 %v2885
    %v3764 = vunpack.c.l.b16 %v2889
    %v3765 = vunpack.c.l.b16 %v2893
    %v3766 = vunpack.c.l.b16 %v2897
    %v3767 = vunpack.c.l.b16 %v2901
    %v3768 = vunpack.c.l.b16 %v2905
    %v3769 = vunpack.c.l.b16 %v2909
    %v3770 = vunpack.c.l.b16 %v2913
    %v3771 = vunpack.c.l.b16 %v2917
    %v3772 = vunpack.c.l.b16 %v2921
    %v3773 = vunpack.c.l.b16 %v2925
    %v3774 = vunpack.c.l.b16 %v2929
    %v3775 = vunpack.c.l.b16 %v2933
    %v3776 = vunpack.c.l.b16 %v2937
    %v3777 = vunpack.c.l.b16 %v2941
    %v3778 = vunpack.c.l.b16 %v2945
    %v3779 = vpack.c.b16 %v3764, %v3763
    %v3780 = vpack.c.b16 %v3766, %v3765
    %v3781 = vpack.c.b16 %v3768, %v3767
    %v3782 = vpack.c.b16 %v3770, %v3769
    %v3783 = vpack.c.b16 %v3772, %v3771
    %v3784 = vpack.c.b16 %v3774, %v3773
    %v3785 = vpack.c.b16 %v3776, %v3775
    %v3786 = vpack.c.b16 %v3778, %v3777
    %3787 = vrot.lane.b32.xlu0 %v3779, 64
    %v3788 = vpop.permute.xlu0 %3787
    %3789 = vrot.lane.b32.xlu0 %v3780, 64
    %v3790 = vpop.permute.xlu0 %3789
    %3791 = vrot.lane.b32.xlu0 %v3781, 64
    %v3792 = vpop.permute.xlu0 %3791
    %3793 = vrot.lane.b32.xlu0 %v3782, 64
    %v3794 = vpop.permute.xlu0 %3793
    %3795 = vrot.lane.b32.xlu0 %v3783, 64
    %v3796 = vpop.permute.xlu0 %3795
    %3797 = vrot.lane.b32.xlu0 %v3784, 64
    %v3798 = vpop.permute.xlu0 %3797
    %3799 = vrot.lane.b32.xlu0 %v3785, 64
    %v3800 = vpop.permute.xlu0 %3799
    %3801 = vrot.lane.b32.xlu0 %v3786, 64
    %v3802 = vpop.permute.xlu0 %3801
    %v3819 = vunpack.c.l.b16 %v2946
    %v3820 = vunpack.c.l.b16 %v2947
    %v3821 = vunpack.c.l.b16 %v2948
    %v3822 = vunpack.c.l.b16 %v2949
    %v3823 = vunpack.c.l.b16 %v2950
    %v3824 = vunpack.c.l.b16 %v2951
    %v3825 = vunpack.c.l.b16 %v2952
    %v3826 = vunpack.c.l.b16 %v2953
    %v3827 = vunpack.c.l.b16 %v2954
    %v3828 = vunpack.c.l.b16 %v2955
    %v3829 = vunpack.c.l.b16 %v2956
    %v3830 = vunpack.c.l.b16 %v2957
    %v3831 = vunpack.c.l.b16 %v2958
    %v3832 = vunpack.c.l.b16 %v2959
    %v3833 = vunpack.c.l.b16 %v2960
    %v3834 = vunpack.c.l.b16 %v2961
    %v3835 = vpack.c.b16 %v3820, %v3819
    %v3836 = vpack.c.b16 %v3822, %v3821
    %v3837 = vpack.c.b16 %v3824, %v3823
    %v3838 = vpack.c.b16 %v3826, %v3825
    %v3839 = vpack.c.b16 %v3828, %v3827
    %v3840 = vpack.c.b16 %v3830, %v3829
    %v3841 = vpack.c.b16 %v3832, %v3831
    %v3842 = vpack.c.b16 %v3834, %v3833
    %3843 = vrot.lane.b32.xlu0 %v3835, 96
    %v3844 = vpop.permute.xlu0 %3843
    %3845 = vrot.lane.b32.xlu0 %v3836, 96
    %v3846 = vpop.permute.xlu0 %3845
    %3847 = vrot.lane.b32.xlu0 %v3837, 96
    %v3848 = vpop.permute.xlu0 %3847
    %3849 = vrot.lane.b32.xlu0 %v3838, 96
    %v3850 = vpop.permute.xlu0 %3849
    %3851 = vrot.lane.b32.xlu0 %v3839, 96
    %v3852 = vpop.permute.xlu0 %3851
    %3853 = vrot.lane.b32.xlu0 %v3840, 96
    %v3854 = vpop.permute.xlu0 %3853
    %3855 = vrot.lane.b32.xlu0 %v3841, 96
    %v3856 = vpop.permute.xlu0 %3855
    %3857 = vrot.lane.b32.xlu0 %v3842, 96
    %v3858 = vpop.permute.xlu0 %3857
    %v3859 = vunpack.c.l.b16 %v2991
    %v3860 = vunpack.c.l.b16 %v3005
    %v3861 = vunpack.c.l.b16 %v3019
    %v3862 = vunpack.c.l.b16 %v3033
    %v3863 = vunpack.c.l.b16 %v3047
    %v3864 = vunpack.c.l.b16 %v3061
    %v3865 = vunpack.c.l.b16 %v3075
    %v3866 = vunpack.c.l.b16 %v3089
    %v3867 = vunpack.c.l.b16 %v3103
    %v3868 = vunpack.c.l.b16 %v3117
    %v3869 = vunpack.c.l.b16 %v3131
    %v3870 = vunpack.c.l.b16 %v3145
    %v3871 = vunpack.c.l.b16 %v3159
    %v3872 = vunpack.c.l.b16 %v3173
    %v3873 = vunpack.c.l.b16 %v3187
    %v3874 = vunpack.c.l.b16 %v3201
    %v3875 = vpack.c.b16 %v3860, %v3859
    %v3876 = vpack.c.b16 %v3862, %v3861
    %v3877 = vpack.c.b16 %v3864, %v3863
    %v3878 = vpack.c.b16 %v3866, %v3865
    %v3879 = vpack.c.b16 %v3868, %v3867
    %v3880 = vpack.c.b16 %v3870, %v3869
    %v3881 = vpack.c.b16 %v3872, %v3871
    %v3882 = vpack.c.b16 %v3874, %v3873
    %v3883 = vunpack.c.l.b16 %v3253
    %v3884 = vunpack.c.l.b16 %v3257
    %v3885 = vunpack.c.l.b16 %v3261
    %v3886 = vunpack.c.l.b16 %v3265
    %v3887 = vunpack.c.l.b16 %v3269
    %v3888 = vunpack.c.l.b16 %v3273
    %v3889 = vunpack.c.l.b16 %v3277
    %v3890 = vunpack.c.l.b16 %v3281
    %v3891 = vunpack.c.l.b16 %v3285
    %v3892 = vunpack.c.l.b16 %v3289
    %v3893 = vunpack.c.l.b16 %v3293
    %v3894 = vunpack.c.l.b16 %v3297
    %v3895 = vunpack.c.l.b16 %v3301
    %v3896 = vunpack.c.l.b16 %v3305
    %v3897 = vunpack.c.l.b16 %v3309
    %v3898 = vunpack.c.l.b16 %v3313
    %v3899 = vpack.c.b16 %v3884, %v3883
    %v3900 = vpack.c.b16 %v3886, %v3885
    %v3901 = vpack.c.b16 %v3888, %v3887
    %v3902 = vpack.c.b16 %v3890, %v3889
    %v3903 = vpack.c.b16 %v3892, %v3891
    %v3904 = vpack.c.b16 %v3894, %v3893
    %v3905 = vpack.c.b16 %v3896, %v3895
    %v3906 = vpack.c.b16 %v3898, %v3897
    %3907 = vrot.lane.b32.xlu0 %v3899, 32
    %v3908 = vpop.permute.xlu0 %3907
    %3909 = vrot.lane.b32.xlu0 %v3900, 32
    %v3910 = vpop.permute.xlu0 %3909
    %3911 = vrot.lane.b32.xlu0 %v3901, 32
    %v3912 = vpop.permute.xlu0 %3911
    %3913 = vrot.lane.b32.xlu0 %v3902, 32
    %v3914 = vpop.permute.xlu0 %3913
    %3915 = vrot.lane.b32.xlu0 %v3903, 32
    %v3916 = vpop.permute.xlu0 %3915
    %3917 = vrot.lane.b32.xlu0 %v3904, 32
    %v3918 = vpop.permute.xlu0 %3917
    %3919 = vrot.lane.b32.xlu0 %v3905, 32
    %v3920 = vpop.permute.xlu0 %3919
    %3921 = vrot.lane.b32.xlu0 %v3906, 32
    %v3922 = vpop.permute.xlu0 %3921
    %v3939 = vunpack.c.l.b16 %v3315
    %v3940 = vunpack.c.l.b16 %v3316
    %v3941 = vunpack.c.l.b16 %v3317
    %v3942 = vunpack.c.l.b16 %v3318
    %v3943 = vunpack.c.l.b16 %v3319
    %v3944 = vunpack.c.l.b16 %v3320
    %v3945 = vunpack.c.l.b16 %v3321
    %v3946 = vunpack.c.l.b16 %v3322
    %v3947 = vunpack.c.l.b16 %v3323
    %v3948 = vunpack.c.l.b16 %v3324
    %v3949 = vunpack.c.l.b16 %v3325
    %v3950 = vunpack.c.l.b16 %v3326
    %v3951 = vunpack.c.l.b16 %v3327
    %v3952 = vunpack.c.l.b16 %v3328
    %v3953 = vunpack.c.l.b16 %v3329
    %v3954 = vunpack.c.l.b16 %v3330
    %v3955 = vpack.c.b16 %v3940, %v3939
    %v3956 = vpack.c.b16 %v3942, %v3941
    %v3957 = vpack.c.b16 %v3944, %v3943
    %v3958 = vpack.c.b16 %v3946, %v3945
    %v3959 = vpack.c.b16 %v3948, %v3947
    %v3960 = vpack.c.b16 %v3950, %v3949
    %v3961 = vpack.c.b16 %v3952, %v3951
    %v3962 = vpack.c.b16 %v3954, %v3953
    %3963 = vrot.lane.b32.xlu0 %v3955, 64
    %v3964 = vpop.permute.xlu0 %3963
    %3965 = vrot.lane.b32.xlu0 %v3956, 64
    %v3966 = vpop.permute.xlu0 %3965
    %3967 = vrot.lane.b32.xlu0 %v3957, 64
    %v3968 = vpop.permute.xlu0 %3967
    %3969 = vrot.lane.b32.xlu0 %v3958, 64
    %v3970 = vpop.permute.xlu0 %3969
    %3971 = vrot.lane.b32.xlu0 %v3959, 64
    %v3972 = vpop.permute.xlu0 %3971
    %3973 = vrot.lane.b32.xlu0 %v3960, 64
    %v3974 = vpop.permute.xlu0 %3973
    %3975 = vrot.lane.b32.xlu0 %v3961, 64
    %v3976 = vpop.permute.xlu0 %3975
    %3977 = vrot.lane.b32.xlu0 %v3962, 64
    %v3978 = vpop.permute.xlu0 %3977
    %v3979 = vunpack.c.l.b16 %v3360
    %v3980 = vunpack.c.l.b16 %v3374
    %v3981 = vunpack.c.l.b16 %v3388
    %v3982 = vunpack.c.l.b16 %v3402
    %v3983 = vunpack.c.l.b16 %v3416
    %v3984 = vunpack.c.l.b16 %v3430
    %v3985 = vunpack.c.l.b16 %v3444
    %v3986 = vunpack.c.l.b16 %v3458
    %v3987 = vunpack.c.l.b16 %v3472
    %v3988 = vunpack.c.l.b16 %v3486
    %v3989 = vunpack.c.l.b16 %v3500
    %v3990 = vunpack.c.l.b16 %v3514
    %v3991 = vunpack.c.l.b16 %v3528
    %v3992 = vunpack.c.l.b16 %v3542
    %v3993 = vunpack.c.l.b16 %v3556
    %v3994 = vunpack.c.l.b16 %v3570
    %v3995 = vpack.c.b16 %v3980, %v3979
    %v3996 = vpack.c.b16 %v3982, %v3981
    %v3997 = vpack.c.b16 %v3984, %v3983
    %v3998 = vpack.c.b16 %v3986, %v3985
    %v3999 = vpack.c.b16 %v3988, %v3987
    %v4000 = vpack.c.b16 %v3990, %v3989
    %v4001 = vpack.c.b16 %v3992, %v3991
    %v4002 = vpack.c.b16 %v3994, %v3993
    %4003 = vrot.lane.b32.xlu0 %v3995, 96
    %v4004 = vpop.permute.xlu0 %4003
    %4005 = vrot.lane.b32.xlu0 %v3996, 96
    %v4006 = vpop.permute.xlu0 %4005
    %4007 = vrot.lane.b32.xlu0 %v3997, 96
    %v4008 = vpop.permute.xlu0 %4007
    %4009 = vrot.lane.b32.xlu0 %v3998, 96
    %v4010 = vpop.permute.xlu0 %4009
    %4011 = vrot.lane.b32.xlu0 %v3999, 96
    %v4012 = vpop.permute.xlu0 %4011
    %4013 = vrot.lane.b32.xlu0 %v4000, 96
    %v4014 = vpop.permute.xlu0 %4013
    %4015 = vrot.lane.b32.xlu0 %v4001, 96
    %v4016 = vpop.permute.xlu0 %4015
    %4017 = vrot.lane.b32.xlu0 %v4002, 96
    %v4018 = vpop.permute.xlu0 %4017
    %v4019 = vunpack.c.l.b16 %v3622
    %v4020 = vunpack.c.l.b16 %v3626
    %v4021 = vunpack.c.l.b16 %v3630
    %v4022 = vunpack.c.l.b16 %v3634
    %v4023 = vunpack.c.l.b16 %v3638
    %v4024 = vunpack.c.l.b16 %v3642
    %v4025 = vunpack.c.l.b16 %v3646
    %v4026 = vunpack.c.l.b16 %v3650
    %v4027 = vunpack.c.l.b16 %v3654
    %v4028 = vunpack.c.l.b16 %v3658
    %v4029 = vunpack.c.l.b16 %v3662
    %v4030 = vunpack.c.l.b16 %v3666
    %v4031 = vunpack.c.l.b16 %v3670
    %v4032 = vunpack.c.l.b16 %v3674
    %v4033 = vunpack.c.l.b16 %v3678
    %v4034 = vunpack.c.l.b16 %v3682
    %v4035 = vpack.c.b16 %v4020, %v4019
    %v4036 = vpack.c.b16 %v4022, %v4021
    %v4037 = vpack.c.b16 %v4024, %v4023
    %v4038 = vpack.c.b16 %v4026, %v4025
    %v4039 = vpack.c.b16 %v4028, %v4027
    %v4040 = vpack.c.b16 %v4030, %v4029
    %v4041 = vpack.c.b16 %v4032, %v4031
    %v4042 = vpack.c.b16 %v4034, %v4033
    %vm4043 = vcmask 261120
    %v4046 = vsel %vm4043, %v3715, %v3748
    %v4049 = vsel %vm4043, %v3716, %v3750
    %v4052 = vsel %vm4043, %v3717, %v3752
    %v4055 = vsel %vm4043, %v3718, %v3754
    %v4058 = vsel %vm4043, %v3719, %v3756
    %v4061 = vsel %vm4043, %v3720, %v3758
    %v4064 = vsel %vm4043, %v3721, %v3760
    %v4067 = vsel %vm4043, %v3722, %v3762
    %vm4068 = vcmask 523264
    %v4070 = vsel %vm4068, %v4046, %v3788
    %v4072 = vsel %vm4068, %v4049, %v3790
    %v4074 = vsel %vm4068, %v4052, %v3792
    %v4076 = vsel %vm4068, %v4055, %v3794
    %v4078 = vsel %vm4068, %v4058, %v3796
    %v4080 = vsel %vm4068, %v4061, %v3798
    %v4082 = vsel %vm4068, %v4064, %v3800
    %v4084 = vsel %vm4068, %v4067, %v3802
    %vm4085 = vcmask 785408
    %v4087 = vsel %vm4085, %v4070, %v3844
    %v4090 = vsel %vm4085, %v4072, %v3846
    %v4093 = vsel %vm4085, %v4074, %v3848
    %v4096 = vsel %vm4085, %v4076, %v3850
    %v4099 = vsel %vm4085, %v4078, %v3852
    %v4102 = vsel %vm4085, %v4080, %v3854
    %v4105 = vsel %vm4085, %v4082, %v3856
    %v4108 = vsel %vm4085, %v4084, %v3858
    %v4112 = vsel %vm4043, %v3875, %v3908
    %v4115 = vsel %vm4043, %v3876, %v3910
    %v4118 = vsel %vm4043, %v3877, %v3912
    %v4121 = vsel %vm4043, %v3878, %v3914
    %v4124 = vsel %vm4043, %v3879, %v3916
    %v4127 = vsel %vm4043, %v3880, %v3918
    %v4130 = vsel %vm4043, %v3881, %v3920
    %v4133 = vsel %vm4043, %v3882, %v3922
    %v4135 = vsel %vm4068, %v4112, %v3964
    %v4137 = vsel %vm4068, %v4115, %v3966
    %v4139 = vsel %vm4068, %v4118, %v3968
    %v4141 = vsel %vm4068, %v4121, %v3970
    %v4143 = vsel %vm4068, %v4124, %v3972
    %v4145 = vsel %vm4068, %v4127, %v3974
    %v4147 = vsel %vm4068, %v4130, %v3976
    %v4149 = vsel %vm4068, %v4133, %v3978
    %v4151 = vsel %vm4085, %v4135, %v4004
    %v4154 = vsel %vm4085, %v4137, %v4006
    %v4157 = vsel %vm4085, %v4139, %v4008
    %v4160 = vsel %vm4085, %v4141, %v4010
    %v4163 = vsel %vm4085, %v4143, %v4012
    %v4166 = vsel %vm4085, %v4145, %v4014
    %v4169 = vsel %vm4085, %v4147, %v4016
    %v4172 = vsel %vm4085, %v4149, %v4018
    %v4174 = vld [vmem:[%s4] sm:$0xf]
    %v4175 = vld [vmem:[%s4 + $0x4] sm:$0xf]
    %v4176 = vld [vmem:[%s4 + $0x8] sm:$0xf]
    %v4177 = vld [vmem:[%s4 + $0xc] sm:$0xf]
    %v4178 = vld [vmem:[%s4 + $0x10] sm:$0xf]
    %v4179 = vld [vmem:[%s4 + $0x14] sm:$0xf]
    %v4180 = vld [vmem:[%s4 + $0x18] sm:$0xf]
    %v4181 = vld [vmem:[%s4 + $0x1c] sm:$0xf]
    %v4182 = vld [vmem:[%s4 + $0x20] sm:$0xf]
    %v4183 = vld [vmem:[%s4 + $0x24] sm:$0xf]
    %v4184 = vld [vmem:[%s4 + $0x28] sm:$0xf]
    %v4185 = vld [vmem:[%s4 + $0x2c] sm:$0xf]
    %v4186 = vld [vmem:[%s4 + $0x30] sm:$0xf]
    %v4187 = vld [vmem:[%s4 + $0x34] sm:$0xf]
    %v4188 = vld [vmem:[%s4 + $0x38] sm:$0xf]
    %v4189 = vld [vmem:[%s4 + $0x3c] sm:$0xf]
    %v4190 = vld [vmem:[%s4 + $0x40] sm:$0xf]
    %v4191 = vld [vmem:[%s4 + $0x44] sm:$0xf]
    %v4192 = vld [vmem:[%s4 + $0x48] sm:$0xf]
    %v4193 = vld [vmem:[%s4 + $0x4c] sm:$0xf]
    %v4194 = vld [vmem:[%s4 + $0x50] sm:$0xf]
    %v4195 = vld [vmem:[%s4 + $0x54] sm:$0xf]
    %v4196 = vld [vmem:[%s4 + $0x58] sm:$0xf]
    %v4197 = vld [vmem:[%s4 + $0x5c] sm:$0xf]
    %v4198 = vld [vmem:[%s4 + $0x60] sm:$0xf]
    %v4199 = vld [vmem:[%s4 + $0x64] sm:$0xf]
    %v4200 = vld [vmem:[%s4 + $0x68] sm:$0xf]
    %v4201 = vld [vmem:[%s4 + $0x6c] sm:$0xf]
    %v4202 = vld [vmem:[%s4 + $0x70] sm:$0xf]
    %v4203 = vld [vmem:[%s4 + $0x74] sm:$0xf]
    %v4204 = vld [vmem:[%s4 + $0x78] sm:$0xf]
    %v4205 = vld [vmem:[%s4 + $0x7c] sm:$0xf]
    %v4206 = vld [vmem:[%s4 + $0x80] sm:$0xf]
    %v4207 = vld [vmem:[%s4 + $0x84] sm:$0xf]
    %v4208 = vld [vmem:[%s4 + $0x88] sm:$0xf]
    %v4209 = vld [vmem:[%s4 + $0x8c] sm:$0xf]
    %v4210 = vld [vmem:[%s5] sm:$0x1]
    %v4212 = vperm.slane %v4210, 0
    %v4250 = vunpack.c.l.b16 %v4174
    %v4251 = vunpack.c.l.b16 %v4175
    %v4252 = vunpack.c.l.b16 %v4176
    %v4253 = vunpack.c.l.b16 %v4177
    %v4254 = vunpack.c.l.b16 %v4178
    %v4255 = vunpack.c.l.b16 %v4179
    %v4256 = vunpack.c.l.b16 %v4180
    %v4257 = vunpack.c.l.b16 %v4181
    %v4258 = vunpack.c.l.b16 %v4182
    %v4259 = vunpack.c.l.b16 %v4183
    %v4260 = vunpack.c.l.b16 %v4184
    %v4261 = vunpack.c.l.b16 %v4185
    %v4262 = vunpack.c.l.b16 %v4186
    %v4263 = vunpack.c.l.b16 %v4187
    %v4264 = vunpack.c.l.b16 %v4188
    %v4265 = vunpack.c.l.b16 %v4189
    %v4266 = vunpack.c.l.b16 %v4190
    %v4267 = vunpack.c.l.b16 %v4191
    %v4268 = vunpack.c.l.b16 %v4192
    %v4269 = vunpack.c.l.b16 %v4193
    %v4270 = vunpack.c.l.b16 %v4194
    %v4271 = vunpack.c.l.b16 %v4195
    %v4272 = vunpack.c.l.b16 %v4196
    %v4273 = vunpack.c.l.b16 %v4197
    %v4274 = vunpack.c.l.b16 %v4198
    %v4275 = vunpack.c.l.b16 %v4199
    %v4276 = vunpack.c.l.b16 %v4200
    %v4277 = vunpack.c.l.b16 %v4201
    %v4278 = vunpack.c.l.b16 %v4202
    %v4279 = vunpack.c.l.b16 %v4203
    %v4280 = vunpack.c.l.b16 %v4204
    %v4281 = vunpack.c.l.b16 %v4205
    %v4282 = vunpack.c.l.b16 %v4206
    %v4283 = vunpack.c.l.b16 %v4207
    %v4284 = vunpack.c.l.b16 %v4208
    %v4285 = vunpack.c.l.b16 %v4209
    %v4286 = vpack.c.b16 %v4251, %v4250
    %v4287 = vpack.c.b16 %v4253, %v4252
    %v4288 = vpack.c.b16 %v4255, %v4254
    %v4289 = vpack.c.b16 %v4257, %v4256
    %v4290 = vpack.c.b16 %v4259, %v4258
    %v4291 = vpack.c.b16 %v4261, %v4260
    %v4292 = vpack.c.b16 %v4263, %v4262
    %v4293 = vpack.c.b16 %v4265, %v4264
    %v4294 = vpack.c.b16 %v4267, %v4266
    %v4295 = vpack.c.b16 %v4269, %v4268
    %v4296 = vpack.c.b16 %v4271, %v4270
    %v4297 = vpack.c.b16 %v4273, %v4272
    %v4298 = vpack.c.b16 %v4275, %v4274
    %v4299 = vpack.c.b16 %v4277, %v4276
    %v4300 = vpack.c.b16 %v4279, %v4278
    %v4301 = vpack.c.b16 %v4281, %v4280
    %v4302 = vpack.c.b16 %v4283, %v4282
    %v4303 = vpack.c.b16 %v4285, %v4284
    %v4323 = vsel %vm4043, %v4035, 0
    %v4326 = vsel %vm4043, %v4036, 0
    %v4329 = vsel %vm4043, %v4037, 0
    %v4332 = vsel %vm4043, %v4038, 0
    %v4335 = vsel %vm4043, %v4039, 0
    %v4338 = vsel %vm4043, %v4040, 0
    %v4341 = vsel %vm4043, %v4041, 0
    %v4344 = vsel %vm4043, %v4042, 0
    %4346 = vmatpush.bf16.msra.mxu0 %v4293
    %4347 = vmatpush.bf16.msra.mxu0 %v4292
    %4348 = vmatpush.bf16.msra.mxu0 %v4291
    %4349 = vmatpush.bf16.msra.mxu0 %v4290
    %4350 = vmatpush.bf16.msra.mxu0 %v4289
    %4351 = vmatpush.bf16.msra.mxu0 %v4288
    %4352 = vmatpush.bf16.msra.mxu0 %v4287
    %4353 = vmatpush.bf16.msra.mxu0 %v4286
    %4354 = vmatmul.bf16.gmra.mxu0 %v4087
    %v4355 = vpop.f32.mrf.mxu0
    %v4356 = vadd.f32 %v4212, %v4355
    %v4357 = vpop.f32.mrf.mxu0
    %v4358 = vadd.f32 %v4212, %v4357
    %4359 = vmatmul.bf16.gmra.mxu0 %v4090
    %v4360 = vpop.f32.mrf.mxu0
    %v4361 = vadd.f32 %v4212, %v4360
    %v4362 = vpop.f32.mrf.mxu0
    %v4363 = vadd.f32 %v4212, %v4362
    %4364 = vmatmul.bf16.gmra.mxu0 %v4093
    %v4365 = vpop.f32.mrf.mxu0
    %v4366 = vadd.f32 %v4212, %v4365
    %v4367 = vpop.f32.mrf.mxu0
    %v4368 = vadd.f32 %v4212, %v4367
    %4369 = vmatmul.bf16.gmra.mxu0 %v4096
    %v4370 = vpop.f32.mrf.mxu0
    %v4371 = vadd.f32 %v4212, %v4370
    %v4372 = vpop.f32.mrf.mxu0
    %v4373 = vadd.f32 %v4212, %v4372
    %4374 = vmatmul.bf16.gmra.mxu0 %v4099
    %v4375 = vpop.f32.mrf.mxu0
    %v4376 = vadd.f32 %v4212, %v4375
    %v4377 = vpop.f32.mrf.mxu0
    %v4378 = vadd.f32 %v4212, %v4377
    %4379 = vmatmul.bf16.gmra.mxu0 %v4102
    %v4380 = vpop.f32.mrf.mxu0
    %v4381 = vadd.f32 %v4212, %v4380
    %v4382 = vpop.f32.mrf.mxu0
    %v4383 = vadd.f32 %v4212, %v4382
    %4384 = vmatmul.bf16.gmra.mxu0 %v4105
    %v4385 = vpop.f32.mrf.mxu0
    %v4386 = vadd.f32 %v4212, %v4385
    %v4387 = vpop.f32.mrf.mxu0
    %v4388 = vadd.f32 %v4212, %v4387
    %4389 = vmatmul.bf16.gmra.mxu0 %v4108
    %v4390 = vpop.f32.mrf.mxu0
    %v4391 = vadd.f32 %v4212, %v4390
    %v4392 = vpop.f32.mrf.mxu0
    %v4393 = vadd.f32 %v4212, %v4392
    %4394 = vdwg.mxu0
    %4395 = vmatpush.bf16.msra.mxu0 %v4301
    %4396 = vmatpush.bf16.msra.mxu0 %v4300
    %4397 = vmatpush.bf16.msra.mxu0 %v4299
    %4398 = vmatpush.bf16.msra.mxu0 %v4298
    %4399 = vmatpush.bf16.msra.mxu0 %v4297
    %4400 = vmatpush.bf16.msra.mxu0 %v4296
    %4401 = vmatpush.bf16.msra.mxu0 %v4295
    %4402 = vmatpush.bf16.msra.mxu0 %v4294
    %4403 = vmatmul.bf16.gmra.mxu0 %v4151
    %v4404 = vpop.f32.mrf.mxu0
    %v4405 = vadd.f32 %v4356, %v4404
    %v4406 = vpop.f32.mrf.mxu0
    %v4407 = vadd.f32 %v4358, %v4406
    %4408 = vmatmul.bf16.gmra.mxu0 %v4154
    %v4409 = vpop.f32.mrf.mxu0
    %v4410 = vadd.f32 %v4361, %v4409
    %v4411 = vpop.f32.mrf.mxu0
    %v4412 = vadd.f32 %v4363, %v4411
    %4413 = vmatmul.bf16.gmra.mxu0 %v4157
    %v4414 = vpop.f32.mrf.mxu0
    %v4415 = vadd.f32 %v4366, %v4414
    %v4416 = vpop.f32.mrf.mxu0
    %v4417 = vadd.f32 %v4368, %v4416
    %4418 = vmatmul.bf16.gmra.mxu0 %v4160
    %v4419 = vpop.f32.mrf.mxu0
    %v4420 = vadd.f32 %v4371, %v4419
    %v4421 = vpop.f32.mrf.mxu0
    %v4422 = vadd.f32 %v4373, %v4421
    %4423 = vmatmul.bf16.gmra.mxu0 %v4163
    %v4424 = vpop.f32.mrf.mxu0
    %v4425 = vadd.f32 %v4376, %v4424
    %v4426 = vpop.f32.mrf.mxu0
    %v4427 = vadd.f32 %v4378, %v4426
    %4428 = vmatmul.bf16.gmra.mxu0 %v4166
    %v4429 = vpop.f32.mrf.mxu0
    %v4430 = vadd.f32 %v4381, %v4429
    %v4431 = vpop.f32.mrf.mxu0
    %v4432 = vadd.f32 %v4383, %v4431
    %4433 = vmatmul.bf16.gmra.mxu0 %v4169
    %v4434 = vpop.f32.mrf.mxu0
    %v4435 = vadd.f32 %v4386, %v4434
    %v4436 = vpop.f32.mrf.mxu0
    %v4437 = vadd.f32 %v4388, %v4436
    %4438 = vmatmul.bf16.gmra.mxu0 %v4172
    %v4439 = vpop.f32.mrf.mxu0
    %v4440 = vadd.f32 %v4391, %v4439
    %v4441 = vpop.f32.mrf.mxu0
    %v4442 = vadd.f32 %v4393, %v4441
    %4443 = vdwg.mxu0
    %4444 = vmatpush.bf16.msra.mxu0 0
    %4445 = vmatpush.bf16.msra.mxu0 0
    %4446 = vmatpush.bf16.msra.mxu0 0
    %4447 = vmatpush.bf16.msra.mxu0 0
    %4448 = vmatpush.bf16.msra.mxu0 0
    %4449 = vmatpush.bf16.msra.mxu0 0
    %4450 = vmatpush.bf16.msra.mxu0 %v4303
    %4451 = vmatpush.bf16.msra.mxu0 %v4302
    %4452 = vmatmul.bf16.gmra.mxu0 %v4323
    %v4453 = vpop.f32.mrf.mxu0
    %v4454 = vadd.f32 %v4405, %v4453
    %v4455 = vpop.f32.mrf.mxu0
    %v4456 = vadd.f32 %v4407, %v4455
    %4457 = vmatmul.bf16.gmra.mxu0 %v4326
    %v4458 = vpop.f32.mrf.mxu0
    %v4459 = vadd.f32 %v4410, %v4458
    %v4460 = vpop.f32.mrf.mxu0
    %v4461 = vadd.f32 %v4412, %v4460
    %4462 = vmatmul.bf16.gmra.mxu0 %v4329
    %v4463 = vpop.f32.mrf.mxu0
    %v4464 = vadd.f32 %v4415, %v4463
    %v4465 = vpop.f32.mrf.mxu0
    %v4466 = vadd.f32 %v4417, %v4465
    %4467 = vmatmul.bf16.gmra.mxu0 %v4332
    %v4468 = vpop.f32.mrf.mxu0
    %v4469 = vadd.f32 %v4420, %v4468
    %v4470 = vpop.f32.mrf.mxu0
    %v4471 = vadd.f32 %v4422, %v4470
    %4472 = vmatmul.bf16.gmra.mxu0 %v4335
    %v4473 = vpop.f32.mrf.mxu0
    %v4474 = vadd.f32 %v4425, %v4473
    %v4475 = vpop.f32.mrf.mxu0
    %v4476 = vadd.f32 %v4427, %v4475
    %4477 = vmatmul.bf16.gmra.mxu0 %v4338
    %v4478 = vpop.f32.mrf.mxu0
    %v4479 = vadd.f32 %v4430, %v4478
    %v4480 = vpop.f32.mrf.mxu0
    %v4481 = vadd.f32 %v4432, %v4480
    %4482 = vmatmul.bf16.gmra.mxu0 %v4341
    %v4483 = vpop.f32.mrf.mxu0
    %v4484 = vadd.f32 %v4435, %v4483
    %v4485 = vpop.f32.mrf.mxu0
    %v4486 = vadd.f32 %v4437, %v4485
    %4487 = vmatmul.bf16.gmra.mxu0 %v4344
    %v4488 = vpop.f32.mrf.mxu0
    %v4489 = vadd.f32 %v4440, %v4488
    %v4490 = vpop.f32.mrf.mxu0
    %v4491 = vadd.f32 %v4442, %v4490
    %4492 = vdwg.mxu0
    %v4493 = vmax.f32 %v4454, 0.0
    %v4494 = vmax.f32 %v4456, 0.0
    %v4495 = vmax.f32 %v4459, 0.0
    %v4496 = vmax.f32 %v4461, 0.0
    %v4497 = vmax.f32 %v4464, 0.0
    %v4498 = vmax.f32 %v4466, 0.0
    %v4499 = vmax.f32 %v4469, 0.0
    %v4500 = vmax.f32 %v4471, 0.0
    %v4501 = vmax.f32 %v4474, 0.0
    %v4502 = vmax.f32 %v4476, 0.0
    %v4503 = vmax.f32 %v4479, 0.0
    %v4504 = vmax.f32 %v4481, 0.0
    %v4505 = vmax.f32 %v4484, 0.0
    %v4506 = vmax.f32 %v4486, 0.0
    %v4507 = vmax.f32 %v4489, 0.0
    %v4508 = vmax.f32 %v4491, 0.0
    %v4509 = vmax.f32 %v4493, %v4494
    %v4510 = vmax.f32 %v4495, %v4496
    %v4511 = vmax.f32 %v4497, %v4498
    %v4512 = vmax.f32 %v4499, %v4500
    %v4513 = vmax.f32 %v4501, %v4502
    %v4514 = vmax.f32 %v4503, %v4504
    %v4515 = vmax.f32 %v4505, %v4506
    %v4516 = vmax.f32 %v4507, %v4508
    %v4525 = vrot.slane %v4509, 2
    %v4526 = vrot.slane %v4509, 4
    %v4527 = vrot.slane %v4509, 6
    %v4528 = vrot.slane %v4510, 2
    %v4529 = vrot.slane %v4510, 4
    %v4530 = vrot.slane %v4510, 6
    %v4531 = vrot.slane %v4511, 2
    %v4532 = vrot.slane %v4511, 4
    %v4533 = vrot.slane %v4511, 6
    %v4534 = vrot.slane %v4512, 2
    %v4535 = vrot.slane %v4512, 4
    %v4536 = vrot.slane %v4512, 6
    %v4537 = vrot.slane %v4513, 2
    %v4538 = vrot.slane %v4513, 4
    %v4539 = vrot.slane %v4513, 6
    %v4540 = vrot.slane %v4514, 2
    %v4541 = vrot.slane %v4514, 4
    %v4542 = vrot.slane %v4514, 6
    %v4543 = vrot.slane %v4515, 2
    %v4544 = vrot.slane %v4515, 4
    %v4545 = vrot.slane %v4515, 6
    %v4546 = vrot.slane %v4516, 2
    %v4547 = vrot.slane %v4516, 4
    %v4548 = vrot.slane %v4516, 6
    %vm4573 = vcmask 517120
    %v4574 = vsel %vm4573, %v4509, -inf
    %v4575 = vrot.slane %v4574, 4
    %v4576 = vmax.f32 %v4574, %v4575
    %v4577 = vrot.slane %v4576, 2
    %v4578 = vmax.f32 %v4576, %v4577
    %v4579 = vrot.slane %v4578, 1
    %v4580 = vmax.f32 %v4578, %v4579
    %v4581 = vsel %vm4573, %v4525, -inf
    %v4582 = vrot.slane %v4581, 4
    %v4583 = vmax.f32 %v4581, %v4582
    %v4584 = vrot.slane %v4583, 2
    %v4585 = vmax.f32 %v4583, %v4584
    %v4586 = vrot.slane %v4585, 1
    %v4587 = vmax.f32 %v4585, %v4586
    %v4588 = vsel %vm4573, %v4526, -inf
    %v4589 = vrot.slane %v4588, 4
    %v4590 = vmax.f32 %v4588, %v4589
    %v4591 = vrot.slane %v4590, 2
    %v4592 = vmax.f32 %v4590, %v4591
    %v4593 = vrot.slane %v4592, 1
    %v4594 = vmax.f32 %v4592, %v4593
    %v4595 = vsel %vm4573, %v4527, -inf
    %v4596 = vrot.slane %v4595, 4
    %v4597 = vmax.f32 %v4595, %v4596
    %v4598 = vrot.slane %v4597, 2
    %v4599 = vmax.f32 %v4597, %v4598
    %v4600 = vrot.slane %v4599, 1
    %v4601 = vmax.f32 %v4599, %v4600
    %v4602 = vsel %vm4573, %v4510, -inf
    %v4603 = vrot.slane %v4602, 4
    %v4604 = vmax.f32 %v4602, %v4603
    %v4605 = vrot.slane %v4604, 2
    %v4606 = vmax.f32 %v4604, %v4605
    %v4607 = vrot.slane %v4606, 1
    %v4608 = vmax.f32 %v4606, %v4607
    %v4609 = vsel %vm4573, %v4528, -inf
    %v4610 = vrot.slane %v4609, 4
    %v4611 = vmax.f32 %v4609, %v4610
    %v4612 = vrot.slane %v4611, 2
    %v4613 = vmax.f32 %v4611, %v4612
    %v4614 = vrot.slane %v4613, 1
    %v4615 = vmax.f32 %v4613, %v4614
    %v4616 = vsel %vm4573, %v4529, -inf
    %v4617 = vrot.slane %v4616, 4
    %v4618 = vmax.f32 %v4616, %v4617
    %v4619 = vrot.slane %v4618, 2
    %v4620 = vmax.f32 %v4618, %v4619
    %v4621 = vrot.slane %v4620, 1
    %v4622 = vmax.f32 %v4620, %v4621
    %v4623 = vsel %vm4573, %v4530, -inf
    %v4624 = vrot.slane %v4623, 4
    %v4625 = vmax.f32 %v4623, %v4624
    %v4626 = vrot.slane %v4625, 2
    %v4627 = vmax.f32 %v4625, %v4626
    %v4628 = vrot.slane %v4627, 1
    %v4629 = vmax.f32 %v4627, %v4628
    %v4630 = vsel %vm4573, %v4511, -inf
    %v4631 = vrot.slane %v4630, 4
    %v4632 = vmax.f32 %v4630, %v4631
    %v4633 = vrot.slane %v4632, 2
    %v4634 = vmax.f32 %v4632, %v4633
    %v4635 = vrot.slane %v4634, 1
    %v4636 = vmax.f32 %v4634, %v4635
    %v4637 = vsel %vm4573, %v4531, -inf
    %v4638 = vrot.slane %v4637, 4
    %v4639 = vmax.f32 %v4637, %v4638
    %v4640 = vrot.slane %v4639, 2
    %v4641 = vmax.f32 %v4639, %v4640
    %v4642 = vrot.slane %v4641, 1
    %v4643 = vmax.f32 %v4641, %v4642
    %v4644 = vsel %vm4573, %v4532, -inf
    %v4645 = vrot.slane %v4644, 4
    %v4646 = vmax.f32 %v4644, %v4645
    %v4647 = vrot.slane %v4646, 2
    %v4648 = vmax.f32 %v4646, %v4647
    %v4649 = vrot.slane %v4648, 1
    %v4650 = vmax.f32 %v4648, %v4649
    %v4651 = vsel %vm4573, %v4533, -inf
    %v4652 = vrot.slane %v4651, 4
    %v4653 = vmax.f32 %v4651, %v4652
    %v4654 = vrot.slane %v4653, 2
    %v4655 = vmax.f32 %v4653, %v4654
    %v4656 = vrot.slane %v4655, 1
    %v4657 = vmax.f32 %v4655, %v4656
    %v4658 = vsel %vm4573, %v4512, -inf
    %v4659 = vrot.slane %v4658, 4
    %v4660 = vmax.f32 %v4658, %v4659
    %v4661 = vrot.slane %v4660, 2
    %v4662 = vmax.f32 %v4660, %v4661
    %v4663 = vrot.slane %v4662, 1
    %v4664 = vmax.f32 %v4662, %v4663
    %v4665 = vsel %vm4573, %v4534, -inf
    %v4666 = vrot.slane %v4665, 4
    %v4667 = vmax.f32 %v4665, %v4666
    %v4668 = vrot.slane %v4667, 2
    %v4669 = vmax.f32 %v4667, %v4668
    %v4670 = vrot.slane %v4669, 1
    %v4671 = vmax.f32 %v4669, %v4670
    %v4672 = vsel %vm4573, %v4535, -inf
    %v4673 = vrot.slane %v4672, 4
    %v4674 = vmax.f32 %v4672, %v4673
    %v4675 = vrot.slane %v4674, 2
    %v4676 = vmax.f32 %v4674, %v4675
    %v4677 = vrot.slane %v4676, 1
    %v4678 = vmax.f32 %v4676, %v4677
    %v4679 = vsel %vm4573, %v4536, -inf
    %v4680 = vrot.slane %v4679, 4
    %v4681 = vmax.f32 %v4679, %v4680
    %v4682 = vrot.slane %v4681, 2
    %v4683 = vmax.f32 %v4681, %v4682
    %v4684 = vrot.slane %v4683, 1
    %v4685 = vmax.f32 %v4683, %v4684
    %v4686 = vsel %vm4573, %v4513, -inf
    %v4687 = vrot.slane %v4686, 4
    %v4688 = vmax.f32 %v4686, %v4687
    %v4689 = vrot.slane %v4688, 2
    %v4690 = vmax.f32 %v4688, %v4689
    %v4691 = vrot.slane %v4690, 1
    %v4692 = vmax.f32 %v4690, %v4691
    %v4693 = vsel %vm4573, %v4537, -inf
    %v4694 = vrot.slane %v4693, 4
    %v4695 = vmax.f32 %v4693, %v4694
    %v4696 = vrot.slane %v4695, 2
    %v4697 = vmax.f32 %v4695, %v4696
    %v4698 = vrot.slane %v4697, 1
    %v4699 = vmax.f32 %v4697, %v4698
    %v4700 = vsel %vm4573, %v4538, -inf
    %v4701 = vrot.slane %v4700, 4
    %v4702 = vmax.f32 %v4700, %v4701
    %v4703 = vrot.slane %v4702, 2
    %v4704 = vmax.f32 %v4702, %v4703
    %v4705 = vrot.slane %v4704, 1
    %v4706 = vmax.f32 %v4704, %v4705
    %v4707 = vsel %vm4573, %v4539, -inf
    %v4708 = vrot.slane %v4707, 4
    %v4709 = vmax.f32 %v4707, %v4708
    %v4710 = vrot.slane %v4709, 2
    %v4711 = vmax.f32 %v4709, %v4710
    %v4712 = vrot.slane %v4711, 1
    %v4713 = vmax.f32 %v4711, %v4712
    %v4714 = vsel %vm4573, %v4514, -inf
    %v4715 = vrot.slane %v4714, 4
    %v4716 = vmax.f32 %v4714, %v4715
    %v4717 = vrot.slane %v4716, 2
    %v4718 = vmax.f32 %v4716, %v4717
    %v4719 = vrot.slane %v4718, 1
    %v4720 = vmax.f32 %v4718, %v4719
    %v4721 = vsel %vm4573, %v4540, -inf
    %v4722 = vrot.slane %v4721, 4
    %v4723 = vmax.f32 %v4721, %v4722
    %v4724 = vrot.slane %v4723, 2
    %v4725 = vmax.f32 %v4723, %v4724
    %v4726 = vrot.slane %v4725, 1
    %v4727 = vmax.f32 %v4725, %v4726
    %v4728 = vsel %vm4573, %v4541, -inf
    %v4729 = vrot.slane %v4728, 4
    %v4730 = vmax.f32 %v4728, %v4729
    %v4731 = vrot.slane %v4730, 2
    %v4732 = vmax.f32 %v4730, %v4731
    %v4733 = vrot.slane %v4732, 1
    %v4734 = vmax.f32 %v4732, %v4733
    %v4735 = vsel %vm4573, %v4542, -inf
    %v4736 = vrot.slane %v4735, 4
    %v4737 = vmax.f32 %v4735, %v4736
    %v4738 = vrot.slane %v4737, 2
    %v4739 = vmax.f32 %v4737, %v4738
    %v4740 = vrot.slane %v4739, 1
    %v4741 = vmax.f32 %v4739, %v4740
    %v4742 = vsel %vm4573, %v4515, -inf
    %v4743 = vrot.slane %v4742, 4
    %v4744 = vmax.f32 %v4742, %v4743
    %v4745 = vrot.slane %v4744, 2
    %v4746 = vmax.f32 %v4744, %v4745
    %v4747 = vrot.slane %v4746, 1
    %v4748 = vmax.f32 %v4746, %v4747
    %v4749 = vsel %vm4573, %v4543, -inf
    %v4750 = vrot.slane %v4749, 4
    %v4751 = vmax.f32 %v4749, %v4750
    %v4752 = vrot.slane %v4751, 2
    %v4753 = vmax.f32 %v4751, %v4752
    %v4754 = vrot.slane %v4753, 1
    %v4755 = vmax.f32 %v4753, %v4754
    %v4756 = vsel %vm4573, %v4544, -inf
    %v4757 = vrot.slane %v4756, 4
    %v4758 = vmax.f32 %v4756, %v4757
    %v4759 = vrot.slane %v4758, 2
    %v4760 = vmax.f32 %v4758, %v4759
    %v4761 = vrot.slane %v4760, 1
    %v4762 = vmax.f32 %v4760, %v4761
    %v4763 = vsel %vm4573, %v4545, -inf
    %v4764 = vrot.slane %v4763, 4
    %v4765 = vmax.f32 %v4763, %v4764
    %v4766 = vrot.slane %v4765, 2
    %v4767 = vmax.f32 %v4765, %v4766
    %v4768 = vrot.slane %v4767, 1
    %v4769 = vmax.f32 %v4767, %v4768
    %v4770 = vsel %vm4573, %v4516, -inf
    %v4771 = vrot.slane %v4770, 4
    %v4772 = vmax.f32 %v4770, %v4771
    %v4773 = vrot.slane %v4772, 2
    %v4774 = vmax.f32 %v4772, %v4773
    %v4775 = vrot.slane %v4774, 1
    %v4776 = vmax.f32 %v4774, %v4775
    %v4777 = vsel %vm4573, %v4546, -inf
    %v4778 = vrot.slane %v4777, 4
    %v4779 = vmax.f32 %v4777, %v4778
    %v4780 = vrot.slane %v4779, 2
    %v4781 = vmax.f32 %v4779, %v4780
    %v4782 = vrot.slane %v4781, 1
    %v4783 = vmax.f32 %v4781, %v4782
    %v4784 = vsel %vm4573, %v4547, -inf
    %v4785 = vrot.slane %v4784, 4
    %v4786 = vmax.f32 %v4784, %v4785
    %v4787 = vrot.slane %v4786, 2
    %v4788 = vmax.f32 %v4786, %v4787
    %v4789 = vrot.slane %v4788, 1
    %v4790 = vmax.f32 %v4788, %v4789
    %v4791 = vsel %vm4573, %v4548, -inf
    %v4792 = vrot.slane %v4791, 4
    %v4793 = vmax.f32 %v4791, %v4792
    %v4794 = vrot.slane %v4793, 2
    %v4795 = vmax.f32 %v4793, %v4794
    %v4796 = vrot.slane %v4795, 1
    %v4797 = vmax.f32 %v4795, %v4796
    %vm4798 = vcmask 518144
    %4799 = vst.msk [vmem:[#allocation3] sm:$0x7] %vm4798, 0
    %4800 = vst.msk [vmem:[#allocation3 + $0x18] sm:$0x7] %vm4798, 0
    %s4801 = scalar_lea.vmem [#allocation3], 20
    %4802 = vst.msk [vmem:[%s4801] sm:$0x7] %vm4798, 0
    %4803 = vst.msk [vmem:[%s4801 + $0x18] sm:$0x7] %vm4798, 0
    %vm4804 = vcmask 516096
    %vm4805 = vmand %vm4804, %vm1799
    %v4806 = vld [vmem:[#allocation3] sm:$0x1]
    %v4807 = vsel %vm4805, 0, %v4806
    %4808 = vst [vmem:[#allocation3] sm:$0x1] %v4807
    %v4809 = vld [vmem:[#allocation3 + $0x4] sm:$0x1]
    %v4810 = vsel %vm4805, 0, %v4809
    %4811 = vst [vmem:[#allocation3 + $0x4] sm:$0x1] %v4810
    %v4812 = vld [vmem:[#allocation3 + $0x8] sm:$0x1]
    %v4813 = vsel %vm4805, 0, %v4812
    %4814 = vst [vmem:[#allocation3 + $0x8] sm:$0x1] %v4813
    %v4815 = vld [vmem:[#allocation3 + $0xc] sm:$0x1]
    %v4816 = vsel %vm4805, 0, %v4815
    %4817 = vst [vmem:[#allocation3 + $0xc] sm:$0x1] %v4816
    %v4818 = vld [vmem:[#allocation3 + $0x10] sm:$0x1]
    %v4819 = vsel %vm4805, 0, %v4818
    %4820 = vst [vmem:[#allocation3 + $0x10] sm:$0x1] %v4819
    %v4821 = vld [vmem:[#allocation3 + $0x14] sm:$0x1]
    %v4822 = vsel %vm4805, 0, %v4821
    %4823 = vst [vmem:[#allocation3 + $0x14] sm:$0x1] %v4822
    %v4824 = vld [vmem:[#allocation3 + $0x18] sm:$0x1]
    %v4825 = vsel %vm4805, 0, %v4824
    %4826 = vst [vmem:[#allocation3 + $0x18] sm:$0x1] %v4825
    %v4827 = vld [vmem:[#allocation3 + $0x1c] sm:$0x1]
    %v4828 = vsel %vm4805, 0, %v4827
    %4829 = vst [vmem:[#allocation3 + $0x1c] sm:$0x1] %v4828
    %v4830 = vld [vmem:[#allocation3 + $0x20] sm:$0x1]
    %v4831 = vsel %vm4805, 0, %v4830
    %4832 = vst [vmem:[#allocation3 + $0x20] sm:$0x1] %v4831
    %v4833 = vld [vmem:[#allocation3 + $0x24] sm:$0x1]
    %v4834 = vsel %vm4805, 0, %v4833
    %4835 = vst [vmem:[#allocation3 + $0x24] sm:$0x1] %v4834
    %v4836 = vld [vmem:[#allocation3 + $0x28] sm:$0x1]
    %v4837 = vsel %vm4805, 0, %v4836
    %4838 = vst [vmem:[#allocation3 + $0x28] sm:$0x1] %v4837
    %v4839 = vld [vmem:[#allocation3 + $0x2c] sm:$0x1]
    %v4840 = vsel %vm4805, 0, %v4839
    %4841 = vst [vmem:[#allocation3 + $0x2c] sm:$0x1] %v4840
    %vm4842 = vcmask 518146
    %vm4843 = vsmask.f32 7946
    %vm4844 = vmand %vm4842, %vm4843
    %v4845 = vld [vmem:[#allocation3] sm:$0x4]
    %v4846 = vsel %vm4844, 0, %v4845
    %4847 = vst [vmem:[#allocation3] sm:$0x4] %v4846
    %v4848 = vld [vmem:[#allocation3 + $0x4] sm:$0x4]
    %v4849 = vsel %vm4844, 0, %v4848
    %4850 = vst [vmem:[#allocation3 + $0x4] sm:$0x4] %v4849
    %v4851 = vld [vmem:[#allocation3 + $0x8] sm:$0x4]
    %v4852 = vsel %vm4844, 0, %v4851
    %4853 = vst [vmem:[#allocation3 + $0x8] sm:$0x4] %v4852
    %v4854 = vld [vmem:[#allocation3 + $0xc] sm:$0x4]
    %v4855 = vsel %vm4844, 0, %v4854
    %4856 = vst [vmem:[#allocation3 + $0xc] sm:$0x4] %v4855
    %v4857 = vld [vmem:[#allocation3 + $0x10] sm:$0x4]
    %v4858 = vsel %vm4844, 0, %v4857
    %4859 = vst [vmem:[#allocation3 + $0x10] sm:$0x4] %v4858
    %v4860 = vld [vmem:[#allocation3 + $0x14] sm:$0x4]
    %v4861 = vsel %vm4844, 0, %v4860
    %4862 = vst [vmem:[#allocation3 + $0x14] sm:$0x4] %v4861
    %v4863 = vld [vmem:[#allocation3 + $0x18] sm:$0x4]
    %v4864 = vsel %vm4844, 0, %v4863
    %4865 = vst [vmem:[#allocation3 + $0x18] sm:$0x4] %v4864
    %v4866 = vld [vmem:[#allocation3 + $0x1c] sm:$0x4]
    %v4867 = vsel %vm4844, 0, %v4866
    %4868 = vst [vmem:[#allocation3 + $0x1c] sm:$0x4] %v4867
    %v4869 = vld [vmem:[#allocation3 + $0x20] sm:$0x4]
    %v4870 = vsel %vm4844, 0, %v4869
    %4871 = vst [vmem:[#allocation3 + $0x20] sm:$0x4] %v4870
    %v4872 = vld [vmem:[#allocation3 + $0x24] sm:$0x4]
    %v4873 = vsel %vm4844, 0, %v4872
    %4874 = vst [vmem:[#allocation3 + $0x24] sm:$0x4] %v4873
    %v4875 = vld [vmem:[#allocation3 + $0x28] sm:$0x4]
    %v4876 = vsel %vm4844, 0, %v4875
    %4877 = vst [vmem:[#allocation3 + $0x28] sm:$0x4] %v4876
    %v4878 = vld [vmem:[#allocation3 + $0x2c] sm:$0x4]
    %v4879 = vsel %vm4844, 0, %v4878
    %4880 = vst [vmem:[#allocation3 + $0x2c] sm:$0x4] %v4879
    %v4881 = vpack.c.bf16 %v4580, %v4580
    %v4882 = vpack.c.bf16 %v4587, %v4587
    %v4883 = vpack.c.bf16 %v4594, %v4594
    %v4884 = vpack.c.bf16 %v4601, %v4601
    %v4885 = vpack.c.bf16 %v4608, %v4608
    %v4886 = vpack.c.bf16 %v4615, %v4615
    %v4887 = vpack.c.bf16 %v4622, %v4622
    %v4888 = vpack.c.bf16 %v4629, %v4629
    %v4889 = vpack.c.bf16 %v4636, %v4636
    %v4890 = vpack.c.bf16 %v4643, %v4643
    %v4891 = vpack.c.bf16 %v4650, %v4650
    %v4892 = vpack.c.bf16 %v4657, %v4657
    %v4893 = vpack.c.bf16 %v4664, %v4664
    %v4894 = vpack.c.bf16 %v4671, %v4671
    %v4895 = vpack.c.bf16 %v4678, %v4678
    %v4896 = vpack.c.bf16 %v4685, %v4685
    %v4897 = vpack.c.bf16 %v4692, %v4692
    %v4898 = vpack.c.bf16 %v4699, %v4699
    %v4899 = vpack.c.bf16 %v4706, %v4706
    %v4900 = vpack.c.bf16 %v4713, %v4713
    %v4901 = vpack.c.bf16 %v4720, %v4720
    %v4902 = vpack.c.bf16 %v4727, %v4727
    %v4903 = vpack.c.bf16 %v4734, %v4734
    %v4904 = vpack.c.bf16 %v4741, %v4741
    %v4905 = vpack.c.bf16 %v4748, %v4748
    %v4906 = vpack.c.bf16 %v4755, %v4755
    %v4907 = vpack.c.bf16 %v4762, %v4762
    %v4908 = vpack.c.bf16 %v4769, %v4769
    %v4909 = vpack.c.bf16 %v4776, %v4776
    %v4910 = vpack.c.bf16 %v4783, %v4783
    %v4911 = vpack.c.bf16 %v4790, %v4790
    %v4912 = vpack.c.bf16 %v4797, %v4797
    %v4945 = vunpack.c.l.b16 %v4881
    %v4946 = vunpack.c.l.b16 %v4882
    %v4947 = vunpack.c.l.b16 %v4883
    %v4948 = vunpack.c.l.b16 %v4884
    %v4949 = vunpack.c.l.b16 %v4885
    %v4950 = vunpack.c.l.b16 %v4886
    %v4951 = vunpack.c.l.b16 %v4887
    %v4952 = vunpack.c.l.b16 %v4888
    %v4953 = vunpack.c.l.b16 %v4889
    %v4954 = vunpack.c.l.b16 %v4890
    %v4955 = vunpack.c.l.b16 %v4891
    %v4956 = vunpack.c.l.b16 %v4892
    %v4957 = vunpack.c.l.b16 %v4893
    %v4958 = vunpack.c.l.b16 %v4894
    %v4959 = vunpack.c.l.b16 %v4895
    %v4960 = vunpack.c.l.b16 %v4896
    %v4961 = vunpack.c.l.b16 %v4897
    %v4962 = vunpack.c.l.b16 %v4898
    %v4963 = vunpack.c.l.b16 %v4899
    %v4964 = vunpack.c.l.b16 %v4900
    %v4965 = vunpack.c.l.b16 %v4901
    %v4966 = vunpack.c.l.b16 %v4902
    %v4967 = vunpack.c.l.b16 %v4903
    %v4968 = vunpack.c.l.b16 %v4904
    %v4969 = vunpack.c.l.b16 %v4905
    %v4970 = vunpack.c.l.b16 %v4906
    %v4971 = vunpack.c.l.b16 %v4907
    %v4972 = vunpack.c.l.b16 %v4908
    %v4973 = vunpack.c.l.b16 %v4909
    %v4974 = vunpack.c.l.b16 %v4910
    %v4975 = vunpack.c.l.b16 %v4911
    %v4976 = vunpack.c.l.b16 %v4912
    %v4977 = vsel %vm2307, %v4946, %v4945
    %v4978 = vsel %vm2309, %v4947, %v4977
    %v4979 = vsel %vm2311, %v4948, %v4978
    %v4980 = vsel %vm2307, %v4950, %v4949
    %v4981 = vsel %vm2309, %v4951, %v4980
    %v4982 = vsel %vm2311, %v4952, %v4981
    %v4983 = vsel %vm2307, %v4954, %v4953
    %v4984 = vsel %vm2309, %v4955, %v4983
    %v4985 = vsel %vm2311, %v4956, %v4984
    %v4986 = vsel %vm2307, %v4958, %v4957
    %v4987 = vsel %vm2309, %v4959, %v4986
    %v4988 = vsel %vm2311, %v4960, %v4987
    %v4989 = vsel %vm2307, %v4962, %v4961
    %v4990 = vsel %vm2309, %v4963, %v4989
    %v4991 = vsel %vm2311, %v4964, %v4990
    %v4992 = vsel %vm2307, %v4966, %v4965
    %v4993 = vsel %vm2309, %v4967, %v4992
    %v4994 = vsel %vm2311, %v4968, %v4993
    %v4995 = vsel %vm2307, %v4970, %v4969
    %v4996 = vsel %vm2309, %v4971, %v4995
    %v4997 = vsel %vm2311, %v4972, %v4996
    %v4998 = vsel %vm2307, %v4974, %v4973
    %v4999 = vsel %vm2309, %v4975, %v4998
    %v5000 = vsel %vm2311, %v4976, %v4999
    %v5001 = vpack.c.b16 %v4979, %v4979
    %v5002 = vpack.c.b16 %v4982, %v4982
    %v5003 = vpack.c.b16 %v4985, %v4985
    %v5004 = vpack.c.b16 %v4988, %v4988
    %v5005 = vpack.c.b16 %v4991, %v4991
    %v5006 = vpack.c.b16 %v4994, %v4994
    %v5007 = vpack.c.b16 %v4997, %v4997
    %v5008 = vpack.c.b16 %v5000, %v5000
    %s5017 = scalar_lea.vmem [#allocation3], 4
    %vm5018 = vcmask 518144
    %vm5019 = vsmask.f32 2306
    %vm5020 = vmand %vm5018, %vm5019
    %v5021 = vld [vmem:[%s5017] sm:$0x7]
    %v5022 = vsel %vm5020, %v5001, %v5021
    %5023 = vst [vmem:[%s5017] sm:$0x7] %v5022
    %v5024 = vld [vmem:[%s5017 + $0x4] sm:$0x7]
    %v5025 = vsel %vm5020, %v5002, %v5024
    %5026 = vst [vmem:[%s5017 + $0x4] sm:$0x7] %v5025
    %v5027 = vld [vmem:[%s5017 + $0x8] sm:$0x7]
    %v5028 = vsel %vm5020, %v5003, %v5027
    %5029 = vst [vmem:[%s5017 + $0x8] sm:$0x7] %v5028
    %v5030 = vld [vmem:[%s5017 + $0xc] sm:$0x7]
    %v5031 = vsel %vm5020, %v5004, %v5030
    %5032 = vst [vmem:[%s5017 + $0xc] sm:$0x7] %v5031
    %v5033 = vld [vmem:[%s5017 + $0x18] sm:$0x7]
    %v5034 = vsel %vm5020, %v5005, %v5033
    %5035 = vst [vmem:[%s5017 + $0x18] sm:$0x7] %v5034
    %v5036 = vld [vmem:[%s5017 + $0x1c] sm:$0x7]
    %v5037 = vsel %vm5020, %v5006, %v5036
    %5038 = vst [vmem:[%s5017 + $0x1c] sm:$0x7] %v5037
    %v5039 = vld [vmem:[%s5017 + $0x20] sm:$0x7]
    %v5040 = vsel %vm5020, %v5007, %v5039
    %5041 = vst [vmem:[%s5017 + $0x20] sm:$0x7] %v5040
    %v5042 = vld [vmem:[%s5017 + $0x24] sm:$0x7]
    %v5043 = vsel %vm5020, %v5008, %v5042
    %5044 = vst [vmem:[%s5017 + $0x24] sm:$0x7] %v5043
    %v5045 = vld [vmem:[#allocation3] sm:$0x3]
    %v5046 = vld [vmem:[#allocation3 + $0x4] sm:$0x3]
    %v5047 = vld [vmem:[#allocation3 + $0x8] sm:$0x3]
    %v5048 = vld [vmem:[#allocation3 + $0xc] sm:$0x3]
    %v5049 = vld [vmem:[#allocation3 + $0x18] sm:$0x3]
    %v5050 = vld [vmem:[#allocation3 + $0x1c] sm:$0x3]
    %v5051 = vld [vmem:[#allocation3 + $0x20] sm:$0x3]
    %v5052 = vld [vmem:[#allocation3 + $0x24] sm:$0x3]
    %v5053 = vld [vmem:[#allocation3] sm:$0x7]
    %v5054 = vld [vmem:[#allocation3 + $0x4] sm:$0x7]
    %v5055 = vld [vmem:[#allocation3 + $0x8] sm:$0x7]
    %v5056 = vld [vmem:[#allocation3 + $0xc] sm:$0x7]
    %v5057 = vld [vmem:[#allocation3 + $0x18] sm:$0x7]
    %v5058 = vld [vmem:[#allocation3 + $0x1c] sm:$0x7]
    %v5059 = vld [vmem:[#allocation3 + $0x20] sm:$0x7]
    %v5060 = vld [vmem:[#allocation3 + $0x24] sm:$0x7]
    %v5069 = vrot.slane %v5053, 2
    %v5070 = vrot.slane %v5054, 2
    %v5071 = vrot.slane %v5055, 2
    %v5072 = vrot.slane %v5056, 2
    %v5073 = vrot.slane %v5057, 2
    %v5074 = vrot.slane %v5058, 2
    %v5075 = vrot.slane %v5059, 2
    %v5076 = vrot.slane %v5060, 2
    %v5079 = vsel %vm397, %v5053, %v5069
    %vm5080 = vcmask 1043458
    %v5081 = vsel %vm5080, %v5053, %v5069
    %v5083 = vrot.slane %v5081, 2
    %v5086 = vsel %vm397, %v5054, %v5070
    %v5087 = vsel %vm5080, %v5054, %v5070
    %v5089 = vrot.slane %v5087, 2
    %v5092 = vsel %vm397, %v5055, %v5071
    %v5093 = vsel %vm5080, %v5055, %v5071
    %v5095 = vrot.slane %v5093, 2
    %v5098 = vsel %vm397, %v5056, %v5072
    %v5099 = vsel %vm5080, %v5056, %v5072
    %v5101 = vrot.slane %v5099, 2
    %v5104 = vsel %vm397, %v5057, %v5073
    %v5105 = vsel %vm5080, %v5057, %v5073
    %v5107 = vrot.slane %v5105, 2
    %v5110 = vsel %vm397, %v5058, %v5074
    %v5111 = vsel %vm5080, %v5058, %v5074
    %v5113 = vrot.slane %v5111, 2
    %v5116 = vsel %vm397, %v5059, %v5075
    %v5117 = vsel %vm5080, %v5059, %v5075
    %v5119 = vrot.slane %v5117, 2
    %v5122 = vsel %vm397, %v5060, %v5076
    %v5123 = vsel %vm5080, %v5060, %v5076
    %v5125 = vrot.slane %v5123, 2
    %vm5126 = vsmask.f32 1280
    %vm5127 = vsmask.f32 3336
    %vm5128 = vmor %vm5126, %vm5127
    %vm5129 = vsmask.f32 5392
    %vm5130 = vmor %vm5128, %vm5129
    %vm5131 = vsmask.f32 7448
    %vm5132 = vmor %vm5130, %vm5131
    %v5133 = vshrl.u32 %v5079, 16
    %v5135 = vrot.slane %v5133, 6
    %v5136 = vshll.u32 %v5079, 16
    %v5138 = vrot.slane %v5136, 7
    %v5139 = vor.u32 %v5135, %v5138
    %v5140 = vrot.slane %v5139, 2
    %v5142 = vshll.u32 %v5083, 16
    %v5144 = vrot.slane %v5142, 7
    %v5145 = vsel %vm5132, %v5140, %v5144
    %v5146 = vshrl.u32 %v5086, 16
    %v5148 = vrot.slane %v5146, 6
    %v5149 = vshll.u32 %v5086, 16
    %v5151 = vrot.slane %v5149, 7
    %v5152 = vor.u32 %v5148, %v5151
    %v5153 = vrot.slane %v5152, 2
    %v5155 = vshll.u32 %v5089, 16
    %v5157 = vrot.slane %v5155, 7
    %v5158 = vsel %vm5132, %v5153, %v5157
    %v5159 = vshrl.u32 %v5092, 16
    %v5161 = vrot.slane %v5159, 6
    %v5162 = vshll.u32 %v5092, 16
    %v5164 = vrot.slane %v5162, 7
    %v5165 = vor.u32 %v5161, %v5164
    %v5166 = vrot.slane %v5165, 2
    %v5168 = vshll.u32 %v5095, 16
    %v5170 = vrot.slane %v5168, 7
    %v5171 = vsel %vm5132, %v5166, %v5170
    %v5172 = vshrl.u32 %v5098, 16
    %v5174 = vrot.slane %v5172, 6
    %v5175 = vshll.u32 %v5098, 16
    %v5177 = vrot.slane %v5175, 7
    %v5178 = vor.u32 %v5174, %v5177
    %v5179 = vrot.slane %v5178, 2
    %v5181 = vshll.u32 %v5101, 16
    %v5183 = vrot.slane %v5181, 7
    %v5184 = vsel %vm5132, %v5179, %v5183
    %v5185 = vshrl.u32 %v5104, 16
    %v5187 = vrot.slane %v5185, 6
    %v5188 = vshll.u32 %v5104, 16
    %v5190 = vrot.slane %v5188, 7
    %v5191 = vor.u32 %v5187, %v5190
    %v5192 = vrot.slane %v5191, 2
    %v5194 = vshll.u32 %v5107, 16
    %v5196 = vrot.slane %v5194, 7
    %v5197 = vsel %vm5132, %v5192, %v5196
    %v5198 = vshrl.u32 %v5110, 16
    %v5200 = vrot.slane %v5198, 6
    %v5201 = vshll.u32 %v5110, 16
    %v5203 = vrot.slane %v5201, 7
    %v5204 = vor.u32 %v5200, %v5203
    %v5205 = vrot.slane %v5204, 2
    %v5207 = vshll.u32 %v5113, 16
    %v5209 = vrot.slane %v5207, 7
    %v5210 = vsel %vm5132, %v5205, %v5209
    %v5211 = vshrl.u32 %v5116, 16
    %v5213 = vrot.slane %v5211, 6
    %v5214 = vshll.u32 %v5116, 16
    %v5216 = vrot.slane %v5214, 7
    %v5217 = vor.u32 %v5213, %v5216
    %v5218 = vrot.slane %v5217, 2
    %v5220 = vshll.u32 %v5119, 16
    %v5222 = vrot.slane %v5220, 7
    %v5223 = vsel %vm5132, %v5218, %v5222
    %v5224 = vshrl.u32 %v5122, 16
    %v5226 = vrot.slane %v5224, 6
    %v5227 = vshll.u32 %v5122, 16
    %v5229 = vrot.slane %v5227, 7
    %v5230 = vor.u32 %v5226, %v5229
    %v5231 = vrot.slane %v5230, 2
    %v5233 = vshll.u32 %v5125, 16
    %v5235 = vrot.slane %v5233, 7
    %v5236 = vsel %vm5132, %v5231, %v5235
    %v5237 = vld [vmem:[#allocation3] sm:$0x6]
    %v5238 = vld [vmem:[#allocation3 + $0x4] sm:$0x6]
    %v5239 = vld [vmem:[#allocation3 + $0x8] sm:$0x6]
    %v5240 = vld [vmem:[#allocation3 + $0xc] sm:$0x6]
    %v5241 = vld [vmem:[#allocation3 + $0x18] sm:$0x6]
    %v5242 = vld [vmem:[#allocation3 + $0x1c] sm:$0x6]
    %v5243 = vld [vmem:[#allocation3 + $0x20] sm:$0x6]
    %v5244 = vld [vmem:[#allocation3 + $0x24] sm:$0x6]
    %v5253 = vrot.slane %v5237, 2
    %v5254 = vrot.slane %v5238, 2
    %v5255 = vrot.slane %v5239, 2
    %v5256 = vrot.slane %v5240, 2
    %v5257 = vrot.slane %v5241, 2
    %v5258 = vrot.slane %v5242, 2
    %v5259 = vrot.slane %v5243, 2
    %v5260 = vrot.slane %v5244, 2
    %v5263 = vsel %vm397, %v5237, %v5253
    %v5265 = vsel %vm5080, %v5237, %v5253
    %v5267 = vrot.slane %v5265, 2
    %v5270 = vsel %vm397, %v5238, %v5254
    %v5272 = vsel %vm5080, %v5238, %v5254
    %v5274 = vrot.slane %v5272, 2
    %v5277 = vsel %vm397, %v5239, %v5255
    %v5279 = vsel %vm5080, %v5239, %v5255
    %v5281 = vrot.slane %v5279, 2
    %v5284 = vsel %vm397, %v5240, %v5256
    %v5286 = vsel %vm5080, %v5240, %v5256
    %v5288 = vrot.slane %v5286, 2
    %v5291 = vsel %vm397, %v5241, %v5257
    %v5293 = vsel %vm5080, %v5241, %v5257
    %v5295 = vrot.slane %v5293, 2
    %v5298 = vsel %vm397, %v5242, %v5258
    %v5300 = vsel %vm5080, %v5242, %v5258
    %v5302 = vrot.slane %v5300, 2
    %v5305 = vsel %vm397, %v5243, %v5259
    %v5307 = vsel %vm5080, %v5243, %v5259
    %v5309 = vrot.slane %v5307, 2
    %v5312 = vsel %vm397, %v5244, %v5260
    %v5314 = vsel %vm5080, %v5244, %v5260
    %v5316 = vrot.slane %v5314, 2
    %vm5317 = vcmask 1040384
    %vm5318 = vcmask 1042434
    %vm5319 = vmor %vm5317, %vm5318
    %vm5320 = vcmask 1044484
    %vm5321 = vmor %vm5319, %vm5320
    %vm5322 = vcmask 1046534
    %vm5323 = vmor %vm5321, %vm5322
    %v5324 = vrot.slane %v5263, 7
    %v5325 = vrot.slane %v5324, 2
    %v5326 = vrot.slane %v5267, 7
    %v5327 = vsel %vm5323, %v5325, %v5326
    %v5328 = vrot.slane %v5270, 7
    %v5329 = vrot.slane %v5328, 2
    %v5330 = vrot.slane %v5274, 7
    %v5331 = vsel %vm5323, %v5329, %v5330
    %v5332 = vrot.slane %v5277, 7
    %v5333 = vrot.slane %v5332, 2
    %v5334 = vrot.slane %v5281, 7
    %v5335 = vsel %vm5323, %v5333, %v5334
    %v5336 = vrot.slane %v5284, 7
    %v5337 = vrot.slane %v5336, 2
    %v5338 = vrot.slane %v5288, 7
    %v5339 = vsel %vm5323, %v5337, %v5338
    %v5340 = vrot.slane %v5291, 7
    %v5341 = vrot.slane %v5340, 2
    %v5342 = vrot.slane %v5295, 7
    %v5343 = vsel %vm5323, %v5341, %v5342
    %v5344 = vrot.slane %v5298, 7
    %v5345 = vrot.slane %v5344, 2
    %v5346 = vrot.slane %v5302, 7
    %v5347 = vsel %vm5323, %v5345, %v5346
    %v5348 = vrot.slane %v5305, 7
    %v5349 = vrot.slane %v5348, 2
    %v5350 = vrot.slane %v5309, 7
    %v5351 = vsel %vm5323, %v5349, %v5350
    %v5352 = vrot.slane %v5312, 7
    %v5353 = vrot.slane %v5352, 2
    %v5354 = vrot.slane %v5316, 7
    %v5355 = vsel %vm5323, %v5353, %v5354
    %v5356 = vld [vmem:[%s5017] sm:$0x3]
    %v5357 = vld [vmem:[%s5017 + $0x4] sm:$0x3]
    %v5358 = vld [vmem:[%s5017 + $0x8] sm:$0x3]
    %v5359 = vld [vmem:[%s5017 + $0xc] sm:$0x3]
    %v5360 = vld [vmem:[%s5017 + $0x18] sm:$0x3]
    %v5361 = vld [vmem:[%s5017 + $0x1c] sm:$0x3]
    %v5362 = vld [vmem:[%s5017 + $0x20] sm:$0x3]
    %v5363 = vld [vmem:[%s5017 + $0x24] sm:$0x3]
    %v5364 = vld [vmem:[%s5017] sm:$0x7]
    %v5365 = vld [vmem:[%s5017 + $0x4] sm:$0x7]
    %v5366 = vld [vmem:[%s5017 + $0x8] sm:$0x7]
    %v5367 = vld [vmem:[%s5017 + $0xc] sm:$0x7]
    %v5368 = vld [vmem:[%s5017 + $0x18] sm:$0x7]
    %v5369 = vld [vmem:[%s5017 + $0x1c] sm:$0x7]
    %v5370 = vld [vmem:[%s5017 + $0x20] sm:$0x7]
    %v5371 = vld [vmem:[%s5017 + $0x24] sm:$0x7]
    %v5380 = vrot.slane %v5364, 2
    %v5381 = vrot.slane %v5365, 2
    %v5382 = vrot.slane %v5366, 2
    %v5383 = vrot.slane %v5367, 2
    %v5384 = vrot.slane %v5368, 2
    %v5385 = vrot.slane %v5369, 2
    %v5386 = vrot.slane %v5370, 2
    %v5387 = vrot.slane %v5371, 2
    %v5390 = vsel %vm397, %v5364, %v5380
    %v5391 = vsel %vm5080, %v5364, %v5380
    %v5393 = vrot.slane %v5391, 2
    %v5396 = vsel %vm397, %v5365, %v5381
    %v5397 = vsel %vm5080, %v5365, %v5381
    %v5399 = vrot.slane %v5397, 2
    %v5402 = vsel %vm397, %v5366, %v5382
    %v5403 = vsel %vm5080, %v5366, %v5382
    %v5405 = vrot.slane %v5403, 2
    %v5408 = vsel %vm397, %v5367, %v5383
    %v5409 = vsel %vm5080, %v5367, %v5383
    %v5411 = vrot.slane %v5409, 2
    %v5414 = vsel %vm397, %v5368, %v5384
    %v5415 = vsel %vm5080, %v5368, %v5384
    %v5417 = vrot.slane %v5415, 2
    %v5420 = vsel %vm397, %v5369, %v5385
    %v5421 = vsel %vm5080, %v5369, %v5385
    %v5423 = vrot.slane %v5421, 2
    %v5426 = vsel %vm397, %v5370, %v5386
    %v5427 = vsel %vm5080, %v5370, %v5386
    %v5429 = vrot.slane %v5427, 2
    %v5432 = vsel %vm397, %v5371, %v5387
    %v5433 = vsel %vm5080, %v5371, %v5387
    %v5435 = vrot.slane %v5433, 2
    %v5436 = vshrl.u32 %v5390, 16
    %v5438 = vrot.slane %v5436, 6
    %v5439 = vshll.u32 %v5390, 16
    %v5441 = vrot.slane %v5439, 7
    %v5442 = vor.u32 %v5438, %v5441
    %v5443 = vrot.slane %v5442, 2
    %v5445 = vshll.u32 %v5393, 16
    %v5447 = vrot.slane %v5445, 7
    %v5448 = vsel %vm5132, %v5443, %v5447
    %v5449 = vshrl.u32 %v5396, 16
    %v5451 = vrot.slane %v5449, 6
    %v5452 = vshll.u32 %v5396, 16
    %v5454 = vrot.slane %v5452, 7
    %v5455 = vor.u32 %v5451, %v5454
    %v5456 = vrot.slane %v5455, 2
    %v5458 = vshll.u32 %v5399, 16
    %v5460 = vrot.slane %v5458, 7
    %v5461 = vsel %vm5132, %v5456, %v5460
    %v5462 = vshrl.u32 %v5402, 16
    %v5464 = vrot.slane %v5462, 6
    %v5465 = vshll.u32 %v5402, 16
    %v5467 = vrot.slane %v5465, 7
    %v5468 = vor.u32 %v5464, %v5467
    %v5469 = vrot.slane %v5468, 2
    %v5471 = vshll.u32 %v5405, 16
    %v5473 = vrot.slane %v5471, 7
    %v5474 = vsel %vm5132, %v5469, %v5473
    %v5475 = vshrl.u32 %v5408, 16
    %v5477 = vrot.slane %v5475, 6
    %v5478 = vshll.u32 %v5408, 16
    %v5480 = vrot.slane %v5478, 7
    %v5481 = vor.u32 %v5477, %v5480
    %v5482 = vrot.slane %v5481, 2
    %v5484 = vshll.u32 %v5411, 16
    %v5486 = vrot.slane %v5484, 7
    %v5487 = vsel %vm5132, %v5482, %v5486
    %v5488 = vshrl.u32 %v5414, 16
    %v5490 = vrot.slane %v5488, 6
    %v5491 = vshll.u32 %v5414, 16
    %v5493 = vrot.slane %v5491, 7
    %v5494 = vor.u32 %v5490, %v5493
    %v5495 = vrot.slane %v5494, 2
    %v5497 = vshll.u32 %v5417, 16
    %v5499 = vrot.slane %v5497, 7
    %v5500 = vsel %vm5132, %v5495, %v5499
    %v5501 = vshrl.u32 %v5420, 16
    %v5503 = vrot.slane %v5501, 6
    %v5504 = vshll.u32 %v5420, 16
    %v5506 = vrot.slane %v5504, 7
    %v5507 = vor.u32 %v5503, %v5506
    %v5508 = vrot.slane %v5507, 2
    %v5510 = vshll.u32 %v5423, 16
    %v5512 = vrot.slane %v5510, 7
    %v5513 = vsel %vm5132, %v5508, %v5512
    %v5514 = vshrl.u32 %v5426, 16
    %v5516 = vrot.slane %v5514, 6
    %v5517 = vshll.u32 %v5426, 16
    %v5519 = vrot.slane %v5517, 7
    %v5520 = vor.u32 %v5516, %v5519
    %v5521 = vrot.slane %v5520, 2
    %v5523 = vshll.u32 %v5429, 16
    %v5525 = vrot.slane %v5523, 7
    %v5526 = vsel %vm5132, %v5521, %v5525
    %v5527 = vshrl.u32 %v5432, 16
    %v5529 = vrot.slane %v5527, 6
    %v5530 = vshll.u32 %v5432, 16
    %v5532 = vrot.slane %v5530, 7
    %v5533 = vor.u32 %v5529, %v5532
    %v5534 = vrot.slane %v5533, 2
    %v5536 = vshll.u32 %v5435, 16
    %v5538 = vrot.slane %v5536, 7
    %v5539 = vsel %vm5132, %v5534, %v5538
    %v5540 = vld [vmem:[%s5017] sm:$0x6]
    %v5541 = vld [vmem:[%s5017 + $0x4] sm:$0x6]
    %v5542 = vld [vmem:[%s5017 + $0x8] sm:$0x6]
    %v5543 = vld [vmem:[%s5017 + $0xc] sm:$0x6]
    %v5544 = vld [vmem:[%s5017 + $0x18] sm:$0x6]
    %v5545 = vld [vmem:[%s5017 + $0x1c] sm:$0x6]
    %v5546 = vld [vmem:[%s5017 + $0x20] sm:$0x6]
    %v5547 = vld [vmem:[%s5017 + $0x24] sm:$0x6]
    %v5556 = vrot.slane %v5540, 2
    %v5557 = vrot.slane %v5541, 2
    %v5558 = vrot.slane %v5542, 2
    %v5559 = vrot.slane %v5543, 2
    %v5560 = vrot.slane %v5544, 2
    %v5561 = vrot.slane %v5545, 2
    %v5562 = vrot.slane %v5546, 2
    %v5563 = vrot.slane %v5547, 2
    %v5566 = vsel %vm397, %v5540, %v5556
    %v5568 = vsel %vm5080, %v5540, %v5556
    %v5570 = vrot.slane %v5568, 2
    %v5573 = vsel %vm397, %v5541, %v5557
    %v5575 = vsel %vm5080, %v5541, %v5557
    %v5577 = vrot.slane %v5575, 2
    %v5580 = vsel %vm397, %v5542, %v5558
    %v5582 = vsel %vm5080, %v5542, %v5558
    %v5584 = vrot.slane %v5582, 2
    %v5587 = vsel %vm397, %v5543, %v5559
    %v5589 = vsel %vm5080, %v5543, %v5559
    %v5591 = vrot.slane %v5589, 2
    %v5594 = vsel %vm397, %v5544, %v5560
    %v5596 = vsel %vm5080, %v5544, %v5560
    %v5598 = vrot.slane %v5596, 2
    %v5601 = vsel %vm397, %v5545, %v5561
    %v5603 = vsel %vm5080, %v5545, %v5561
    %v5605 = vrot.slane %v5603, 2
    %v5608 = vsel %vm397, %v5546, %v5562
    %v5610 = vsel %vm5080, %v5546, %v5562
    %v5612 = vrot.slane %v5610, 2
    %v5615 = vsel %vm397, %v5547, %v5563
    %v5617 = vsel %vm5080, %v5547, %v5563
    %v5619 = vrot.slane %v5617, 2
    %v5620 = vrot.slane %v5566, 7
    %v5621 = vrot.slane %v5620, 2
    %v5622 = vrot.slane %v5570, 7
    %v5623 = vsel %vm5323, %v5621, %v5622
    %v5624 = vrot.slane %v5573, 7
    %v5625 = vrot.slane %v5624, 2
    %v5626 = vrot.slane %v5577, 7
    %v5627 = vsel %vm5323, %v5625, %v5626
    %v5628 = vrot.slane %v5580, 7
    %v5629 = vrot.slane %v5628, 2
    %v5630 = vrot.slane %v5584, 7
    %v5631 = vsel %vm5323, %v5629, %v5630
    %v5632 = vrot.slane %v5587, 7
    %v5633 = vrot.slane %v5632, 2
    %v5634 = vrot.slane %v5591, 7
    %v5635 = vsel %vm5323, %v5633, %v5634
    %v5636 = vrot.slane %v5594, 7
    %v5637 = vrot.slane %v5636, 2
    %v5638 = vrot.slane %v5598, 7
    %v5639 = vsel %vm5323, %v5637, %v5638
    %v5640 = vrot.slane %v5601, 7
    %v5641 = vrot.slane %v5640, 2
    %v5642 = vrot.slane %v5605, 7
    %v5643 = vsel %vm5323, %v5641, %v5642
    %v5644 = vrot.slane %v5608, 7
    %v5645 = vrot.slane %v5644, 2
    %v5646 = vrot.slane %v5612, 7
    %v5647 = vsel %vm5323, %v5645, %v5646
    %v5648 = vrot.slane %v5615, 7
    %v5649 = vrot.slane %v5648, 2
    %v5650 = vrot.slane %v5619, 7
    %v5651 = vsel %vm5323, %v5649, %v5650
    %s5652 = scalar_lea.vmem [#allocation3], 8
    %v5653 = vld [vmem:[%s5652] sm:$0x3]
    %v5654 = vld [vmem:[%s5652 + $0x4] sm:$0x3]
    %v5655 = vld [vmem:[%s5652 + $0x8] sm:$0x3]
    %v5656 = vld [vmem:[%s5652 + $0xc] sm:$0x3]
    %v5657 = vld [vmem:[%s5652 + $0x18] sm:$0x3]
    %v5658 = vld [vmem:[%s5652 + $0x1c] sm:$0x3]
    %v5659 = vld [vmem:[%s5652 + $0x20] sm:$0x3]
    %v5660 = vld [vmem:[%s5652 + $0x24] sm:$0x3]
    %v5661 = vld [vmem:[%s5652] sm:$0x7]
    %v5662 = vld [vmem:[%s5652 + $0x4] sm:$0x7]
    %v5663 = vld [vmem:[%s5652 + $0x8] sm:$0x7]
    %v5664 = vld [vmem:[%s5652 + $0xc] sm:$0x7]
    %v5665 = vld [vmem:[%s5652 + $0x18] sm:$0x7]
    %v5666 = vld [vmem:[%s5652 + $0x1c] sm:$0x7]
    %v5667 = vld [vmem:[%s5652 + $0x20] sm:$0x7]
    %v5668 = vld [vmem:[%s5652 + $0x24] sm:$0x7]
    %v5677 = vrot.slane %v5661, 2
    %v5678 = vrot.slane %v5662, 2
    %v5679 = vrot.slane %v5663, 2
    %v5680 = vrot.slane %v5664, 2
    %v5681 = vrot.slane %v5665, 2
    %v5682 = vrot.slane %v5666, 2
    %v5683 = vrot.slane %v5667, 2
    %v5684 = vrot.slane %v5668, 2
    %v5687 = vsel %vm397, %v5661, %v5677
    %v5688 = vsel %vm5080, %v5661, %v5677
    %v5690 = vrot.slane %v5688, 2
    %v5693 = vsel %vm397, %v5662, %v5678
    %v5694 = vsel %vm5080, %v5662, %v5678
    %v5696 = vrot.slane %v5694, 2
    %v5699 = vsel %vm397, %v5663, %v5679
    %v5700 = vsel %vm5080, %v5663, %v5679
    %v5702 = vrot.slane %v5700, 2
    %v5705 = vsel %vm397, %v5664, %v5680
    %v5706 = vsel %vm5080, %v5664, %v5680
    %v5708 = vrot.slane %v5706, 2
    %v5711 = vsel %vm397, %v5665, %v5681
    %v5712 = vsel %vm5080, %v5665, %v5681
    %v5714 = vrot.slane %v5712, 2
    %v5717 = vsel %vm397, %v5666, %v5682
    %v5718 = vsel %vm5080, %v5666, %v5682
    %v5720 = vrot.slane %v5718, 2
    %v5723 = vsel %vm397, %v5667, %v5683
    %v5724 = vsel %vm5080, %v5667, %v5683
    %v5726 = vrot.slane %v5724, 2
    %v5729 = vsel %vm397, %v5668, %v5684
    %v5730 = vsel %vm5080, %v5668, %v5684
    %v5732 = vrot.slane %v5730, 2
    %v5733 = vshrl.u32 %v5687, 16
    %v5735 = vrot.slane %v5733, 6
    %v5736 = vshll.u32 %v5687, 16
    %v5738 = vrot.slane %v5736, 7
    %v5739 = vor.u32 %v5735, %v5738
    %v5740 = vrot.slane %v5739, 2
    %v5742 = vshll.u32 %v5690, 16
    %v5744 = vrot.slane %v5742, 7
    %v5745 = vsel %vm5132, %v5740, %v5744
    %v5746 = vshrl.u32 %v5693, 16
    %v5748 = vrot.slane %v5746, 6
    %v5749 = vshll.u32 %v5693, 16
    %v5751 = vrot.slane %v5749, 7
    %v5752 = vor.u32 %v5748, %v5751
    %v5753 = vrot.slane %v5752, 2
    %v5755 = vshll.u32 %v5696, 16
    %v5757 = vrot.slane %v5755, 7
    %v5758 = vsel %vm5132, %v5753, %v5757
    %v5759 = vshrl.u32 %v5699, 16
    %v5761 = vrot.slane %v5759, 6
    %v5762 = vshll.u32 %v5699, 16
    %v5764 = vrot.slane %v5762, 7
    %v5765 = vor.u32 %v5761, %v5764
    %v5766 = vrot.slane %v5765, 2
    %v5768 = vshll.u32 %v5702, 16
    %v5770 = vrot.slane %v5768, 7
    %v5771 = vsel %vm5132, %v5766, %v5770
    %v5772 = vshrl.u32 %v5705, 16
    %v5774 = vrot.slane %v5772, 6
    %v5775 = vshll.u32 %v5705, 16
    %v5777 = vrot.slane %v5775, 7
    %v5778 = vor.u32 %v5774, %v5777
    %v5779 = vrot.slane %v5778, 2
    %v5781 = vshll.u32 %v5708, 16
    %v5783 = vrot.slane %v5781, 7
    %v5784 = vsel %vm5132, %v5779, %v5783
    %v5785 = vshrl.u32 %v5711, 16
    %v5787 = vrot.slane %v5785, 6
    %v5788 = vshll.u32 %v5711, 16
    %v5790 = vrot.slane %v5788, 7
    %v5791 = vor.u32 %v5787, %v5790
    %v5792 = vrot.slane %v5791, 2
    %v5794 = vshll.u32 %v5714, 16
    %v5796 = vrot.slane %v5794, 7
    %v5797 = vsel %vm5132, %v5792, %v5796
    %v5798 = vshrl.u32 %v5717, 16
    %v5800 = vrot.slane %v5798, 6
    %v5801 = vshll.u32 %v5717, 16
    %v5803 = vrot.slane %v5801, 7
    %v5804 = vor.u32 %v5800, %v5803
    %v5805 = vrot.slane %v5804, 2
    %v5807 = vshll.u32 %v5720, 16
    %v5809 = vrot.slane %v5807, 7
    %v5810 = vsel %vm5132, %v5805, %v5809
    %v5811 = vshrl.u32 %v5723, 16
    %v5813 = vrot.slane %v5811, 6
    %v5814 = vshll.u32 %v5723, 16
    %v5816 = vrot.slane %v5814, 7
    %v5817 = vor.u32 %v5813, %v5816
    %v5818 = vrot.slane %v5817, 2
    %v5820 = vshll.u32 %v5726, 16
    %v5822 = vrot.slane %v5820, 7
    %v5823 = vsel %vm5132, %v5818, %v5822
    %v5824 = vshrl.u32 %v5729, 16
    %v5826 = vrot.slane %v5824, 6
    %v5827 = vshll.u32 %v5729, 16
    %v5829 = vrot.slane %v5827, 7
    %v5830 = vor.u32 %v5826, %v5829
    %v5831 = vrot.slane %v5830, 2
    %v5833 = vshll.u32 %v5732, 16
    %v5835 = vrot.slane %v5833, 7
    %v5836 = vsel %vm5132, %v5831, %v5835
    %v5837 = vld [vmem:[%s5652] sm:$0x6]
    %v5838 = vld [vmem:[%s5652 + $0x4] sm:$0x6]
    %v5839 = vld [vmem:[%s5652 + $0x8] sm:$0x6]
    %v5840 = vld [vmem:[%s5652 + $0xc] sm:$0x6]
    %v5841 = vld [vmem:[%s5652 + $0x18] sm:$0x6]
    %v5842 = vld [vmem:[%s5652 + $0x1c] sm:$0x6]
    %v5843 = vld [vmem:[%s5652 + $0x20] sm:$0x6]
    %v5844 = vld [vmem:[%s5652 + $0x24] sm:$0x6]
    %v5853 = vrot.slane %v5837, 2
    %v5854 = vrot.slane %v5838, 2
    %v5855 = vrot.slane %v5839, 2
    %v5856 = vrot.slane %v5840, 2
    %v5857 = vrot.slane %v5841, 2
    %v5858 = vrot.slane %v5842, 2
    %v5859 = vrot.slane %v5843, 2
    %v5860 = vrot.slane %v5844, 2
    %v5863 = vsel %vm397, %v5837, %v5853
    %v5865 = vsel %vm5080, %v5837, %v5853
    %v5867 = vrot.slane %v5865, 2
    %v5870 = vsel %vm397, %v5838, %v5854
    %v5872 = vsel %vm5080, %v5838, %v5854
    %v5874 = vrot.slane %v5872, 2
    %v5877 = vsel %vm397, %v5839, %v5855
    %v5879 = vsel %vm5080, %v5839, %v5855
    %v5881 = vrot.slane %v5879, 2
    %v5884 = vsel %vm397, %v5840, %v5856
    %v5886 = vsel %vm5080, %v5840, %v5856
    %v5888 = vrot.slane %v5886, 2
    %v5891 = vsel %vm397, %v5841, %v5857
    %v5893 = vsel %vm5080, %v5841, %v5857
    %v5895 = vrot.slane %v5893, 2
    %v5898 = vsel %vm397, %v5842, %v5858
    %v5900 = vsel %vm5080, %v5842, %v5858
    %v5902 = vrot.slane %v5900, 2
    %v5905 = vsel %vm397, %v5843, %v5859
    %v5907 = vsel %vm5080, %v5843, %v5859
    %v5909 = vrot.slane %v5907, 2
    %v5912 = vsel %vm397, %v5844, %v5860
    %v5914 = vsel %vm5080, %v5844, %v5860
    %v5916 = vrot.slane %v5914, 2
    %v5917 = vrot.slane %v5863, 7
    %v5918 = vrot.slane %v5917, 2
    %v5919 = vrot.slane %v5867, 7
    %v5920 = vsel %vm5323, %v5918, %v5919
    %v5921 = vrot.slane %v5870, 7
    %v5922 = vrot.slane %v5921, 2
    %v5923 = vrot.slane %v5874, 7
    %v5924 = vsel %vm5323, %v5922, %v5923
    %v5925 = vrot.slane %v5877, 7
    %v5926 = vrot.slane %v5925, 2
    %v5927 = vrot.slane %v5881, 7
    %v5928 = vsel %vm5323, %v5926, %v5927
    %v5929 = vrot.slane %v5884, 7
    %v5930 = vrot.slane %v5929, 2
    %v5931 = vrot.slane %v5888, 7
    %v5932 = vsel %vm5323, %v5930, %v5931
    %v5933 = vrot.slane %v5891, 7
    %v5934 = vrot.slane %v5933, 2
    %v5935 = vrot.slane %v5895, 7
    %v5936 = vsel %vm5323, %v5934, %v5935
    %v5937 = vrot.slane %v5898, 7
    %v5938 = vrot.slane %v5937, 2
    %v5939 = vrot.slane %v5902, 7
    %v5940 = vsel %vm5323, %v5938, %v5939
    %v5941 = vrot.slane %v5905, 7
    %v5942 = vrot.slane %v5941, 2
    %v5943 = vrot.slane %v5909, 7
    %v5944 = vsel %vm5323, %v5942, %v5943
    %v5945 = vrot.slane %v5912, 7
    %v5946 = vrot.slane %v5945, 2
    %v5947 = vrot.slane %v5916, 7
    %v5948 = vsel %vm5323, %v5946, %v5947
    %5950 = vst [vmem:[#allocation1] ss:$4 sm:$0xff] %v5045
    %s5952 = scalar_lea.vmem [#allocation1], 1
    %5953 = vst [vmem:[%s5952] ss:$4 sm:$0xff] %v5046
    %s5955 = scalar_lea.vmem [#allocation1], 2
    %5956 = vst [vmem:[%s5955] ss:$4 sm:$0xff] %v5047
    %s5958 = scalar_lea.vmem [#allocation1], 3
    %5959 = vst [vmem:[%s5958] ss:$4 sm:$0xff] %v5048
    %s5961 = scalar_lea.vmem [#allocation1], 32
    %5962 = vst [vmem:[%s5961] ss:$4 sm:$0xff] %v5049
    %s5964 = scalar_lea.vmem [#allocation1], 33
    %5965 = vst [vmem:[%s5964] ss:$4 sm:$0xff] %v5050
    %s5967 = scalar_lea.vmem [#allocation1], 34
    %5968 = vst [vmem:[%s5967] ss:$4 sm:$0xff] %v5051
    %s5970 = scalar_lea.vmem [#allocation1], 35
    %5971 = vst [vmem:[%s5970] ss:$4 sm:$0xff] %v5052
    %v5972 = vld.sshfl [vmem:[#allocation1] sm:$0xff pattern:$0x73625140]
    %v5973 = vld.sshfl [vmem:[#allocation1 + $0x20] sm:$0xff pattern:$0x73625140]
    %5975 = vst [vmem:[#allocation1] ss:$4 sm:$0xff] %v5145
    %s5977 = scalar_lea.vmem [#allocation1], 1
    %5978 = vst [vmem:[%s5977] ss:$4 sm:$0xff] %v5158
    %s5980 = scalar_lea.vmem [#allocation1], 2
    %5981 = vst [vmem:[%s5980] ss:$4 sm:$0xff] %v5171
    %s5983 = scalar_lea.vmem [#allocation1], 3
    %5984 = vst [vmem:[%s5983] ss:$4 sm:$0xff] %v5184
    %s5986 = scalar_lea.vmem [#allocation1], 32
    %5987 = vst [vmem:[%s5986] ss:$4 sm:$0xff] %v5197
    %s5989 = scalar_lea.vmem [#allocation1], 33
    %5990 = vst [vmem:[%s5989] ss:$4 sm:$0xff] %v5210
    %s5992 = scalar_lea.vmem [#allocation1], 34
    %5993 = vst [vmem:[%s5992] ss:$4 sm:$0xff] %v5223
    %s5995 = scalar_lea.vmem [#allocation1], 35
    %5996 = vst [vmem:[%s5995] ss:$4 sm:$0xff] %v5236
    %v5997 = vld.sshfl [vmem:[#allocation1] sm:$0xff pattern:$0x73625140]
    %v5999 = vld.sshfl [vmem:[#allocation1 + $0x20] sm:$0xff pattern:$0x73625140]
    %6001 = vrot.lane.b32.xlu0 %v5997, 64
    %v6002 = vpop.permute.xlu0 %6001
    %6003 = vrot.lane.b32.xlu0 %v5999, 64
    %v6004 = vpop.permute.xlu0 %6003
    %6006 = vst [vmem:[#allocation1] ss:$4 sm:$0xff] %v5327
    %s6008 = scalar_lea.vmem [#allocation1], 1
    %6009 = vst [vmem:[%s6008] ss:$4 sm:$0xff] %v5331
    %s6011 = scalar_lea.vmem [#allocation1], 2
    %6012 = vst [vmem:[%s6011] ss:$4 sm:$0xff] %v5335
    %s6014 = scalar_lea.vmem [#allocation1], 3
    %6015 = vst [vmem:[%s6014] ss:$4 sm:$0xff] %v5339
    %s6017 = scalar_lea.vmem [#allocation1], 32
    %6018 = vst [vmem:[%s6017] ss:$4 sm:$0xff] %v5343
    %s6020 = scalar_lea.vmem [#allocation1], 33
    %6021 = vst [vmem:[%s6020] ss:$4 sm:$0xff] %v5347
    %s6023 = scalar_lea.vmem [#allocation1], 34
    %6024 = vst [vmem:[%s6023] ss:$4 sm:$0xff] %v5351
    %s6026 = scalar_lea.vmem [#allocation1], 35
    %6027 = vst [vmem:[%s6026] ss:$4 sm:$0xff] %v5355
    %v6028 = vld.sshfl [vmem:[#allocation1] sm:$0xff pattern:$0x73625140]
    %v6029 = vld.sshfl [vmem:[#allocation1 + $0x20] sm:$0xff pattern:$0x73625140]
    %6031 = vst [vmem:[#allocation1] ss:$4 sm:$0xff] %v5356
    %s6033 = scalar_lea.vmem [#allocation1], 1
    %6034 = vst [vmem:[%s6033] ss:$4 sm:$0xff] %v5357
    %s6036 = scalar_lea.vmem [#allocation1], 2
    %6037 = vst [vmem:[%s6036] ss:$4 sm:$0xff] %v5358
    %s6039 = scalar_lea.vmem [#allocation1], 3
    %6040 = vst [vmem:[%s6039] ss:$4 sm:$0xff] %v5359
    %s6042 = scalar_lea.vmem [#allocation1], 32
    %6043 = vst [vmem:[%s6042] ss:$4 sm:$0xff] %v5360
    %s6045 = scalar_lea.vmem [#allocation1], 33
    %6046 = vst [vmem:[%s6045] ss:$4 sm:$0xff] %v5361
    %s6048 = scalar_lea.vmem [#allocation1], 34
    %6049 = vst [vmem:[%s6048] ss:$4 sm:$0xff] %v5362
    %s6051 = scalar_lea.vmem [#allocation1], 35
    %6052 = vst [vmem:[%s6051] ss:$4 sm:$0xff] %v5363
    %v6053 = vld.sshfl [vmem:[#allocation1] sm:$0xff pattern:$0x73625140]
    %v6055 = vld.sshfl [vmem:[#allocation1 + $0x20] sm:$0xff pattern:$0x73625140]
    %6057 = vrot.lane.b32.xlu0 %v6053, 64
    %v6058 = vpop.permute.xlu0 %6057
    %6059 = vrot.lane.b32.xlu0 %v6055, 64
    %v6060 = vpop.permute.xlu0 %6059
    %6062 = vst [vmem:[#allocation1] ss:$4 sm:$0xff] %v5448
    %s6064 = scalar_lea.vmem [#allocation1], 1
    %6065 = vst [vmem:[%s6064] ss:$4 sm:$0xff] %v5461
    %s6067 = scalar_lea.vmem [#allocation1], 2
    %6068 = vst [vmem:[%s6067] ss:$4 sm:$0xff] %v5474
    %s6070 = scalar_lea.vmem [#allocation1], 3
    %6071 = vst [vmem:[%s6070] ss:$4 sm:$0xff] %v5487
    %s6073 = scalar_lea.vmem [#allocation1], 32
    %6074 = vst [vmem:[%s6073] ss:$4 sm:$0xff] %v5500
    %s6076 = scalar_lea.vmem [#allocation1], 33
    %6077 = vst [vmem:[%s6076] ss:$4 sm:$0xff] %v5513
    %s6079 = scalar_lea.vmem [#allocation1], 34
    %6080 = vst [vmem:[%s6079] ss:$4 sm:$0xff] %v5526
    %s6082 = scalar_lea.vmem [#allocation1], 35
    %6083 = vst [vmem:[%s6082] ss:$4 sm:$0xff] %v5539
    %v6084 = vld.sshfl [vmem:[#allocation1] sm:$0xff pattern:$0x73625140]
    %v6085 = vld.sshfl [vmem:[#allocation1 + $0x20] sm:$0xff pattern:$0x73625140]
    %6087 = vst [vmem:[#allocation1] ss:$4 sm:$0xff] %v5623
    %s6089 = scalar_lea.vmem [#allocation1], 1
    %6090 = vst [vmem:[%s6089] ss:$4 sm:$0xff] %v5627
    %s6092 = scalar_lea.vmem [#allocation1], 2
    %6093 = vst [vmem:[%s6092] ss:$4 sm:$0xff] %v5631
    %s6095 = scalar_lea.vmem [#allocation1], 3
    %6096 = vst [vmem:[%s6095] ss:$4 sm:$0xff] %v5635
    %s6098 = scalar_lea.vmem [#allocation1], 32
    %6099 = vst [vmem:[%s6098] ss:$4 sm:$0xff] %v5639
    %s6101 = scalar_lea.vmem [#allocation1], 33
    %6102 = vst [vmem:[%s6101] ss:$4 sm:$0xff] %v5643
    %s6104 = scalar_lea.vmem [#allocation1], 34
    %6105 = vst [vmem:[%s6104] ss:$4 sm:$0xff] %v5647
    %s6107 = scalar_lea.vmem [#allocation1], 35
    %6108 = vst [vmem:[%s6107] ss:$4 sm:$0xff] %v5651
    %v6109 = vld.sshfl [vmem:[#allocation1] sm:$0xff pattern:$0x73625140]
    %v6111 = vld.sshfl [vmem:[#allocation1 + $0x20] sm:$0xff pattern:$0x73625140]
    %6113 = vrot.lane.b32.xlu0 %v6109, 64
    %v6114 = vpop.permute.xlu0 %6113
    %6115 = vrot.lane.b32.xlu0 %v6111, 64
    %v6116 = vpop.permute.xlu0 %6115
    %6118 = vst [vmem:[#allocation1] ss:$4 sm:$0xff] %v5653
    %s6120 = scalar_lea.vmem [#allocation1], 1
    %6121 = vst [vmem:[%s6120] ss:$4 sm:$0xff] %v5654
    %s6123 = scalar_lea.vmem [#allocation1], 2
    %6124 = vst [vmem:[%s6123] ss:$4 sm:$0xff] %v5655
    %s6126 = scalar_lea.vmem [#allocation1], 3
    %6127 = vst [vmem:[%s6126] ss:$4 sm:$0xff] %v5656
    %s6129 = scalar_lea.vmem [#allocation1], 32
    %6130 = vst [vmem:[%s6129] ss:$4 sm:$0xff] %v5657
    %s6132 = scalar_lea.vmem [#allocation1], 33
    %6133 = vst [vmem:[%s6132] ss:$4 sm:$0xff] %v5658
    %s6135 = scalar_lea.vmem [#allocation1], 34
    %6136 = vst [vmem:[%s6135] ss:$4 sm:$0xff] %v5659
    %s6138 = scalar_lea.vmem [#allocation1], 35
    %6139 = vst [vmem:[%s6138] ss:$4 sm:$0xff] %v5660
    %v6140 = vld.sshfl [vmem:[#allocation1] sm:$0xff pattern:$0x73625140]
    %v6141 = vld.sshfl [vmem:[#allocation1 + $0x20] sm:$0xff pattern:$0x73625140]
    %6143 = vst [vmem:[#allocation1] ss:$4 sm:$0xff] %v5745
    %s6145 = scalar_lea.vmem [#allocation1], 1
    %6146 = vst [vmem:[%s6145] ss:$4 sm:$0xff] %v5758
    %s6148 = scalar_lea.vmem [#allocation1], 2
    %6149 = vst [vmem:[%s6148] ss:$4 sm:$0xff] %v5771
    %s6151 = scalar_lea.vmem [#allocation1], 3
    %6152 = vst [vmem:[%s6151] ss:$4 sm:$0xff] %v5784
    %s6154 = scalar_lea.vmem [#allocation1], 32
    %6155 = vst [vmem:[%s6154] ss:$4 sm:$0xff] %v5797
    %s6157 = scalar_lea.vmem [#allocation1], 33
    %6158 = vst [vmem:[%s6157] ss:$4 sm:$0xff] %v5810
    %s6160 = scalar_lea.vmem [#allocation1], 34
    %6161 = vst [vmem:[%s6160] ss:$4 sm:$0xff] %v5823
    %s6163 = scalar_lea.vmem [#allocation1], 35
    %6164 = vst [vmem:[%s6163] ss:$4 sm:$0xff] %v5836
    %v6165 = vld.sshfl [vmem:[#allocation1] sm:$0xff pattern:$0x73625140]
    %v6167 = vld.sshfl [vmem:[#allocation1 + $0x20] sm:$0xff pattern:$0x73625140]
    %6169 = vrot.lane.b32.xlu0 %v6165, 64
    %v6170 = vpop.permute.xlu0 %6169
    %6171 = vrot.lane.b32.xlu0 %v6167, 64
    %v6172 = vpop.permute.xlu0 %6171
    %6174 = vst [vmem:[#allocation1] ss:$4 sm:$0xff] %v5920
    %s6176 = scalar_lea.vmem [#allocation1], 1
    %6177 = vst [vmem:[%s6176] ss:$4 sm:$0xff] %v5924
    %s6179 = scalar_lea.vmem [#allocation1], 2
    %6180 = vst [vmem:[%s6179] ss:$4 sm:$0xff] %v5928
    %s6182 = scalar_lea.vmem [#allocation1], 3
    %6183 = vst [vmem:[%s6182] ss:$4 sm:$0xff] %v5932
    %s6185 = scalar_lea.vmem [#allocation1], 32
    %6186 = vst [vmem:[%s6185] ss:$4 sm:$0xff] %v5936
    %s6188 = scalar_lea.vmem [#allocation1], 33
    %6189 = vst [vmem:[%s6188] ss:$4 sm:$0xff] %v5940
    %s6191 = scalar_lea.vmem [#allocation1], 34
    %6192 = vst [vmem:[%s6191] ss:$4 sm:$0xff] %v5944
    %s6194 = scalar_lea.vmem [#allocation1], 35
    %6195 = vst [vmem:[%s6194] ss:$4 sm:$0xff] %v5948
    %v6196 = vld.sshfl [vmem:[#allocation1] sm:$0xff pattern:$0x73625140]
    %v6197 = vld.sshfl [vmem:[#allocation1 + $0x20] sm:$0xff pattern:$0x73625140]
    %v6199 = vsel %vm4068, %v5972, %v6002
    %v6202 = vsel %vm4068, %v5973, %v6004
    %v6205 = vsel %vm4068, %v6028, %v6058
    %v6208 = vsel %vm4068, %v6029, %v6060
    %v6211 = vsel %vm4068, %v6084, %v6114
    %v6214 = vsel %vm4068, %v6085, %v6116
    %v6217 = vsel %vm4068, %v6140, %v6170
    %v6220 = vsel %vm4068, %v6141, %v6172
    %v6222 = vld [vmem:[%s6] sm:$0xf]
    %v6223 = vld [vmem:[%s6 + $0x4] sm:$0xf]
    %v6224 = vld [vmem:[%s6 + $0x8] sm:$0xf]
    %v6225 = vld [vmem:[%s6 + $0xc] sm:$0xf]
    %v6226 = vld [vmem:[%s6 + $0x10] sm:$0xf]
    %v6227 = vld [vmem:[%s6 + $0x14] sm:$0xf]
    %v6228 = vld [vmem:[%s6 + $0x18] sm:$0xf]
    %v6229 = vld [vmem:[%s6 + $0x1c] sm:$0xf]
    %v6230 = vld [vmem:[%s6 + $0x20] sm:$0xf]
    %v6231 = vld [vmem:[%s6 + $0x24] sm:$0xf]
    %v6232 = vld [vmem:[%s6 + $0x28] sm:$0xf]
    %v6233 = vld [vmem:[%s6 + $0x2c] sm:$0xf]
    %v6234 = vld [vmem:[%s6 + $0x30] sm:$0xf]
    %v6235 = vld [vmem:[%s6 + $0x34] sm:$0xf]
    %v6236 = vld [vmem:[%s6 + $0x38] sm:$0xf]
    %v6237 = vld [vmem:[%s6 + $0x3c] sm:$0xf]
    %v6238 = vld [vmem:[%s6 + $0x40] sm:$0xf]
    %v6239 = vld [vmem:[%s6 + $0x44] sm:$0xf]
    %v6240 = vld [vmem:[%s6 + $0x48] sm:$0xf]
    %v6241 = vld [vmem:[%s6 + $0x4c] sm:$0xf]
    %v6242 = vld [vmem:[%s6 + $0x50] sm:$0xf]
    %v6243 = vld [vmem:[%s6 + $0x54] sm:$0xf]
    %v6244 = vld [vmem:[%s6 + $0x58] sm:$0xf]
    %v6245 = vld [vmem:[%s6 + $0x5c] sm:$0xf]
    %v6246 = vld [vmem:[%s6 + $0x60] sm:$0xf]
    %v6247 = vld [vmem:[%s6 + $0x64] sm:$0xf]
    %v6248 = vld [vmem:[%s6 + $0x68] sm:$0xf]
    %v6249 = vld [vmem:[%s6 + $0x6c] sm:$0xf]
    %v6250 = vld [vmem:[%s6 + $0x70] sm:$0xf]
    %v6251 = vld [vmem:[%s6 + $0x74] sm:$0xf]
    %v6252 = vld [vmem:[%s6 + $0x78] sm:$0xf]
    %v6253 = vld [vmem:[%s6 + $0x7c] sm:$0xf]
    %v6254 = vld [vmem:[%s6 + $0x80] sm:$0xf]
    %v6255 = vld [vmem:[%s6 + $0x84] sm:$0xf]
    %v6256 = vld [vmem:[%s6 + $0x88] sm:$0xf]
    %v6257 = vld [vmem:[%s6 + $0x8c] sm:$0xf]
    %v6258 = vld [vmem:[%s6 + $0x90] sm:$0xf]
    %v6259 = vld [vmem:[%s6 + $0x94] sm:$0xf]
    %v6260 = vld [vmem:[%s6 + $0x98] sm:$0xf]
    %v6261 = vld [vmem:[%s6 + $0x9c] sm:$0xf]
    %v6262 = vld [vmem:[%s6 + $0xa0] sm:$0xf]
    %v6263 = vld [vmem:[%s6 + $0xa4] sm:$0xf]
    %v6264 = vld [vmem:[%s6 + $0xa8] sm:$0xf]
    %v6265 = vld [vmem:[%s6 + $0xac] sm:$0xf]
    %v6266 = vld [vmem:[%s6 + $0xb0] sm:$0xf]
    %v6267 = vld [vmem:[%s6 + $0xb4] sm:$0xf]
    %v6268 = vld [vmem:[%s6 + $0xb8] sm:$0xf]
    %v6269 = vld [vmem:[%s6 + $0xbc] sm:$0xf]
    %v6270 = vld [vmem:[%s6 + $0xc0] sm:$0xf]
    %v6271 = vld [vmem:[%s6 + $0xc4] sm:$0xf]
    %v6272 = vld [vmem:[%s6 + $0xc8] sm:$0xf]
    %v6273 = vld [vmem:[%s6 + $0xcc] sm:$0xf]
    %v6274 = vld [vmem:[%s6 + $0xd0] sm:$0xf]
    %v6275 = vld [vmem:[%s6 + $0xd4] sm:$0xf]
    %v6276 = vld [vmem:[%s6 + $0xd8] sm:$0xf]
    %v6277 = vld [vmem:[%s6 + $0xdc] sm:$0xf]
    %v6278 = vld [vmem:[%s6 + $0xe0] sm:$0xf]
    %v6279 = vld [vmem:[%s6 + $0xe4] sm:$0xf]
    %v6280 = vld [vmem:[%s6 + $0xe8] sm:$0xf]
    %v6281 = vld [vmem:[%s6 + $0xec] sm:$0xf]
    %v6282 = vld [vmem:[%s6 + $0xf0] sm:$0xf]
    %v6283 = vld [vmem:[%s6 + $0xf4] sm:$0xf]
    %v6284 = vld [vmem:[%s6 + $0xf8] sm:$0xf]
    %v6285 = vld [vmem:[%s6 + $0xfc] sm:$0xf]
    %v6286 = vld [vmem:[%s6 + $0x100] sm:$0xf]
    %v6287 = vld [vmem:[%s6 + $0x104] sm:$0xf]
    %v6288 = vld [vmem:[%s6 + $0x108] sm:$0xf]
    %v6289 = vld [vmem:[%s6 + $0x10c] sm:$0xf]
    %v6290 = vld [vmem:[%s6 + $0x110] sm:$0xf]
    %v6291 = vld [vmem:[%s6 + $0x114] sm:$0xf]
    %v6292 = vld [vmem:[%s6 + $0x118] sm:$0xf]
    %v6293 = vld [vmem:[%s6 + $0x11c] sm:$0xf]
    %v6294 = vld [vmem:[%s7] sm:$0x1]
    %v6296 = vperm.slane %v6294, 0
    %v6370 = vunpack.c.l.b16 %v6222
    %v6371 = vunpack.c.l.b16 %v6223
    %v6372 = vunpack.c.l.b16 %v6224
    %v6373 = vunpack.c.l.b16 %v6225
    %v6374 = vunpack.c.l.b16 %v6226
    %v6375 = vunpack.c.l.b16 %v6227
    %v6376 = vunpack.c.l.b16 %v6228
    %v6377 = vunpack.c.l.b16 %v6229
    %v6378 = vunpack.c.l.b16 %v6230
    %v6379 = vunpack.c.l.b16 %v6231
    %v6380 = vunpack.c.l.b16 %v6232
    %v6381 = vunpack.c.l.b16 %v6233
    %v6382 = vunpack.c.l.b16 %v6234
    %v6383 = vunpack.c.l.b16 %v6235
    %v6384 = vunpack.c.l.b16 %v6236
    %v6385 = vunpack.c.l.b16 %v6237
    %v6386 = vunpack.c.l.b16 %v6238
    %v6387 = vunpack.c.l.b16 %v6239
    %v6388 = vunpack.c.l.b16 %v6240
    %v6389 = vunpack.c.l.b16 %v6241
    %v6390 = vunpack.c.l.b16 %v6242
    %v6391 = vunpack.c.l.b16 %v6243
    %v6392 = vunpack.c.l.b16 %v6244
    %v6393 = vunpack.c.l.b16 %v6245
    %v6394 = vunpack.c.l.b16 %v6246
    %v6395 = vunpack.c.l.b16 %v6247
    %v6396 = vunpack.c.l.b16 %v6248
    %v6397 = vunpack.c.l.b16 %v6249
    %v6398 = vunpack.c.l.b16 %v6250
    %v6399 = vunpack.c.l.b16 %v6251
    %v6400 = vunpack.c.l.b16 %v6252
    %v6401 = vunpack.c.l.b16 %v6253
    %v6402 = vunpack.c.l.b16 %v6254
    %v6403 = vunpack.c.l.b16 %v6255
    %v6404 = vunpack.c.l.b16 %v6256
    %v6405 = vunpack.c.l.b16 %v6257
    %v6406 = vunpack.c.l.b16 %v6258
    %v6407 = vunpack.c.l.b16 %v6259
    %v6408 = vunpack.c.l.b16 %v6260
    %v6409 = vunpack.c.l.b16 %v6261
    %v6410 = vunpack.c.l.b16 %v6262
    %v6411 = vunpack.c.l.b16 %v6263
    %v6412 = vunpack.c.l.b16 %v6264
    %v6413 = vunpack.c.l.b16 %v6265
    %v6414 = vunpack.c.l.b16 %v6266
    %v6415 = vunpack.c.l.b16 %v6267
    %v6416 = vunpack.c.l.b16 %v6268
    %v6417 = vunpack.c.l.b16 %v6269
    %v6418 = vunpack.c.l.b16 %v6270
    %v6419 = vunpack.c.l.b16 %v6271
    %v6420 = vunpack.c.l.b16 %v6272
    %v6421 = vunpack.c.l.b16 %v6273
    %v6422 = vunpack.c.l.b16 %v6274
    %v6423 = vunpack.c.l.b16 %v6275
    %v6424 = vunpack.c.l.b16 %v6276
    %v6425 = vunpack.c.l.b16 %v6277
    %v6426 = vunpack.c.l.b16 %v6278
    %v6427 = vunpack.c.l.b16 %v6279
    %v6428 = vunpack.c.l.b16 %v6280
    %v6429 = vunpack.c.l.b16 %v6281
    %v6430 = vunpack.c.l.b16 %v6282
    %v6431 = vunpack.c.l.b16 %v6283
    %v6432 = vunpack.c.l.b16 %v6284
    %v6433 = vunpack.c.l.b16 %v6285
    %v6434 = vunpack.c.l.b16 %v6286
    %v6435 = vunpack.c.l.b16 %v6287
    %v6436 = vunpack.c.l.b16 %v6288
    %v6437 = vunpack.c.l.b16 %v6289
    %v6438 = vunpack.c.l.b16 %v6290
    %v6439 = vunpack.c.l.b16 %v6291
    %v6440 = vunpack.c.l.b16 %v6292
    %v6441 = vunpack.c.l.b16 %v6293
    %v6442 = vpack.c.b16 %v6371, %v6370
    %v6443 = vpack.c.b16 %v6373, %v6372
    %v6444 = vpack.c.b16 %v6375, %v6374
    %v6445 = vpack.c.b16 %v6377, %v6376
    %v6446 = vpack.c.b16 %v6379, %v6378
    %v6447 = vpack.c.b16 %v6381, %v6380
    %v6448 = vpack.c.b16 %v6383, %v6382
    %v6449 = vpack.c.b16 %v6385, %v6384
    %v6450 = vpack.c.b16 %v6387, %v6386
    %v6451 = vpack.c.b16 %v6389, %v6388
    %v6452 = vpack.c.b16 %v6391, %v6390
    %v6453 = vpack.c.b16 %v6393, %v6392
    %v6454 = vpack.c.b16 %v6395, %v6394
    %v6455 = vpack.c.b16 %v6397, %v6396
    %v6456 = vpack.c.b16 %v6399, %v6398
    %v6457 = vpack.c.b16 %v6401, %v6400
    %v6458 = vpack.c.b16 %v6403, %v6402
    %v6459 = vpack.c.b16 %v6405, %v6404
    %v6460 = vpack.c.b16 %v6407, %v6406
    %v6461 = vpack.c.b16 %v6409, %v6408
    %v6462 = vpack.c.b16 %v6411, %v6410
    %v6463 = vpack.c.b16 %v6413, %v6412
    %v6464 = vpack.c.b16 %v6415, %v6414
    %v6465 = vpack.c.b16 %v6417, %v6416
    %v6466 = vpack.c.b16 %v6419, %v6418
    %v6467 = vpack.c.b16 %v6421, %v6420
    %v6468 = vpack.c.b16 %v6423, %v6422
    %v6469 = vpack.c.b16 %v6425, %v6424
    %v6470 = vpack.c.b16 %v6427, %v6426
    %v6471 = vpack.c.b16 %v6429, %v6428
    %v6472 = vpack.c.b16 %v6431, %v6430
    %v6473 = vpack.c.b16 %v6433, %v6432
    %v6474 = vpack.c.b16 %v6435, %v6434
    %v6475 = vpack.c.b16 %v6437, %v6436
    %v6476 = vpack.c.b16 %v6439, %v6438
    %v6477 = vpack.c.b16 %v6441, %v6440
    %v6514 = vsel %vm4068, %v6196, 0
    %v6516 = vsel %vm4068, %v6197, 0
    %6518 = vmatpush.bf16.msra.mxu0 %v6449
    %6519 = vmatpush.bf16.msra.mxu0 %v6448
    %6520 = vmatpush.bf16.msra.mxu0 %v6447
    %6521 = vmatpush.bf16.msra.mxu0 %v6446
    %6522 = vmatpush.bf16.msra.mxu0 %v6445
    %6523 = vmatpush.bf16.msra.mxu0 %v6444
    %6524 = vmatpush.bf16.msra.mxu0 %v6443
    %6525 = vmatpush.bf16.msra.mxu0 %v6442
    %6526 = vmatmul.bf16.gmra.mxu0 %v6199
    %v6527 = vpop.f32.mrf.mxu0
    %v6528 = vadd.f32 %v6296, %v6527
    %v6529 = vpop.f32.mrf.mxu0
    %v6530 = vadd.f32 %v6296, %v6529
    %6531 = vmatmul.bf16.gmra.mxu0 %v6202
    %v6532 = vpop.f32.mrf.mxu0
    %v6533 = vadd.f32 %v6296, %v6532
    %v6534 = vpop.f32.mrf.mxu0
    %v6535 = vadd.f32 %v6296, %v6534
    %6536 = vdwg.mxu0
    %6537 = vmatpush.bf16.msra.mxu0 %v6457
    %6538 = vmatpush.bf16.msra.mxu0 %v6456
    %6539 = vmatpush.bf16.msra.mxu0 %v6455
    %6540 = vmatpush.bf16.msra.mxu0 %v6454
    %6541 = vmatpush.bf16.msra.mxu0 %v6453
    %6542 = vmatpush.bf16.msra.mxu0 %v6452
    %6543 = vmatpush.bf16.msra.mxu0 %v6451
    %6544 = vmatpush.bf16.msra.mxu0 %v6450
    %6545 = vmatmul.bf16.gmra.mxu0 %v6205
    %v6546 = vpop.f32.mrf.mxu0
    %v6547 = vadd.f32 %v6528, %v6546
    %v6548 = vpop.f32.mrf.mxu0
    %v6549 = vadd.f32 %v6530, %v6548
    %6550 = vmatmul.bf16.gmra.mxu0 %v6208
    %v6551 = vpop.f32.mrf.mxu0
    %v6552 = vadd.f32 %v6533, %v6551
    %v6553 = vpop.f32.mrf.mxu0
    %v6554 = vadd.f32 %v6535, %v6553
    %6555 = vdwg.mxu0
    %6556 = vmatpush.bf16.msra.mxu0 %v6465
    %6557 = vmatpush.bf16.msra.mxu0 %v6464
    %6558 = vmatpush.bf16.msra.mxu0 %v6463
    %6559 = vmatpush.bf16.msra.mxu0 %v6462
    %6560 = vmatpush.bf16.msra.mxu0 %v6461
    %6561 = vmatpush.bf16.msra.mxu0 %v6460
    %6562 = vmatpush.bf16.msra.mxu0 %v6459
    %6563 = vmatpush.bf16.msra.mxu0 %v6458
    %6564 = vmatmul.bf16.gmra.mxu0 %v6211
    %v6565 = vpop.f32.mrf.mxu0
    %v6566 = vadd.f32 %v6547, %v6565
    %v6567 = vpop.f32.mrf.mxu0
    %v6568 = vadd.f32 %v6549, %v6567
    %6569 = vmatmul.bf16.gmra.mxu0 %v6214
    %v6570 = vpop.f32.mrf.mxu0
    %v6571 = vadd.f32 %v6552, %v6570
    %v6572 = vpop.f32.mrf.mxu0
    %v6573 = vadd.f32 %v6554, %v6572
    %6574 = vdwg.mxu0
    %6575 = vmatpush.bf16.msra.mxu0 %v6473
    %6576 = vmatpush.bf16.msra.mxu0 %v6472
    %6577 = vmatpush.bf16.msra.mxu0 %v6471
    %6578 = vmatpush.bf16.msra.mxu0 %v6470
    %6579 = vmatpush.bf16.msra.mxu0 %v6469
    %6580 = vmatpush.bf16.msra.mxu0 %v6468
    %6581 = vmatpush.bf16.msra.mxu0 %v6467
    %6582 = vmatpush.bf16.msra.mxu0 %v6466
    %6583 = vmatmul.bf16.gmra.mxu0 %v6217
    %v6584 = vpop.f32.mrf.mxu0
    %v6585 = vadd.f32 %v6566, %v6584
    %v6586 = vpop.f32.mrf.mxu0
    %v6587 = vadd.f32 %v6568, %v6586
    %6588 = vmatmul.bf16.gmra.mxu0 %v6220
    %v6589 = vpop.f32.mrf.mxu0
    %v6590 = vadd.f32 %v6571, %v6589
    %v6591 = vpop.f32.mrf.mxu0
    %v6592 = vadd.f32 %v6573, %v6591
    %6593 = vdwg.mxu0
    %6594 = vmatpush.bf16.msra.mxu0 0
    %6595 = vmatpush.bf16.msra.mxu0 0
    %6596 = vmatpush.bf16.msra.mxu0 0
    %6597 = vmatpush.bf16.msra.mxu0 0
    %6598 = vmatpush.bf16.msra.mxu0 %v6477
    %6599 = vmatpush.bf16.msra.mxu0 %v6476
    %6600 = vmatpush.bf16.msra.mxu0 %v6475
    %6601 = vmatpush.bf16.msra.mxu0 %v6474
    %6602 = vmatmul.bf16.gmra.mxu0 %v6514
    %v6603 = vpop.f32.mrf.mxu0
    %v6604 = vadd.f32 %v6585, %v6603
    %v6605 = vpop.f32.mrf.mxu0
    %v6606 = vadd.f32 %v6587, %v6605
    %6607 = vmatmul.bf16.gmra.mxu0 %v6516
    %v6608 = vpop.f32.mrf.mxu0
    %v6609 = vadd.f32 %v6590, %v6608
    %v6610 = vpop.f32.mrf.mxu0
    %v6611 = vadd.f32 %v6592, %v6610
    %6612 = vdwg.mxu0
    %v6613 = vmax.f32 %v6604, 0.0
    %v6614 = vmax.f32 %v6606, 0.0
    %v6615 = vmax.f32 %v6609, 0.0
    %v6616 = vmax.f32 %v6611, 0.0
    %v6621 = vrot.slane %v6613, 4
    %v6622 = vrot.slane %v6614, 4
    %v6623 = vrot.slane %v6615, 4
    %v6624 = vrot.slane %v6616, 4
    %v6629 = vmax.f32 %v6613, %v6621
    %v6630 = vmax.f32 %v6614, %v6622
    %v6631 = vmax.f32 %v6615, %v6623
    %v6632 = vmax.f32 %v6616, %v6624
    %v6637 = vrot.slane %v6629, 2
    %v6638 = vrot.slane %v6630, 2
    %v6639 = vrot.slane %v6631, 2
    %v6640 = vrot.slane %v6632, 2
    %v6641 = vsel %vm397, %v6629, %v6637
    %v6642 = vsel %vm5080, %v6629, %v6637
    %v6643 = vrot.slane %v6642, 2
    %v6644 = vsel %vm397, %v6630, %v6638
    %v6645 = vsel %vm5080, %v6630, %v6638
    %v6646 = vrot.slane %v6645, 2
    %v6647 = vsel %vm397, %v6631, %v6639
    %v6648 = vsel %vm5080, %v6631, %v6639
    %v6649 = vrot.slane %v6648, 2
    %v6650 = vsel %vm397, %v6632, %v6640
    %v6651 = vsel %vm5080, %v6632, %v6640
    %v6652 = vrot.slane %v6651, 2
    %v6661 = vsel %vm397, %v6641, -inf
    %v6662 = vrot.slane %v6661, 4
    %v6663 = vmax.f32 %v6661, %v6662
    %v6664 = vrot.slane %v6663, 2
    %v6665 = vmax.f32 %v6663, %v6664
    %v6666 = vrot.slane %v6665, 1
    %v6667 = vmax.f32 %v6665, %v6666
    %v6668 = vsel %vm397, %v6643, -inf
    %v6669 = vrot.slane %v6668, 4
    %v6670 = vmax.f32 %v6668, %v6669
    %v6671 = vrot.slane %v6670, 2
    %v6672 = vmax.f32 %v6670, %v6671
    %v6673 = vrot.slane %v6672, 1
    %v6674 = vmax.f32 %v6672, %v6673
    %v6675 = vsel %vm397, %v6644, -inf
    %v6676 = vrot.slane %v6675, 4
    %v6677 = vmax.f32 %v6675, %v6676
    %v6678 = vrot.slane %v6677, 2
    %v6679 = vmax.f32 %v6677, %v6678
    %v6680 = vrot.slane %v6679, 1
    %v6681 = vmax.f32 %v6679, %v6680
    %v6682 = vsel %vm397, %v6646, -inf
    %v6683 = vrot.slane %v6682, 4
    %v6684 = vmax.f32 %v6682, %v6683
    %v6685 = vrot.slane %v6684, 2
    %v6686 = vmax.f32 %v6684, %v6685
    %v6687 = vrot.slane %v6686, 1
    %v6688 = vmax.f32 %v6686, %v6687
    %v6689 = vsel %vm397, %v6647, -inf
    %v6690 = vrot.slane %v6689, 4
    %v6691 = vmax.f32 %v6689, %v6690
    %v6692 = vrot.slane %v6691, 2
    %v6693 = vmax.f32 %v6691, %v6692
    %v6694 = vrot.slane %v6693, 1
    %v6695 = vmax.f32 %v6693, %v6694
    %v6696 = vsel %vm397, %v6649, -inf
    %v6697 = vrot.slane %v6696, 4
    %v6698 = vmax.f32 %v6696, %v6697
    %v6699 = vrot.slane %v6698, 2
    %v6700 = vmax.f32 %v6698, %v6699
    %v6701 = vrot.slane %v6700, 1
    %v6702 = vmax.f32 %v6700, %v6701
    %v6703 = vsel %vm397, %v6650, -inf
    %v6704 = vrot.slane %v6703, 4
    %v6705 = vmax.f32 %v6703, %v6704
    %v6706 = vrot.slane %v6705, 2
    %v6707 = vmax.f32 %v6705, %v6706
    %v6708 = vrot.slane %v6707, 1
    %v6709 = vmax.f32 %v6707, %v6708
    %v6710 = vsel %vm397, %v6652, -inf
    %v6711 = vrot.slane %v6710, 4
    %v6712 = vmax.f32 %v6710, %v6711
    %v6713 = vrot.slane %v6712, 2
    %v6714 = vmax.f32 %v6712, %v6713
    %v6715 = vrot.slane %v6714, 1
    %v6716 = vmax.f32 %v6714, %v6715
    %vm6719 = vcmask 1041409
    %v6720 = vsel %vm6719, %v6695, %v6667
    %v6724 = vsel %vm6719, %v6702, %v6674
    %v6728 = vsel %vm6719, %v6709, %v6681
    %v6732 = vsel %vm6719, %v6716, %v6688
    %v6734 = vpack.c.bf16 %v6720, %v6720
    %v6735 = vpack.c.bf16 %v6724, %v6724
    %v6736 = vpack.c.bf16 %v6728, %v6728
    %v6737 = vpack.c.bf16 %v6732, %v6732
    %v6738 = vld [vmem:[%s8] sm:$0xf]
    %v6739 = vld [vmem:[%s8 + $0x4] sm:$0xf]
    %v6740 = vld [vmem:[%s8 + $0x8] sm:$0xf]
    %v6741 = vld [vmem:[%s8 + $0xc] sm:$0xf]
    %v6742 = vld [vmem:[%s8 + $0x10] sm:$0xf]
    %v6743 = vld [vmem:[%s8 + $0x14] sm:$0xf]
    %v6744 = vld [vmem:[%s8 + $0x18] sm:$0xf]
    %v6745 = vld [vmem:[%s8 + $0x1c] sm:$0xf]
    %v6746 = vld [vmem:[%s8 + $0x20] sm:$0xf]
    %v6747 = vld [vmem:[%s8 + $0x24] sm:$0xf]
    %v6748 = vld [vmem:[%s8 + $0x28] sm:$0xf]
    %v6749 = vld [vmem:[%s8 + $0x2c] sm:$0xf]
    %v6750 = vld [vmem:[%s8 + $0x30] sm:$0xf]
    %v6751 = vld [vmem:[%s8 + $0x34] sm:$0xf]
    %v6752 = vld [vmem:[%s8 + $0x38] sm:$0xf]
    %v6753 = vld [vmem:[%s8 + $0x3c] sm:$0xf]
    %v6754 = vld [vmem:[%s8 + $0x40] sm:$0xf]
    %v6755 = vld [vmem:[%s8 + $0x44] sm:$0xf]
    %v6756 = vld [vmem:[%s8 + $0x48] sm:$0xf]
    %v6757 = vld [vmem:[%s8 + $0x4c] sm:$0xf]
    %v6758 = vld [vmem:[%s8 + $0x50] sm:$0xf]
    %v6759 = vld [vmem:[%s8 + $0x54] sm:$0xf]
    %v6760 = vld [vmem:[%s8 + $0x58] sm:$0xf]
    %v6761 = vld [vmem:[%s8 + $0x5c] sm:$0xf]
    %v6762 = vld [vmem:[%s8 + $0x60] sm:$0xf]
    %v6763 = vld [vmem:[%s8 + $0x64] sm:$0xf]
    %v6764 = vld [vmem:[%s8 + $0x68] sm:$0xf]
    %v6765 = vld [vmem:[%s8 + $0x6c] sm:$0xf]
    %v6766 = vld [vmem:[%s8 + $0x70] sm:$0xf]
    %v6767 = vld [vmem:[%s8 + $0x74] sm:$0xf]
    %v6768 = vld [vmem:[%s8 + $0x78] sm:$0xf]
    %v6769 = vld [vmem:[%s8 + $0x7c] sm:$0xf]
    %v6770 = vld [vmem:[%s8 + $0x80] sm:$0xf]
    %v6771 = vld [vmem:[%s8 + $0x84] sm:$0xf]
    %v6772 = vld [vmem:[%s8 + $0x88] sm:$0xf]
    %v6773 = vld [vmem:[%s8 + $0x8c] sm:$0xf]
    %v6774 = vld [vmem:[%s8 + $0x90] sm:$0xf]
    %v6775 = vld [vmem:[%s8 + $0x94] sm:$0xf]
    %v6776 = vld [vmem:[%s8 + $0x98] sm:$0xf]
    %v6777 = vld [vmem:[%s8 + $0x9c] sm:$0xf]
    %v6778 = vld [vmem:[%s8 + $0xa0] sm:$0xf]
    %v6779 = vld [vmem:[%s8 + $0xa4] sm:$0xf]
    %v6780 = vld [vmem:[%s8 + $0xa8] sm:$0xf]
    %v6781 = vld [vmem:[%s8 + $0xac] sm:$0xf]
    %v6782 = vld [vmem:[%s8 + $0xb0] sm:$0xf]
    %v6783 = vld [vmem:[%s8 + $0xb4] sm:$0xf]
    %v6784 = vld [vmem:[%s8 + $0xb8] sm:$0xf]
    %v6785 = vld [vmem:[%s8 + $0xbc] sm:$0xf]
    %v6786 = vld [vmem:[%s8 + $0xc0] sm:$0xf]
    %v6787 = vld [vmem:[%s8 + $0xc4] sm:$0xf]
    %v6788 = vld [vmem:[%s8 + $0xc8] sm:$0xf]
    %v6789 = vld [vmem:[%s8 + $0xcc] sm:$0xf]
    %v6790 = vld [vmem:[%s8 + $0xd0] sm:$0xf]
    %v6791 = vld [vmem:[%s8 + $0xd4] sm:$0xf]
    %v6792 = vld [vmem:[%s8 + $0xd8] sm:$0xf]
    %v6793 = vld [vmem:[%s8 + $0xdc] sm:$0xf]
    %v6794 = vld [vmem:[%s8 + $0xe0] sm:$0xf]
    %v6795 = vld [vmem:[%s8 + $0xe4] sm:$0xf]
    %v6796 = vld [vmem:[%s8 + $0xe8] sm:$0xf]
    %v6797 = vld [vmem:[%s8 + $0xec] sm:$0xf]
    %v6798 = vld [vmem:[%s8 + $0xf0] sm:$0xf]
    %v6799 = vld [vmem:[%s8 + $0xf4] sm:$0xf]
    %v6800 = vld [vmem:[%s8 + $0xf8] sm:$0xf]
    %v6801 = vld [vmem:[%s8 + $0xfc] sm:$0xf]
    %v6802 = vld [vmem:[%s9] sm:$0x1]
    %v6804 = vperm.slane %v6802, 0
    %v6870 = vunpack.c.l.b16 %v6738
    %v6871 = vunpack.c.l.b16 %v6739
    %v6872 = vunpack.c.l.b16 %v6740
    %v6873 = vunpack.c.l.b16 %v6741
    %v6874 = vunpack.c.l.b16 %v6742
    %v6875 = vunpack.c.l.b16 %v6743
    %v6876 = vunpack.c.l.b16 %v6744
    %v6877 = vunpack.c.l.b16 %v6745
    %v6878 = vunpack.c.l.b16 %v6746
    %v6879 = vunpack.c.l.b16 %v6747
    %v6880 = vunpack.c.l.b16 %v6748
    %v6881 = vunpack.c.l.b16 %v6749
    %v6882 = vunpack.c.l.b16 %v6750
    %v6883 = vunpack.c.l.b16 %v6751
    %v6884 = vunpack.c.l.b16 %v6752
    %v6885 = vunpack.c.l.b16 %v6753
    %v6886 = vunpack.c.l.b16 %v6754
    %v6887 = vunpack.c.l.b16 %v6755
    %v6888 = vunpack.c.l.b16 %v6756
    %v6889 = vunpack.c.l.b16 %v6757
    %v6890 = vunpack.c.l.b16 %v6758
    %v6891 = vunpack.c.l.b16 %v6759
    %v6892 = vunpack.c.l.b16 %v6760
    %v6893 = vunpack.c.l.b16 %v6761
    %v6894 = vunpack.c.l.b16 %v6762
    %v6895 = vunpack.c.l.b16 %v6763
    %v6896 = vunpack.c.l.b16 %v6764
    %v6897 = vunpack.c.l.b16 %v6765
    %v6898 = vunpack.c.l.b16 %v6766
    %v6899 = vunpack.c.l.b16 %v6767
    %v6900 = vunpack.c.l.b16 %v6768
    %v6901 = vunpack.c.l.b16 %v6769
    %v6902 = vunpack.c.l.b16 %v6770
    %v6903 = vunpack.c.l.b16 %v6771
    %v6904 = vunpack.c.l.b16 %v6772
    %v6905 = vunpack.c.l.b16 %v6773
    %v6906 = vunpack.c.l.b16 %v6774
    %v6907 = vunpack.c.l.b16 %v6775
    %v6908 = vunpack.c.l.b16 %v6776
    %v6909 = vunpack.c.l.b16 %v6777
    %v6910 = vunpack.c.l.b16 %v6778
    %v6911 = vunpack.c.l.b16 %v6779
    %v6912 = vunpack.c.l.b16 %v6780
    %v6913 = vunpack.c.l.b16 %v6781
    %v6914 = vunpack.c.l.b16 %v6782
    %v6915 = vunpack.c.l.b16 %v6783
    %v6916 = vunpack.c.l.b16 %v6784
    %v6917 = vunpack.c.l.b16 %v6785
    %v6918 = vunpack.c.l.b16 %v6786
    %v6919 = vunpack.c.l.b16 %v6787
    %v6920 = vunpack.c.l.b16 %v6788
    %v6921 = vunpack.c.l.b16 %v6789
    %v6922 = vunpack.c.l.b16 %v6790
    %v6923 = vunpack.c.l.b16 %v6791
    %v6924 = vunpack.c.l.b16 %v6792
    %v6925 = vunpack.c.l.b16 %v6793
    %v6926 = vunpack.c.l.b16 %v6794
    %v6927 = vunpack.c.l.b16 %v6795
    %v6928 = vunpack.c.l.b16 %v6796
    %v6929 = vunpack.c.l.b16 %v6797
    %v6930 = vunpack.c.l.b16 %v6798
    %v6931 = vunpack.c.l.b16 %v6799
    %v6932 = vunpack.c.l.b16 %v6800
    %v6933 = vunpack.c.l.b16 %v6801
    %v6934 = vpack.c.b16 %v6871, %v6870
    %v6935 = vpack.c.b16 %v6873, %v6872
    %v6936 = vpack.c.b16 %v6875, %v6874
    %v6937 = vpack.c.b16 %v6877, %v6876
    %v6938 = vpack.c.b16 %v6879, %v6878
    %v6939 = vpack.c.b16 %v6881, %v6880
    %v6940 = vpack.c.b16 %v6883, %v6882
    %v6941 = vpack.c.b16 %v6885, %v6884
    %v6942 = vpack.c.b16 %v6887, %v6886
    %v6943 = vpack.c.b16 %v6889, %v6888
    %v6944 = vpack.c.b16 %v6891, %v6890
    %v6945 = vpack.c.b16 %v6893, %v6892
    %v6946 = vpack.c.b16 %v6895, %v6894
    %v6947 = vpack.c.b16 %v6897, %v6896
    %v6948 = vpack.c.b16 %v6899, %v6898
    %v6949 = vpack.c.b16 %v6901, %v6900
    %v6950 = vpack.c.b16 %v6903, %v6902
    %v6951 = vpack.c.b16 %v6905, %v6904
    %v6952 = vpack.c.b16 %v6907, %v6906
    %v6953 = vpack.c.b16 %v6909, %v6908
    %v6954 = vpack.c.b16 %v6911, %v6910
    %v6955 = vpack.c.b16 %v6913, %v6912
    %v6956 = vpack.c.b16 %v6915, %v6914
    %v6957 = vpack.c.b16 %v6917, %v6916
    %v6958 = vpack.c.b16 %v6919, %v6918
    %v6959 = vpack.c.b16 %v6921, %v6920
    %v6960 = vpack.c.b16 %v6923, %v6922
    %v6961 = vpack.c.b16 %v6925, %v6924
    %v6962 = vpack.c.b16 %v6927, %v6926
    %v6963 = vpack.c.b16 %v6929, %v6928
    %v6964 = vpack.c.b16 %v6931, %v6930
    %v6965 = vpack.c.b16 %v6933, %v6932
    %6998 = vmatpush.bf16.msra.mxu0 %v6941
    %6999 = vmatpush.bf16.msra.mxu0 %v6940
    %7000 = vmatpush.bf16.msra.mxu0 %v6939
    %7001 = vmatpush.bf16.msra.mxu0 %v6938
    %7002 = vmatpush.bf16.msra.mxu0 %v6937
    %7003 = vmatpush.bf16.msra.mxu0 %v6936
    %7004 = vmatpush.bf16.msra.mxu0 %v6935
    %7005 = vmatpush.bf16.msra.mxu0 %v6934
    %7006 = vmatmul.bf16.gmra.mxu0 %v6734
    %v7007 = vpop.f32.mrf.mxu0
    %v7008 = vadd.f32 %v6804, %v7007
    %v7009 = vpop.f32.mrf.mxu0
    %7010 = vdwg.mxu0
    %7011 = vmatpush.bf16.msra.mxu0 %v6949
    %7012 = vmatpush.bf16.msra.mxu0 %v6948
    %7013 = vmatpush.bf16.msra.mxu0 %v6947
    %7014 = vmatpush.bf16.msra.mxu0 %v6946
    %7015 = vmatpush.bf16.msra.mxu0 %v6945
    %7016 = vmatpush.bf16.msra.mxu0 %v6944
    %7017 = vmatpush.bf16.msra.mxu0 %v6943
    %7018 = vmatpush.bf16.msra.mxu0 %v6942
    %7019 = vmatmul.bf16.gmra.mxu0 %v6735
    %v7020 = vpop.f32.mrf.mxu0
    %v7021 = vadd.f32 %v7008, %v7020
    %v7022 = vpop.f32.mrf.mxu0
    %7023 = vdwg.mxu0
    %7024 = vmatpush.bf16.msra.mxu0 %v6957
    %7025 = vmatpush.bf16.msra.mxu0 %v6956
    %7026 = vmatpush.bf16.msra.mxu0 %v6955
    %7027 = vmatpush.bf16.msra.mxu0 %v6954
    %7028 = vmatpush.bf16.msra.mxu0 %v6953
    %7029 = vmatpush.bf16.msra.mxu0 %v6952
    %7030 = vmatpush.bf16.msra.mxu0 %v6951
    %7031 = vmatpush.bf16.msra.mxu0 %v6950
    %7032 = vmatmul.bf16.gmra.mxu0 %v6736
    %v7033 = vpop.f32.mrf.mxu0
    %v7034 = vadd.f32 %v7021, %v7033
    %v7035 = vpop.f32.mrf.mxu0
    %7036 = vdwg.mxu0
    %7037 = vmatpush.bf16.msra.mxu0 %v6965
    %7038 = vmatpush.bf16.msra.mxu0 %v6964
    %7039 = vmatpush.bf16.msra.mxu0 %v6963
    %7040 = vmatpush.bf16.msra.mxu0 %v6962
    %7041 = vmatpush.bf16.msra.mxu0 %v6961
    %7042 = vmatpush.bf16.msra.mxu0 %v6960
    %7043 = vmatpush.bf16.msra.mxu0 %v6959
    %7044 = vmatpush.bf16.msra.mxu0 %v6958
    %7045 = vmatmul.bf16.gmra.mxu0 %v6737
    %v7046 = vpop.f32.mrf.mxu0
    %v7047 = vadd.f32 %v7034, %v7046
    %v7048 = vpop.f32.mrf.mxu0
    %7049 = vdwg.mxu0
    %v7050 = vmax.f32 %v7047, 0.0
    %v7051 = vld [vmem:[%s1] sm:$0x3]
    %v7052 = vpack.c.bf16 %v7051, %v7051
    %v7053 = vld [vmem:[%s10] sm:$0xf]
    %v7054 = vld [vmem:[%s11] sm:$0x1]
    %v7056 = vperm.slane %v7054, 0
    %vm7058 = vcmask 64512
    %v7060 = vsel %vm7058, %v7052, 0
    %vm7062 = vcmask 1043456
    %v7064 = vsel %vm7062, %v7053, 0
    %7066 = vmatpush.bf16.msra.mxu0 0
    %7067 = vmatpush.bf16.msra.mxu0 0
    %7068 = vmatpush.bf16.msra.mxu0 0
    %7069 = vmatpush.bf16.msra.mxu0 0
    %7070 = vmatpush.bf16.msra.mxu0 0
    %7071 = vmatpush.bf16.msra.mxu0 0
    %7072 = vmatpush.bf16.msra.mxu0 0
    %7073 = vmatpush.bf16.msra.mxu0 %v7064
    %7074 = vmatmul.bf16.gmra.mxu0 %v7060
    %v7075 = vpop.f32.mrf.mxu0
    %v7076 = vadd.f32 %v7056, %v7075
    %v7077 = vpop.f32.mrf.mxu0
    %7078 = vdwg.mxu0
    %v7079 = vmax.f32 %v7076, 0.0
    %v7080 = vpack.c.bf16 %v7050, %v7050
    %v7081 = vld [vmem:[%s12] sm:$0xf]
    %v7082 = vld [vmem:[%s12 + $0x4] sm:$0xf]
    %v7083 = vld [vmem:[%s12 + $0x8] sm:$0xf]
    %v7084 = vld [vmem:[%s12 + $0xc] sm:$0xf]
    %v7085 = vld [vmem:[%s12 + $0x10] sm:$0xf]
    %v7086 = vld [vmem:[%s12 + $0x14] sm:$0xf]
    %v7087 = vld [vmem:[%s12 + $0x18] sm:$0xf]
    %v7088 = vld [vmem:[%s12 + $0x1c] sm:$0xf]
    %v7089 = vld [vmem:[%s12 + $0x20] sm:$0xf]
    %v7090 = vld [vmem:[%s12 + $0x24] sm:$0xf]
    %v7091 = vld [vmem:[%s12 + $0x28] sm:$0xf]
    %v7092 = vld [vmem:[%s12 + $0x2c] sm:$0xf]
    %v7093 = vld [vmem:[%s12 + $0x30] sm:$0xf]
    %v7094 = vld [vmem:[%s12 + $0x34] sm:$0xf]
    %v7095 = vld [vmem:[%s12 + $0x38] sm:$0xf]
    %v7096 = vld [vmem:[%s12 + $0x3c] sm:$0xf]
    %v7097 = vpack.c.bf16 %v7079, %v7079
    %v7098 = vld [vmem:[%s13] sm:$0xf]
    %v7099 = vld [vmem:[%s13 + $0x4] sm:$0xf]
    %v7100 = vld [vmem:[%s13 + $0x8] sm:$0xf]
    %v7101 = vld [vmem:[%s13 + $0xc] sm:$0xf]
    %v7102 = vld [vmem:[%s13 + $0x10] sm:$0xf]
    %v7103 = vld [vmem:[%s13 + $0x14] sm:$0xf]
    %v7104 = vld [vmem:[%s13 + $0x18] sm:$0xf]
    %v7105 = vld [vmem:[%s13 + $0x1c] sm:$0xf]
    %v7114 = vunpack.c.l.b16 %v7098
    %v7115 = vunpack.c.l.b16 %v7099
    %v7116 = vunpack.c.l.b16 %v7100
    %v7117 = vunpack.c.l.b16 %v7101
    %v7118 = vunpack.c.l.b16 %v7102
    %v7119 = vunpack.c.l.b16 %v7103
    %v7120 = vunpack.c.l.b16 %v7104
    %v7121 = vunpack.c.l.b16 %v7105
    %v7122 = vpack.c.b16 %v7115, %v7114
    %v7123 = vpack.c.b16 %v7117, %v7116
    %v7124 = vpack.c.b16 %v7119, %v7118
    %v7125 = vpack.c.b16 %v7121, %v7120
    %v7131 = vsel %vm4068, %v7097, 0
    %7133 = vmatpush.bf16.msra.mxu0 0
    %7134 = vmatpush.bf16.msra.mxu0 0
    %7135 = vmatpush.bf16.msra.mxu0 0
    %7136 = vmatpush.bf16.msra.mxu0 0
    %7137 = vmatpush.bf16.msra.mxu0 %v7125
    %7138 = vmatpush.bf16.msra.mxu0 %v7124
    %7139 = vmatpush.bf16.msra.mxu0 %v7123
    %7140 = vmatpush.bf16.msra.mxu0 %v7122
    %7141 = vmatmul.bf16.gmra.mxu0 %v7131
    %v7142 = vpop.f32.mrf.mxu0
    %v7143 = vadd.f32 0.0, %v7142
    %v7144 = vpop.f32.mrf.mxu0
    %7145 = vdwg.mxu0
    %v7162 = vunpack.c.l.b16 %v7081
    %v7163 = vunpack.c.l.b16 %v7082
    %v7164 = vunpack.c.l.b16 %v7083
    %v7165 = vunpack.c.l.b16 %v7084
    %v7166 = vunpack.c.l.b16 %v7085
    %v7167 = vunpack.c.l.b16 %v7086
    %v7168 = vunpack.c.l.b16 %v7087
    %v7169 = vunpack.c.l.b16 %v7088
    %v7170 = vunpack.c.l.b16 %v7089
    %v7171 = vunpack.c.l.b16 %v7090
    %v7172 = vunpack.c.l.b16 %v7091
    %v7173 = vunpack.c.l.b16 %v7092
    %v7174 = vunpack.c.l.b16 %v7093
    %v7175 = vunpack.c.l.b16 %v7094
    %v7176 = vunpack.c.l.b16 %v7095
    %v7177 = vunpack.c.l.b16 %v7096
    %v7178 = vpack.c.b16 %v7163, %v7162
    %v7179 = vpack.c.b16 %v7165, %v7164
    %v7180 = vpack.c.b16 %v7167, %v7166
    %v7181 = vpack.c.b16 %v7169, %v7168
    %v7182 = vpack.c.b16 %v7171, %v7170
    %v7183 = vpack.c.b16 %v7173, %v7172
    %v7184 = vpack.c.b16 %v7175, %v7174
    %v7185 = vpack.c.b16 %v7177, %v7176
    %7194 = vmatpush.bf16.msra.mxu0 %v7185
    %7195 = vmatpush.bf16.msra.mxu0 %v7184
    %7196 = vmatpush.bf16.msra.mxu0 %v7183
    %7197 = vmatpush.bf16.msra.mxu0 %v7182
    %7198 = vmatpush.bf16.msra.mxu0 %v7181
    %7199 = vmatpush.bf16.msra.mxu0 %v7180
    %7200 = vmatpush.bf16.msra.mxu0 %v7179
    %7201 = vmatpush.bf16.msra.mxu0 %v7178
    %7202 = vmatmul.bf16.gmra.mxu0 %v7080
    %v7203 = vpop.f32.mrf.mxu0
    %v7204 = vadd.f32 %v7143, %v7203
    %v7205 = vpop.f32.mrf.mxu0
    %7206 = vdwg.mxu0
    %v7207 = vld [vmem:[%s14] sm:$0x1]
    %v7209 = vperm.slane %v7207, 0
    %v7211 = vadd.f32 %v7204, %v7209
    %vm7212 = vcmask 74752
    %7213 = vst.msk [vmem:[#allocation4] sm:$0x3] %vm7212, %v7211
    // Predicated region
    $region62: #{multi_input_forward.1} parent=1 // pred_check
      _
    $region63: #{multi_input_forward.1} parent=1 // pred_check_branch
      %7215 = sbr.rel (0) target = $region65
    $region64: #{multi_input_forward.1} parent=1 // pred_region
      %7217 = vsyncadd [#allocation5], 0
      %s7219 = sshll.u32 [#allocation4], 4
      %s7220 = int_to_ptr.vmem [resolvable:$true] %s7219
      %s7221 = sshll.u32 %s15, 4
      %s7222 = int_to_ptr.hbm [resolvable:$true] %s7221
      %7224 = dma.vmem_to_hbm [thread:$0]  %s7220, 32, %s7222, [#allocation5]
    $region65: #{multi_input_forward.1} parent=1 // pred_fallthru
      _
    // Predicated region
    $region66: #{multi_input_forward.1} parent=1 // pred_check
      _
    $region67: #{multi_input_forward.1} parent=1 // pred_check_branch
      %7226 = sbr.rel (0) target = $region69
    $region68: #{multi_input_forward.1} parent=1 // pred_region
      %7228 = dma.done [#allocation5], 32
    $region69: #{multi_input_forward.1} parent=1 // pred_fallthru
      _
    %7229 = vsyncpa [#allocation5], 1

</llo_original>
